<compile_context>
chip_gen: v5e
topology: v5e:2x2
jax: 0.10.0
libtpu: 0.0.40
codegen_flags: <defaults>
</compile_context>

<pallas_src>
import math
import functools

import jax
import jax.numpy as jnp
from jax.experimental import pallas as pl
from jax.experimental.pallas import tpu as pltpu


# Row indices inside the stacked (11, D) per-channel parameter array.
_BQ, _BK, _BV, _BO, _BF2, _G1, _B1, _G2, _B2, _GF, _BF = range(11)


def _fused_decoder_layer_kernel(tgt_ref, temb_ref, vemb_ref, vpos_ref, bias_ref,
                                wq_ref, wk_ref, wv_ref, wo_ref, w1_ref, w2_ref,
                                vecs_ref, bf1_ref, out_ref, o_scr,
                                *, nhead, n_batch, lq, lk, eps):
    f32, bf16 = jnp.float32, jnp.bfloat16

    x_tgt = tgt_ref[...].astype(f32)                            # (BB*Lq, D) residual input
    q_in = (x_tgt + temb_ref[...].astype(f32)).astype(bf16)     # query + query pos emb
    v_e = vemb_ref[...].astype(f32)
    k_in = (v_e + vpos_ref[...].astype(f32)).astype(bf16)       # key + visual pos emb
    v_in = v_e.astype(bf16)                                     # value

    vec = vecs_ref[...].astype(f32)                             # (11, D)

    def vrow(i):                                                # (1, D) broadcastable row
        return vec[i:i + 1, :]

    D = x_tgt.shape[1]
    H = nhead
    Dh = D // H

    # ---- QKV projections: one full-M, full-K matmul each (batch folded into M).
    # 1/sqrt(Dh) scale was pre-folded into wq / bq by the wrapper.
    q = (jnp.dot(q_in, wq_ref[...], preferred_element_type=f32) + vrow(_BQ)).astype(bf16)
    k = (jnp.dot(k_in, wk_ref[...], preferred_element_type=f32) + vrow(_BK)).astype(bf16)
    v = (jnp.dot(v_in, wv_ref[...], preferred_element_type=f32) + vrow(_BV)).astype(bf16)

    # ---- attention: per-(batch, head) softmax(QK^T + bias) V.
    # Head outputs are written lane-concatenated into VMEM scratch so the output
    # projection below is ONE matmul with full contraction depth K = D.
    for b in range(n_batch):
        neg = bias_ref[b]                                       # (1, Lk) f32: -1e30 on pads
        q_b = q[b * lq:(b + 1) * lq, :]
        k_b = k[b * lk:(b + 1) * lk, :]
        v_b = v[b * lk:(b + 1) * lk, :]
        for h in range(H):
            cs = slice(h * Dh, (h + 1) * Dh)
            s = jax.lax.dot_general(q_b[:, cs], k_b[:, cs], (((1,), (1,)), ((), ())),
                                    preferred_element_type=f32)          # (Lq, Lk) f32
            s = s + neg
            s = s - jnp.max(s, axis=-1, keepdims=True)
            e = jnp.exp(s)
            p = e * pl.reciprocal(jnp.sum(e, axis=-1, keepdims=True), approx=True)
            o_scr[pl.ds(b * lq, lq), pl.ds(h * Dh, Dh)] = jnp.dot(
                p.astype(bf16), v_b[:, cs], preferred_element_type=f32)

    # ---- output projection (single matmul, K = D)
    tgt2 = jnp.dot(o_scr[...].astype(bf16), wo_ref[...],
                   preferred_element_type=f32) + vrow(_BO)

    def layer_norm(x, g, b):
        mu = jnp.mean(x, axis=-1, keepdims=True)
        var = jnp.mean((x - mu) ** 2, axis=-1, keepdims=True)
        return (x - mu) * jax.lax.rsqrt(var + eps) * g + b

    # ---- residual + LayerNorm 1
    x = layer_norm(x_tgt + tgt2, vrow(_G1), vrow(_B1))

    # ---- FFN (Linear -> ReLU -> Linear) + residual + LayerNorm 2
    h1 = jnp.dot(x.astype(bf16), w1_ref[...], preferred_element_type=f32) \
        + bf1_ref[...].astype(f32)
    h1 = jnp.maximum(h1, 0.0)
    ff = jnp.dot(h1.astype(bf16), w2_ref[...], preferred_element_type=f32) + vrow(_BF2)
    y = layer_norm(x + ff, vrow(_G2), vrow(_B2))

    # ---- Decoder's final LayerNorm, fused
    out_ref[...] = layer_norm(y, vrow(_GF), vrow(_BF)).astype(out_ref.dtype)


def prepare_decoder_params(params, nhead, num_layers):
    """One-time parameter prep (keep OUT of the per-step path): bf16 casts, 1/sqrt(Dh)
    folded into the query projection, per-channel vectors stacked into one (11, D) DMA."""
    # Reference Decoder feeds the ORIGINAL `tgt` to every layer and only the last layer's
    # output is returned, so only the last layer's weights matter.
    p = params['layers'][num_layers - 1]
    D = p['wq'].shape[0]
    scale = 1.0 / math.sqrt(D // nhead)
    bf16 = jnp.bfloat16
    return {
        'wq': (p['wq'] * scale).astype(bf16),
        'wk': p['wk'].astype(bf16),
        'wv': p['wv'].astype(bf16),
        'wo': p['wo'].astype(bf16),
        'w1': p['w1'].astype(bf16),
        'w2': p['w2'].astype(bf16),
        'bf1': p['bf1'].reshape(1, -1).astype(jnp.float32),
        'vecs': jnp.stack([p['bq'] * scale, p['bk'], p['bv'], p['bo'], p['bf2'],
                           p['g1'], p['bn1'], p['g2'], p['bn2'],
                           params['norm_g'], params['norm_b']], axis=0).astype(jnp.float32),
    }


def decoder_forward(prepped, tgt, t_emb, vt_emb, v_emb, v_mask, v_pos, nhead,
                    *, batch_block=None, eps=1e-5):
    """Reference Decoder forward (return_intermediate=False): returns (1, Lq, B, D).

    batch_block: batches processed per grid step.  Default (None) folds the whole batch
    into one step -- best for single-TC v5e/v6e.  For v7x pass e.g. B//2 to get one fat
    step per TensorCore.
    """
    # TODO(synk): vt_emb unused -- concrete decoder_layer definition not provided.
    del vt_emb
    Lq, B, D = tgt.shape
    Lk = v_emb.shape[0]
    FF = prepped['w1'].shape[1]

    BB = B if batch_block is None else batch_block
    assert B % BB == 0, "batch_block must divide B"
    G = B // BB
    if G > 1:
        # Partial row-blocks must respect the (8, lane) sublane tiling.
        assert (BB * Lq) % 8 == 0 and (BB * Lk) % 8 == 0

    # Batch-major, lane-dense (D last); batch folded into the row (M) dimension.
    # (In production keep activations batch-major upstream so these transposes vanish.)
    tgt_f = jnp.transpose(tgt, (1, 0, 2)).reshape(B * Lq, D)
    temb_f = jnp.transpose(t_emb, (1, 0, 2)).reshape(B * Lq, D)
    vemb_f = jnp.transpose(v_emb, (1, 0, 2)).reshape(B * Lk, D)
    vpos_f = jnp.transpose(v_pos, (1, 0, 2)).reshape(B * Lk, D)
    # Additive key-padding bias, computed ONCE (True = ignore). Kept strictly f32.
    neg_bias = jnp.where(v_mask, jnp.float32(-1e30), jnp.float32(0.0))[:, None, :]

    kernel = functools.partial(_fused_decoder_layer_kernel, nhead=nhead,
                               n_batch=BB, lq=Lq, lk=Lk, eps=eps)

    weight_bytes = 2 * (4 * D * D + 2 * D * FF)          # bf16 weights
    vmem_limit = int(min(64 * 2 ** 20, max(32 * 2 ** 20, 4 * weight_bytes)))

    def run(single_buffer_weights):
        def wspec(shape):
            idx = lambda g, _n=len(shape): (0,) * _n
            if single_buffer_weights:
                # Grid-invariant operands: no double-buffering (halves weight VMEM).
                return pl.BlockSpec(shape, idx, pipeline_mode=pl.Buffered(1))
            return pl.BlockSpec(shape, idx)

        return pl.pallas_call(
            kernel,
            out_shape=jax.ShapeDtypeStruct((B * Lq, D), tgt.dtype),
            grid=(G,),
            in_specs=[
                pl.BlockSpec((BB * Lq, D), lambda g: (g, 0)),    # tgt (flattened)
                pl.BlockSpec((BB * Lq, D), lambda g: (g, 0)),    # t_emb
                pl.BlockSpec((BB * Lk, D), lambda g: (g, 0)),    # v_emb
                pl.BlockSpec((BB * Lk, D), lambda g: (g, 0)),    # v_pos
                pl.BlockSpec((BB, 1, Lk), lambda g: (g, 0, 0)),  # additive mask bias
                wspec((D, D)), wspec((D, D)), wspec((D, D)), wspec((D, D)),
                wspec((D, FF)), wspec((FF, D)),
                wspec((11, D)), wspec((1, FF)),
            ],
            out_specs=pl.BlockSpec((BB * Lq, D), lambda g: (g, 0)),
            scratch_shapes=[pltpu.VMEM((BB * Lq, D), jnp.float32)],
            compiler_params=pltpu.CompilerParams(
                dimension_semantics=("parallel",),
                vmem_limit_bytes=vmem_limit),
        )(tgt_f, temb_f, vemb_f, vpos_f, neg_bias,
          prepped['wq'], prepped['wk'], prepped['wv'], prepped['wo'],
          prepped['w1'], prepped['w2'], prepped['vecs'], prepped['bf1'])

    try:
        out_flat = run(True)
    except Exception:
        # Fallback for JAX builds without BlockSpec.pipeline_mode / Buffered(1).
        out_flat = run(False)

    out = out_flat.reshape(B, Lq, D)
    return jnp.transpose(out, (1, 0, 2))[None]                   # (1, Lq, B, D)


# --------------------------------- params -----------------------------------

def make_params(key, d_model, dim_ff, num_layers):
    ks = jax.random.split(key, 8)
    s = 0.02
    layer = {
        'wq': s * jax.random.normal(ks[0], (d_model, d_model), jnp.float32),
        'bq': jnp.zeros((d_model,), jnp.float32),
        'wk': s * jax.random.normal(ks[1], (d_model, d_model), jnp.float32),
        'bk': jnp.zeros((d_model,), jnp.float32),
        'wv': s * jax.random.normal(ks[2], (d_model, d_model), jnp.float32),
        'bv': jnp.zeros((d_model,), jnp.float32),
        'wo': s * jax.random.normal(ks[3], (d_model, d_model), jnp.float32),
        'bo': jnp.zeros((d_model,), jnp.float32),
        'w1': s * jax.random.normal(ks[4], (d_model, dim_ff), jnp.float32),
        'bf1': jnp.zeros((dim_ff,), jnp.float32),
        'w2': s * jax.random.normal(ks[5], (dim_ff, d_model), jnp.float32),
        'bf2': jnp.zeros((d_model,), jnp.float32),
        'g1': jnp.ones((d_model,), jnp.float32),
        'bn1': jnp.zeros((d_model,), jnp.float32),
        'g2': jnp.ones((d_model,), jnp.float32),
        'bn2': jnp.zeros((d_model,), jnp.float32),
    }
    # copy.deepcopy in the reference => every layer has identical weights at init.
    return {
        'layers': [layer] * num_layers,
        'norm_g': jnp.ones((d_model,), jnp.float32),
        'norm_b': jnp.zeros((d_model,), jnp.float32),
    }


# ---------------------------------- main -------------------------------------

if __name__ == "__main__":
    Lq, Lk, B, D, H, FF = 8, 16, 2, 32, 4, 64
    num_layers = 2

    key = jax.random.PRNGKey(0)
    k_tgt, k_temb, k_vtemb, k_vemb, k_vpos, k_par = jax.random.split(key, 6)

    tgt = jax.random.normal(k_tgt, (Lq, B, D), jnp.float32)
    t_emb = jax.random.normal(k_temb, (Lq, B, D), jnp.float32)
    vt_emb = jax.random.normal(k_vtemb, (Lk, B, D), jnp.float32)
    v_emb = jax.random.normal(k_vemb, (Lk, B, D), jnp.float32)
    v_pos = jax.random.normal(k_vpos, (Lk, B, D), jnp.float32)
    # key_padding_mask: True = ignore. Pad the last 3 visual tokens of batch 1.
    v_mask = jnp.zeros((B, Lk), jnp.bool_).at[1, Lk - 3:].set(True)

    params = make_params(k_par, D, FF, num_layers)
    prepped = prepare_decoder_params(params, H, num_layers)   # one-time prep (bf16 casts)

    out = decoder_forward(prepped, tgt, t_emb, vt_emb, v_emb, v_mask, v_pos, H)
    out = jax.block_until_ready(out)
    assert out.shape == (1, Lq, B, D), out.shape
    assert bool(jnp.all(jnp.isfinite(out)))
    print("KERNEL_OK")
</pallas_src>

<mosaic_0001>
module attributes {stable_mosaic.version = 11 : i64} {
  func.func @_fused_decoder_layer_kernel(%arg0: i32, %arg1: memref<16x32xf32, #tpu.memory_space<vmem>>, %arg2: memref<16x32xf32, #tpu.memory_space<vmem>>, %arg3: memref<32x32xf32, #tpu.memory_space<vmem>>, %arg4: memref<32x32xf32, #tpu.memory_space<vmem>>, %arg5: memref<2x1x16xf32, #tpu.memory_space<vmem>>, %arg6: memref<32x32xbf16, #tpu.memory_space<vmem>>, %arg7: memref<32x32xbf16, #tpu.memory_space<vmem>>, %arg8: memref<32x32xbf16, #tpu.memory_space<vmem>>, %arg9: memref<32x32xbf16, #tpu.memory_space<vmem>>, %arg10: memref<32x64xbf16, #tpu.memory_space<vmem>>, %arg11: memref<64x32xbf16, #tpu.memory_space<vmem>>, %arg12: memref<11x32xf32, #tpu.memory_space<vmem>>, %arg13: memref<1x64xf32, #tpu.memory_space<vmem>>, %arg14: memref<16x32xf32, #tpu.memory_space<vmem>>, %arg15: memref<16x32xf32, #tpu.memory_space<vmem>>) attributes {dimension_semantics = [#tpu.dimension_semantics<parallel>], iteration_bounds = array<i64: 1>, scalar_prefetch = 0 : i64, scratch_operands = 1 : i64, tpu.core_type = #tpu.core_type<tc>, window_params = [{transform_indices = @transform_0, window_bounds = array<i64: 16, 32>}, {transform_indices = @transform_1, window_bounds = array<i64: 16, 32>}, {transform_indices = @transform_2, window_bounds = array<i64: 32, 32>}, {transform_indices = @transform_3, window_bounds = array<i64: 32, 32>}, {transform_indices = @transform_4, window_bounds = array<i64: 2, 1, 16>}, {pipeline_mode = #tpu.pipeline_mode<synchronous>, transform_indices = @transform_5, window_bounds = array<i64: 32, 32>}, {pipeline_mode = #tpu.pipeline_mode<synchronous>, transform_indices = @transform_6, window_bounds = array<i64: 32, 32>}, {pipeline_mode = #tpu.pipeline_mode<synchronous>, transform_indices = @transform_7, window_bounds = array<i64: 32, 32>}, {pipeline_mode = #tpu.pipeline_mode<synchronous>, transform_indices = @transform_8, window_bounds = array<i64: 32, 32>}, {pipeline_mode = #tpu.pipeline_mode<synchronous>, transform_indices = @transform_9, window_bounds = array<i64: 32, 64>}, {pipeline_mode = #tpu.pipeline_mode<synchronous>, transform_indices = @transform_10, window_bounds = array<i64: 64, 32>}, {pipeline_mode = #tpu.pipeline_mode<synchronous>, transform_indices = @transform_11, window_bounds = array<i64: 11, 32>}, {pipeline_mode = #tpu.pipeline_mode<synchronous>, transform_indices = @transform_12, window_bounds = array<i64: 1, 64>}, {transform_indices = @transform_13, window_bounds = array<i64: 16, 32>}]} {
    %c0 = arith.constant 0 : index
    %c0_0 = arith.constant 0 : index
    %0 = vector.load %arg1[%c0, %c0_0] : memref<16x32xf32, #tpu.memory_space<vmem>>, vector<16x32xf32>
    %c0_1 = arith.constant 0 : index
    %c0_2 = arith.constant 0 : index
    %1 = vector.load %arg2[%c0_1, %c0_2] : memref<16x32xf32, #tpu.memory_space<vmem>>, vector<16x32xf32>
    %2 = arith.addf %0, %1 : vector<16x32xf32>
    %3 = arith.truncf %2 : vector<16x32xf32> to vector<16x32xbf16>
    %c0_3 = arith.constant 0 : index
    %c0_4 = arith.constant 0 : index
    %4 = vector.load %arg3[%c0_3, %c0_4] : memref<32x32xf32, #tpu.memory_space<vmem>>, vector<32x32xf32>
    %c0_5 = arith.constant 0 : index
    %c0_6 = arith.constant 0 : index
    %5 = vector.load %arg4[%c0_5, %c0_6] : memref<32x32xf32, #tpu.memory_space<vmem>>, vector<32x32xf32>
    %6 = arith.addf %4, %5 : vector<32x32xf32>
    %7 = arith.truncf %6 : vector<32x32xf32> to vector<32x32xbf16>
    %8 = arith.truncf %4 : vector<32x32xf32> to vector<32x32xbf16>
    %c0_7 = arith.constant 0 : index
    %c0_8 = arith.constant 0 : index
    %9 = vector.load %arg12[%c0_7, %c0_8] : memref<11x32xf32, #tpu.memory_space<vmem>>, vector<11x32xf32>
    %c0_9 = arith.constant 0 : index
    %c0_10 = arith.constant 0 : index
    %10 = vector.load %arg6[%c0_9, %c0_10] : memref<32x32xbf16, #tpu.memory_space<vmem>>, vector<32x32xbf16>
    %cst = arith.constant dense<0.000000e+00> : vector<16x32xf32>
    %11 = tpu.matmul %3, %10, %cst {dimension_numbers = #tpu.dot_dimension_numbers<[1], [0], [0], [1], [0, 0, 1, 1], [], []>} : vector<16x32xbf16>, vector<32x32xbf16>, vector<16x32xf32> -> vector<16x32xf32>
    %12 = vector.extract_strided_slice %9 {offsets = [0, 0], sizes = [1, 32], strides = [1, 1]} : vector<11x32xf32> to vector<1x32xf32>
    %13 = vector.broadcast %12 : vector<1x32xf32> to vector<16x32xf32>
    %14 = arith.addf %11, %13 : vector<16x32xf32>
    %15 = arith.truncf %14 : vector<16x32xf32> to vector<16x32xbf16>
    %c0_11 = arith.constant 0 : index
    %c0_12 = arith.constant 0 : index
    %16 = vector.load %arg7[%c0_11, %c0_12] : memref<32x32xbf16, #tpu.memory_space<vmem>>, vector<32x32xbf16>
    %cst_13 = arith.constant dense<0.000000e+00> : vector<32x32xf32>
    %17 = tpu.matmul %7, %16, %cst_13 {dimension_numbers = #tpu.dot_dimension_numbers<[1], [0], [0], [1], [0, 0, 1, 1], [], []>} : vector<32x32xbf16>, vector<32x32xbf16>, vector<32x32xf32> -> vector<32x32xf32>
    %18 = vector.extract_strided_slice %9 {offsets = [1, 0], sizes = [1, 32], strides = [1, 1]} : vector<11x32xf32> to vector<1x32xf32>
    %19 = vector.broadcast %18 : vector<1x32xf32> to vector<32x32xf32>
    %20 = arith.addf %17, %19 : vector<32x32xf32>
    %21 = arith.truncf %20 : vector<32x32xf32> to vector<32x32xbf16>
    %c0_14 = arith.constant 0 : index
    %c0_15 = arith.constant 0 : index
    %22 = vector.load %arg8[%c0_14, %c0_15] : memref<32x32xbf16, #tpu.memory_space<vmem>>, vector<32x32xbf16>
    %cst_16 = arith.constant dense<0.000000e+00> : vector<32x32xf32>
    %23 = tpu.matmul %8, %22, %cst_16 {dimension_numbers = #tpu.dot_dimension_numbers<[1], [0], [0], [1], [0, 0, 1, 1], [], []>} : vector<32x32xbf16>, vector<32x32xbf16>, vector<32x32xf32> -> vector<32x32xf32>
    %24 = vector.extract_strided_slice %9 {offsets = [2, 0], sizes = [1, 32], strides = [1, 1]} : vector<11x32xf32> to vector<1x32xf32>
    %25 = vector.broadcast %24 : vector<1x32xf32> to vector<32x32xf32>
    %26 = arith.addf %23, %25 : vector<32x32xf32>
    %27 = arith.truncf %26 : vector<32x32xf32> to vector<32x32xbf16>
    %c0_17 = arith.constant 0 : index
    %c0_18 = arith.constant 0 : index
    %c0_19 = arith.constant 0 : index
    %28 = vector.load %arg5[%c0_17, %c0_18, %c0_19] : memref<2x1x16xf32, #tpu.memory_space<vmem>>, vector<1x1x16xf32>
    %29 = vector.shape_cast %28 : vector<1x1x16xf32> to vector<1x16xf32>
    %30 = vector.extract_strided_slice %15 {offsets = [0, 0], sizes = [8, 32], strides = [1, 1]} : vector<16x32xbf16> to vector<8x32xbf16>
    %31 = vector.extract_strided_slice %21 {offsets = [0, 0], sizes = [16, 32], strides = [1, 1]} : vector<32x32xbf16> to vector<16x32xbf16>
    %32 = vector.extract_strided_slice %27 {offsets = [0, 0], sizes = [16, 32], strides = [1, 1]} : vector<32x32xbf16> to vector<16x32xbf16>
    %33 = vector.extract_strided_slice %30 {offsets = [0, 0], sizes = [8, 8], strides = [1, 1]} : vector<8x32xbf16> to vector<8x8xbf16>
    %34 = vector.extract_strided_slice %31 {offsets = [0, 0], sizes = [16, 8], strides = [1, 1]} : vector<16x32xbf16> to vector<16x8xbf16>
    %cst_20 = arith.constant dense<0.000000e+00> : vector<8x16xf32>
    %35 = tpu.matmul %33, %34, %cst_20 {dimension_numbers = #tpu.dot_dimension_numbers<[1], [1], [0], [0], [0, 0, 1, 0], [], []>} : vector<8x8xbf16>, vector<16x8xbf16>, vector<8x16xf32> -> vector<8x16xf32>
    %36 = vector.broadcast %29 : vector<1x16xf32> to vector<8x16xf32>
    %37 = arith.addf %35, %36 : vector<8x16xf32>
    %cst_21 = arith.constant dense<0xFF800000> : vector<8xf32>
    %38 = vector.multi_reduction <maximumf>, %37, %cst_21 [1] : vector<8x16xf32> to vector<8xf32>
    %39 = vector.shape_cast %38 : vector<8xf32> to vector<8x1xf32>
    %40 = vector.broadcast %39 : vector<8x1xf32> to vector<8x16xf32>
    %41 = arith.subf %37, %40 : vector<8x16xf32>
    %42 = math.exp %41 : vector<8x16xf32>
    %cst_22 = arith.constant dense<0.000000e+00> : vector<8xf32>
    %43 = vector.multi_reduction <add>, %42, %cst_22 [1] : vector<8x16xf32> to vector<8xf32>
    %44 = vector.shape_cast %43 : vector<8xf32> to vector<8x1xf32>
    %45 = tpu.reciprocal %44 {approx = true} : vector<8x1xf32> -> vector<8x1xf32>
    %46 = vector.broadcast %45 : vector<8x1xf32> to vector<8x16xf32>
    %47 = arith.mulf %42, %46 : vector<8x16xf32>
    %48 = arith.truncf %47 : vector<8x16xf32> to vector<8x16xbf16>
    %49 = vector.extract_strided_slice %32 {offsets = [0, 0], sizes = [16, 8], strides = [1, 1]} : vector<16x32xbf16> to vector<16x8xbf16>
    %cst_23 = arith.constant dense<0.000000e+00> : vector<8x8xf32>
    %50 = tpu.matmul %48, %49, %cst_23 {dimension_numbers = #tpu.dot_dimension_numbers<[1], [0], [0], [1], [0, 0, 1, 1], [], []>} : vector<8x16xbf16>, vector<16x8xbf16>, vector<8x8xf32> -> vector<8x8xf32>
    %c0_24 = arith.constant 0 : index
    %c0_25 = arith.constant 0 : index
    %51 = vector.load %arg15[%c0_24, %c0_25] : memref<16x32xf32, #tpu.memory_space<vmem>>, vector<8x8xf32>
    tpu.vector_store %arg15[%c0_24, %c0_25], %50 {strides = array<i32>} : memref<16x32xf32, #tpu.memory_space<vmem>>, vector<8x8xf32>,
    %52 = vector.extract_strided_slice %30 {offsets = [0, 8], sizes = [8, 8], strides = [1, 1]} : vector<8x32xbf16> to vector<8x8xbf16>
    %53 = vector.extract_strided_slice %31 {offsets = [0, 8], sizes = [16, 8], strides = [1, 1]} : vector<16x32xbf16> to vector<16x8xbf16>
    %cst_26 = arith.constant dense<0.000000e+00> : vector<8x16xf32>
    %54 = tpu.matmul %52, %53, %cst_26 {dimension_numbers = #tpu.dot_dimension_numbers<[1], [1], [0], [0], [0, 0, 1, 0], [], []>} : vector<8x8xbf16>, vector<16x8xbf16>, vector<8x16xf32> -> vector<8x16xf32>
    %55 = vector.broadcast %29 : vector<1x16xf32> to vector<8x16xf32>
    %56 = arith.addf %54, %55 : vector<8x16xf32>
    %cst_27 = arith.constant dense<0xFF800000> : vector<8xf32>
    %57 = vector.multi_reduction <maximumf>, %56, %cst_27 [1] : vector<8x16xf32> to vector<8xf32>
    %58 = vector.shape_cast %57 : vector<8xf32> to vector<8x1xf32>
    %59 = vector.broadcast %58 : vector<8x1xf32> to vector<8x16xf32>
    %60 = arith.subf %56, %59 : vector<8x16xf32>
    %61 = math.exp %60 : vector<8x16xf32>
    %cst_28 = arith.constant dense<0.000000e+00> : vector<8xf32>
    %62 = vector.multi_reduction <add>, %61, %cst_28 [1] : vector<8x16xf32> to vector<8xf32>
    %63 = vector.shape_cast %62 : vector<8xf32> to vector<8x1xf32>
    %64 = tpu.reciprocal %63 {approx = true} : vector<8x1xf32> -> vector<8x1xf32>
    %65 = vector.broadcast %64 : vector<8x1xf32> to vector<8x16xf32>
    %66 = arith.mulf %61, %65 : vector<8x16xf32>
    %67 = arith.truncf %66 : vector<8x16xf32> to vector<8x16xbf16>
    %68 = vector.extract_strided_slice %32 {offsets = [0, 8], sizes = [16, 8], strides = [1, 1]} : vector<16x32xbf16> to vector<16x8xbf16>
    %cst_29 = arith.constant dense<0.000000e+00> : vector<8x8xf32>
    %69 = tpu.matmul %67, %68, %cst_29 {dimension_numbers = #tpu.dot_dimension_numbers<[1], [0], [0], [1], [0, 0, 1, 1], [], []>} : vector<8x16xbf16>, vector<16x8xbf16>, vector<8x8xf32> -> vector<8x8xf32>
    %c0_30 = arith.constant 0 : index
    %c8 = arith.constant 8 : index
    %70 = vector.load %arg15[%c0_30, %c8] : memref<16x32xf32, #tpu.memory_space<vmem>>, vector<8x8xf32>
    tpu.vector_store %arg15[%c0_30, %c8], %69 {strides = array<i32>} : memref<16x32xf32, #tpu.memory_space<vmem>>, vector<8x8xf32>,
    %71 = vector.extract_strided_slice %30 {offsets = [0, 16], sizes = [8, 8], strides = [1, 1]} : vector<8x32xbf16> to vector<8x8xbf16>
    %72 = vector.extract_strided_slice %31 {offsets = [0, 16], sizes = [16, 8], strides = [1, 1]} : vector<16x32xbf16> to vector<16x8xbf16>
    %cst_31 = arith.constant dense<0.000000e+00> : vector<8x16xf32>
    %73 = tpu.matmul %71, %72, %cst_31 {dimension_numbers = #tpu.dot_dimension_numbers<[1], [1], [0], [0], [0, 0, 1, 0], [], []>} : vector<8x8xbf16>, vector<16x8xbf16>, vector<8x16xf32> -> vector<8x16xf32>
    %74 = vector.broadcast %29 : vector<1x16xf32> to vector<8x16xf32>
    %75 = arith.addf %73, %74 : vector<8x16xf32>
    %cst_32 = arith.constant dense<0xFF800000> : vector<8xf32>
    %76 = vector.multi_reduction <maximumf>, %75, %cst_32 [1] : vector<8x16xf32> to vector<8xf32>
    %77 = vector.shape_cast %76 : vector<8xf32> to vector<8x1xf32>
    %78 = vector.broadcast %77 : vector<8x1xf32> to vector<8x16xf32>
    %79 = arith.subf %75, %78 : vector<8x16xf32>
    %80 = math.exp %79 : vector<8x16xf32>
    %cst_33 = arith.constant dense<0.000000e+00> : vector<8xf32>
    %81 = vector.multi_reduction <add>, %80, %cst_33 [1] : vector<8x16xf32> to vector<8xf32>
    %82 = vector.shape_cast %81 : vector<8xf32> to vector<8x1xf32>
    %83 = tpu.reciprocal %82 {approx = true} : vector<8x1xf32> -> vector<8x1xf32>
    %84 = vector.broadcast %83 : vector<8x1xf32> to vector<8x16xf32>
    %85 = arith.mulf %80, %84 : vector<8x16xf32>
    %86 = arith.truncf %85 : vector<8x16xf32> to vector<8x16xbf16>
    %87 = vector.extract_strided_slice %32 {offsets = [0, 16], sizes = [16, 8], strides = [1, 1]} : vector<16x32xbf16> to vector<16x8xbf16>
    %cst_34 = arith.constant dense<0.000000e+00> : vector<8x8xf32>
    %88 = tpu.matmul %86, %87, %cst_34 {dimension_numbers = #tpu.dot_dimension_numbers<[1], [0], [0], [1], [0, 0, 1, 1], [], []>} : vector<8x16xbf16>, vector<16x8xbf16>, vector<8x8xf32> -> vector<8x8xf32>
    %c0_35 = arith.constant 0 : index
    %c16 = arith.constant 16 : index
    %89 = vector.load %arg15[%c0_35, %c16] : memref<16x32xf32, #tpu.memory_space<vmem>>, vector<8x8xf32>
    tpu.vector_store %arg15[%c0_35, %c16], %88 {strides = array<i32>} : memref<16x32xf32, #tpu.memory_space<vmem>>, vector<8x8xf32>,
    %90 = vector.extract_strided_slice %30 {offsets = [0, 24], sizes = [8, 8], strides = [1, 1]} : vector<8x32xbf16> to vector<8x8xbf16>
    %91 = vector.extract_strided_slice %31 {offsets = [0, 24], sizes = [16, 8], strides = [1, 1]} : vector<16x32xbf16> to vector<16x8xbf16>
    %cst_36 = arith.constant dense<0.000000e+00> : vector<8x16xf32>
    %92 = tpu.matmul %90, %91, %cst_36 {dimension_numbers = #tpu.dot_dimension_numbers<[1], [1], [0], [0], [0, 0, 1, 0], [], []>} : vector<8x8xbf16>, vector<16x8xbf16>, vector<8x16xf32> -> vector<8x16xf32>
    %93 = vector.broadcast %29 : vector<1x16xf32> to vector<8x16xf32>
    %94 = arith.addf %92, %93 : vector<8x16xf32>
    %cst_37 = arith.constant dense<0xFF800000> : vector<8xf32>
    %95 = vector.multi_reduction <maximumf>, %94, %cst_37 [1] : vector<8x16xf32> to vector<8xf32>
    %96 = vector.shape_cast %95 : vector<8xf32> to vector<8x1xf32>
    %97 = vector.broadcast %96 : vector<8x1xf32> to vector<8x16xf32>
    %98 = arith.subf %94, %97 : vector<8x16xf32>
    %99 = math.exp %98 : vector<8x16xf32>
    %cst_38 = arith.constant dense<0.000000e+00> : vector<8xf32>
    %100 = vector.multi_reduction <add>, %99, %cst_38 [1] : vector<8x16xf32> to vector<8xf32>
    %101 = vector.shape_cast %100 : vector<8xf32> to vector<8x1xf32>
    %102 = tpu.reciprocal %101 {approx = true} : vector<8x1xf32> -> vector<8x1xf32>
    %103 = vector.broadcast %102 : vector<8x1xf32> to vector<8x16xf32>
    %104 = arith.mulf %99, %103 : vector<8x16xf32>
    %105 = arith.truncf %104 : vector<8x16xf32> to vector<8x16xbf16>
    %106 = vector.extract_strided_slice %32 {offsets = [0, 24], sizes = [16, 8], strides = [1, 1]} : vector<16x32xbf16> to vector<16x8xbf16>
    %cst_39 = arith.constant dense<0.000000e+00> : vector<8x8xf32>
    %107 = tpu.matmul %105, %106, %cst_39 {dimension_numbers = #tpu.dot_dimension_numbers<[1], [0], [0], [1], [0, 0, 1, 1], [], []>} : vector<8x16xbf16>, vector<16x8xbf16>, vector<8x8xf32> -> vector<8x8xf32>
    %c0_40 = arith.constant 0 : index
    %c24 = arith.constant 24 : index
    %108 = vector.load %arg15[%c0_40, %c24] : memref<16x32xf32, #tpu.memory_space<vmem>>, vector<8x8xf32>
    tpu.vector_store %arg15[%c0_40, %c24], %107 {strides = array<i32>} : memref<16x32xf32, #tpu.memory_space<vmem>>, vector<8x8xf32>,
    %c1 = arith.constant 1 : index
    %c0_41 = arith.constant 0 : index
    %c0_42 = arith.constant 0 : index
    %109 = vector.load %arg5[%c1, %c0_41, %c0_42] : memref<2x1x16xf32, #tpu.memory_space<vmem>>, vector<1x1x16xf32>
    %110 = vector.shape_cast %109 : vector<1x1x16xf32> to vector<1x16xf32>
    %111 = vector.extract_strided_slice %15 {offsets = [8, 0], sizes = [8, 32], strides = [1, 1]} : vector<16x32xbf16> to vector<8x32xbf16>
    %112 = vector.extract_strided_slice %21 {offsets = [16, 0], sizes = [16, 32], strides = [1, 1]} : vector<32x32xbf16> to vector<16x32xbf16>
    %113 = vector.extract_strided_slice %27 {offsets = [16, 0], sizes = [16, 32], strides = [1, 1]} : vector<32x32xbf16> to vector<16x32xbf16>
    %114 = vector.extract_strided_slice %111 {offsets = [0, 0], sizes = [8, 8], strides = [1, 1]} : vector<8x32xbf16> to vector<8x8xbf16>
    %115 = vector.extract_strided_slice %112 {offsets = [0, 0], sizes = [16, 8], strides = [1, 1]} : vector<16x32xbf16> to vector<16x8xbf16>
    %cst_43 = arith.constant dense<0.000000e+00> : vector<8x16xf32>
    %116 = tpu.matmul %114, %115, %cst_43 {dimension_numbers = #tpu.dot_dimension_numbers<[1], [1], [0], [0], [0, 0, 1, 0], [], []>} : vector<8x8xbf16>, vector<16x8xbf16>, vector<8x16xf32> -> vector<8x16xf32>
    %117 = vector.broadcast %110 : vector<1x16xf32> to vector<8x16xf32>
    %118 = arith.addf %116, %117 : vector<8x16xf32>
    %cst_44 = arith.constant dense<0xFF800000> : vector<8xf32>
    %119 = vector.multi_reduction <maximumf>, %118, %cst_44 [1] : vector<8x16xf32> to vector<8xf32>
    %120 = vector.shape_cast %119 : vector<8xf32> to vector<8x1xf32>
    %121 = vector.broadcast %120 : vector<8x1xf32> to vector<8x16xf32>
    %122 = arith.subf %118, %121 : vector<8x16xf32>
    %123 = math.exp %122 : vector<8x16xf32>
    %cst_45 = arith.constant dense<0.000000e+00> : vector<8xf32>
    %124 = vector.multi_reduction <add>, %123, %cst_45 [1] : vector<8x16xf32> to vector<8xf32>
    %125 = vector.shape_cast %124 : vector<8xf32> to vector<8x1xf32>
    %126 = tpu.reciprocal %125 {approx = true} : vector<8x1xf32> -> vector<8x1xf32>
    %127 = vector.broadcast %126 : vector<8x1xf32> to vector<8x16xf32>
    %128 = arith.mulf %123, %127 : vector<8x16xf32>
    %129 = arith.truncf %128 : vector<8x16xf32> to vector<8x16xbf16>
    %130 = vector.extract_strided_slice %113 {offsets = [0, 0], sizes = [16, 8], strides = [1, 1]} : vector<16x32xbf16> to vector<16x8xbf16>
    %cst_46 = arith.constant dense<0.000000e+00> : vector<8x8xf32>
    %131 = tpu.matmul %129, %130, %cst_46 {dimension_numbers = #tpu.dot_dimension_numbers<[1], [0], [0], [1], [0, 0, 1, 1], [], []>} : vector<8x16xbf16>, vector<16x8xbf16>, vector<8x8xf32> -> vector<8x8xf32>
    %c8_47 = arith.constant 8 : index
    %c0_48 = arith.constant 0 : index
    %132 = vector.load %arg15[%c8_47, %c0_48] : memref<16x32xf32, #tpu.memory_space<vmem>>, vector<8x8xf32>
    tpu.vector_store %arg15[%c8_47, %c0_48], %131 {strides = array<i32>} : memref<16x32xf32, #tpu.memory_space<vmem>>, vector<8x8xf32>,
    %133 = vector.extract_strided_slice %111 {offsets = [0, 8], sizes = [8, 8], strides = [1, 1]} : vector<8x32xbf16> to vector<8x8xbf16>
    %134 = vector.extract_strided_slice %112 {offsets = [0, 8], sizes = [16, 8], strides = [1, 1]} : vector<16x32xbf16> to vector<16x8xbf16>
    %cst_49 = arith.constant dense<0.000000e+00> : vector<8x16xf32>
    %135 = tpu.matmul %133, %134, %cst_49 {dimension_numbers = #tpu.dot_dimension_numbers<[1], [1], [0], [0], [0, 0, 1, 0], [], []>} : vector<8x8xbf16>, vector<16x8xbf16>, vector<8x16xf32> -> vector<8x16xf32>
    %136 = vector.broadcast %110 : vector<1x16xf32> to vector<8x16xf32>
    %137 = arith.addf %135, %136 : vector<8x16xf32>
    %cst_50 = arith.constant dense<0xFF800000> : vector<8xf32>
    %138 = vector.multi_reduction <maximumf>, %137, %cst_50 [1] : vector<8x16xf32> to vector<8xf32>
    %139 = vector.shape_cast %138 : vector<8xf32> to vector<8x1xf32>
    %140 = vector.broadcast %139 : vector<8x1xf32> to vector<8x16xf32>
    %141 = arith.subf %137, %140 : vector<8x16xf32>
    %142 = math.exp %141 : vector<8x16xf32>
    %cst_51 = arith.constant dense<0.000000e+00> : vector<8xf32>
    %143 = vector.multi_reduction <add>, %142, %cst_51 [1] : vector<8x16xf32> to vector<8xf32>
    %144 = vector.shape_cast %143 : vector<8xf32> to vector<8x1xf32>
    %145 = tpu.reciprocal %144 {approx = true} : vector<8x1xf32> -> vector<8x1xf32>
    %146 = vector.broadcast %145 : vector<8x1xf32> to vector<8x16xf32>
    %147 = arith.mulf %142, %146 : vector<8x16xf32>
    %148 = arith.truncf %147 : vector<8x16xf32> to vector<8x16xbf16>
    %149 = vector.extract_strided_slice %113 {offsets = [0, 8], sizes = [16, 8], strides = [1, 1]} : vector<16x32xbf16> to vector<16x8xbf16>
    %cst_52 = arith.constant dense<0.000000e+00> : vector<8x8xf32>
    %150 = tpu.matmul %148, %149, %cst_52 {dimension_numbers = #tpu.dot_dimension_numbers<[1], [0], [0], [1], [0, 0, 1, 1], [], []>} : vector<8x16xbf16>, vector<16x8xbf16>, vector<8x8xf32> -> vector<8x8xf32>
    %c8_53 = arith.constant 8 : index
    %c8_54 = arith.constant 8 : index
    %151 = vector.load %arg15[%c8_53, %c8_54] : memref<16x32xf32, #tpu.memory_space<vmem>>, vector<8x8xf32>
    tpu.vector_store %arg15[%c8_53, %c8_54], %150 {strides = array<i32>} : memref<16x32xf32, #tpu.memory_space<vmem>>, vector<8x8xf32>,
    %152 = vector.extract_strided_slice %111 {offsets = [0, 16], sizes = [8, 8], strides = [1, 1]} : vector<8x32xbf16> to vector<8x8xbf16>
    %153 = vector.extract_strided_slice %112 {offsets = [0, 16], sizes = [16, 8], strides = [1, 1]} : vector<16x32xbf16> to vector<16x8xbf16>
    %cst_55 = arith.constant dense<0.000000e+00> : vector<8x16xf32>
    %154 = tpu.matmul %152, %153, %cst_55 {dimension_numbers = #tpu.dot_dimension_numbers<[1], [1], [0], [0], [0, 0, 1, 0], [], []>} : vector<8x8xbf16>, vector<16x8xbf16>, vector<8x16xf32> -> vector<8x16xf32>
    %155 = vector.broadcast %110 : vector<1x16xf32> to vector<8x16xf32>
    %156 = arith.addf %154, %155 : vector<8x16xf32>
    %cst_56 = arith.constant dense<0xFF800000> : vector<8xf32>
    %157 = vector.multi_reduction <maximumf>, %156, %cst_56 [1] : vector<8x16xf32> to vector<8xf32>
    %158 = vector.shape_cast %157 : vector<8xf32> to vector<8x1xf32>
    %159 = vector.broadcast %158 : vector<8x1xf32> to vector<8x16xf32>
    %160 = arith.subf %156, %159 : vector<8x16xf32>
    %161 = math.exp %160 : vector<8x16xf32>
    %cst_57 = arith.constant dense<0.000000e+00> : vector<8xf32>
    %162 = vector.multi_reduction <add>, %161, %cst_57 [1] : vector<8x16xf32> to vector<8xf32>
    %163 = vector.shape_cast %162 : vector<8xf32> to vector<8x1xf32>
    %164 = tpu.reciprocal %163 {approx = true} : vector<8x1xf32> -> vector<8x1xf32>
    %165 = vector.broadcast %164 : vector<8x1xf32> to vector<8x16xf32>
    %166 = arith.mulf %161, %165 : vector<8x16xf32>
    %167 = arith.truncf %166 : vector<8x16xf32> to vector<8x16xbf16>
    %168 = vector.extract_strided_slice %113 {offsets = [0, 16], sizes = [16, 8], strides = [1, 1]} : vector<16x32xbf16> to vector<16x8xbf16>
    %cst_58 = arith.constant dense<0.000000e+00> : vector<8x8xf32>
    %169 = tpu.matmul %167, %168, %cst_58 {dimension_numbers = #tpu.dot_dimension_numbers<[1], [0], [0], [1], [0, 0, 1, 1], [], []>} : vector<8x16xbf16>, vector<16x8xbf16>, vector<8x8xf32> -> vector<8x8xf32>
    %c8_59 = arith.constant 8 : index
    %c16_60 = arith.constant 16 : index
    %170 = vector.load %arg15[%c8_59, %c16_60] : memref<16x32xf32, #tpu.memory_space<vmem>>, vector<8x8xf32>
    tpu.vector_store %arg15[%c8_59, %c16_60], %169 {strides = array<i32>} : memref<16x32xf32, #tpu.memory_space<vmem>>, vector<8x8xf32>,
    %171 = vector.extract_strided_slice %111 {offsets = [0, 24], sizes = [8, 8], strides = [1, 1]} : vector<8x32xbf16> to vector<8x8xbf16>
    %172 = vector.extract_strided_slice %112 {offsets = [0, 24], sizes = [16, 8], strides = [1, 1]} : vector<16x32xbf16> to vector<16x8xbf16>
    %cst_61 = arith.constant dense<0.000000e+00> : vector<8x16xf32>
    %173 = tpu.matmul %171, %172, %cst_61 {dimension_numbers = #tpu.dot_dimension_numbers<[1], [1], [0], [0], [0, 0, 1, 0], [], []>} : vector<8x8xbf16>, vector<16x8xbf16>, vector<8x16xf32> -> vector<8x16xf32>
    %174 = vector.broadcast %110 : vector<1x16xf32> to vector<8x16xf32>
    %175 = arith.addf %173, %174 : vector<8x16xf32>
    %cst_62 = arith.constant dense<0xFF800000> : vector<8xf32>
    %176 = vector.multi_reduction <maximumf>, %175, %cst_62 [1] : vector<8x16xf32> to vector<8xf32>
    %177 = vector.shape_cast %176 : vector<8xf32> to vector<8x1xf32>
    %178 = vector.broadcast %177 : vector<8x1xf32> to vector<8x16xf32>
    %179 = arith.subf %175, %178 : vector<8x16xf32>
    %180 = math.exp %179 : vector<8x16xf32>
    %cst_63 = arith.constant dense<0.000000e+00> : vector<8xf32>
    %181 = vector.multi_reduction <add>, %180, %cst_63 [1] : vector<8x16xf32> to vector<8xf32>
    %182 = vector.shape_cast %181 : vector<8xf32> to vector<8x1xf32>
    %183 = tpu.reciprocal %182 {approx = true} : vector<8x1xf32> -> vector<8x1xf32>
    %184 = vector.broadcast %183 : vector<8x1xf32> to vector<8x16xf32>
    %185 = arith.mulf %180, %184 : vector<8x16xf32>
    %186 = arith.truncf %185 : vector<8x16xf32> to vector<8x16xbf16>
    %187 = vector.extract_strided_slice %113 {offsets = [0, 24], sizes = [16, 8], strides = [1, 1]} : vector<16x32xbf16> to vector<16x8xbf16>
    %cst_64 = arith.constant dense<0.000000e+00> : vector<8x8xf32>
    %188 = tpu.matmul %186, %187, %cst_64 {dimension_numbers = #tpu.dot_dimension_numbers<[1], [0], [0], [1], [0, 0, 1, 1], [], []>} : vector<8x16xbf16>, vector<16x8xbf16>, vector<8x8xf32> -> vector<8x8xf32>
    %c8_65 = arith.constant 8 : index
    %c24_66 = arith.constant 24 : index
    %189 = vector.load %arg15[%c8_65, %c24_66] : memref<16x32xf32, #tpu.memory_space<vmem>>, vector<8x8xf32>
    tpu.vector_store %arg15[%c8_65, %c24_66], %188 {strides = array<i32>} : memref<16x32xf32, #tpu.memory_space<vmem>>, vector<8x8xf32>,
    %c0_67 = arith.constant 0 : index
    %c0_68 = arith.constant 0 : index
    %190 = vector.load %arg15[%c0_67, %c0_68] : memref<16x32xf32, #tpu.memory_space<vmem>>, vector<16x32xf32>
    %191 = arith.truncf %190 : vector<16x32xf32> to vector<16x32xbf16>
    %c0_69 = arith.constant 0 : index
    %c0_70 = arith.constant 0 : index
    %192 = vector.load %arg9[%c0_69, %c0_70] : memref<32x32xbf16, #tpu.memory_space<vmem>>, vector<32x32xbf16>
    %cst_71 = arith.constant dense<0.000000e+00> : vector<16x32xf32>
    %193 = tpu.matmul %191, %192, %cst_71 {dimension_numbers = #tpu.dot_dimension_numbers<[1], [0], [0], [1], [0, 0, 1, 1], [], []>} : vector<16x32xbf16>, vector<32x32xbf16>, vector<16x32xf32> -> vector<16x32xf32>
    %194 = vector.extract_strided_slice %9 {offsets = [3, 0], sizes = [1, 32], strides = [1, 1]} : vector<11x32xf32> to vector<1x32xf32>
    %195 = vector.broadcast %194 : vector<1x32xf32> to vector<16x32xf32>
    %196 = arith.addf %193, %195 : vector<16x32xf32>
    %197 = arith.addf %0, %196 : vector<16x32xf32>
    %198 = vector.extract_strided_slice %9 {offsets = [5, 0], sizes = [1, 32], strides = [1, 1]} : vector<11x32xf32> to vector<1x32xf32>
    %199 = vector.extract_strided_slice %9 {offsets = [6, 0], sizes = [1, 32], strides = [1, 1]} : vector<11x32xf32> to vector<1x32xf32>
    %cst_72 = arith.constant dense<0.000000e+00> : vector<16xf32>
    %200 = vector.multi_reduction <add>, %197, %cst_72 [1] : vector<16x32xf32> to vector<16xf32>
    %201 = vector.shape_cast %200 : vector<16xf32> to vector<16x1xf32>
    %cst_73 = arith.constant 3.200000e+01 : f32
    %202 = vector.broadcast %cst_73 : f32 to vector<16x1xf32>
    %203 = arith.divf %201, %202 : vector<16x1xf32>
    %204 = vector.broadcast %203 : vector<16x1xf32> to vector<16x32xf32>
    %205 = arith.subf %197, %204 : vector<16x32xf32>
    %206 = arith.mulf %205, %205 : vector<16x32xf32>
    %cst_74 = arith.constant dense<0.000000e+00> : vector<16xf32>
    %207 = vector.multi_reduction <add>, %206, %cst_74 [1] : vector<16x32xf32> to vector<16xf32>
    %208 = vector.shape_cast %207 : vector<16xf32> to vector<16x1xf32>
    %cst_75 = arith.constant 3.200000e+01 : f32
    %209 = vector.broadcast %cst_75 : f32 to vector<16x1xf32>
    %210 = arith.divf %208, %209 : vector<16x1xf32>
    %211 = vector.broadcast %203 : vector<16x1xf32> to vector<16x32xf32>
    %212 = arith.subf %197, %211 : vector<16x32xf32>
    %cst_76 = arith.constant 9.99999974E-6 : f32
    %213 = vector.broadcast %cst_76 : f32 to vector<16x1xf32>
    %214 = arith.addf %210, %213 : vector<16x1xf32>
    %215 = math.rsqrt %214 : vector<16x1xf32>
    %216 = vector.broadcast %215 : vector<16x1xf32> to vector<16x32xf32>
    %217 = arith.mulf %212, %216 : vector<16x32xf32>
    %218 = vector.broadcast %198 : vector<1x32xf32> to vector<16x32xf32>
    %219 = arith.mulf %217, %218 : vector<16x32xf32>
    %220 = vector.broadcast %199 : vector<1x32xf32> to vector<16x32xf32>
    %221 = arith.addf %219, %220 : vector<16x32xf32>
    %222 = arith.truncf %221 : vector<16x32xf32> to vector<16x32xbf16>
    %c0_77 = arith.constant 0 : index
    %c0_78 = arith.constant 0 : index
    %223 = vector.load %arg10[%c0_77, %c0_78] : memref<32x64xbf16, #tpu.memory_space<vmem>>, vector<32x64xbf16>
    %cst_79 = arith.constant dense<0.000000e+00> : vector<16x64xf32>
    %224 = tpu.matmul %222, %223, %cst_79 {dimension_numbers = #tpu.dot_dimension_numbers<[1], [0], [0], [1], [0, 0, 1, 1], [], []>} : vector<16x32xbf16>, vector<32x64xbf16>, vector<16x64xf32> -> vector<16x64xf32>
    %c0_80 = arith.constant 0 : index
    %c0_81 = arith.constant 0 : index
    %225 = vector.load %arg13[%c0_80, %c0_81] : memref<1x64xf32, #tpu.memory_space<vmem>>, vector<1x64xf32>
    %226 = vector.broadcast %225 : vector<1x64xf32> to vector<16x64xf32>
    %227 = arith.addf %224, %226 : vector<16x64xf32>
    %cst_82 = arith.constant 0.000000e+00 : f32
    %228 = vector.broadcast %cst_82 : f32 to vector<16x64xf32>
    %229 = arith.maximumf %227, %228 : vector<16x64xf32>
    %230 = arith.truncf %229 : vector<16x64xf32> to vector<16x64xbf16>
    %c0_83 = arith.constant 0 : index
    %c0_84 = arith.constant 0 : index
    %231 = vector.load %arg11[%c0_83, %c0_84] : memref<64x32xbf16, #tpu.memory_space<vmem>>, vector<64x32xbf16>
    %cst_85 = arith.constant dense<0.000000e+00> : vector<16x32xf32>
    %232 = tpu.matmul %230, %231, %cst_85 {dimension_numbers = #tpu.dot_dimension_numbers<[1], [0], [0], [1], [0, 0, 1, 1], [], []>} : vector<16x64xbf16>, vector<64x32xbf16>, vector<16x32xf32> -> vector<16x32xf32>
    %233 = vector.extract_strided_slice %9 {offsets = [4, 0], sizes = [1, 32], strides = [1, 1]} : vector<11x32xf32> to vector<1x32xf32>
    %234 = vector.broadcast %233 : vector<1x32xf32> to vector<16x32xf32>
    %235 = arith.addf %232, %234 : vector<16x32xf32>
    %236 = arith.addf %221, %235 : vector<16x32xf32>
    %237 = vector.extract_strided_slice %9 {offsets = [7, 0], sizes = [1, 32], strides = [1, 1]} : vector<11x32xf32> to vector<1x32xf32>
    %238 = vector.extract_strided_slice %9 {offsets = [8, 0], sizes = [1, 32], strides = [1, 1]} : vector<11x32xf32> to vector<1x32xf32>
    %cst_86 = arith.constant dense<0.000000e+00> : vector<16xf32>
    %239 = vector.multi_reduction <add>, %236, %cst_86 [1] : vector<16x32xf32> to vector<16xf32>
    %240 = vector.shape_cast %239 : vector<16xf32> to vector<16x1xf32>
    %cst_87 = arith.constant 3.200000e+01 : f32
    %241 = vector.broadcast %cst_87 : f32 to vector<16x1xf32>
    %242 = arith.divf %240, %241 : vector<16x1xf32>
    %243 = vector.broadcast %242 : vector<16x1xf32> to vector<16x32xf32>
    %244 = arith.subf %236, %243 : vector<16x32xf32>
    %245 = arith.mulf %244, %244 : vector<16x32xf32>
    %cst_88 = arith.constant dense<0.000000e+00> : vector<16xf32>
    %246 = vector.multi_reduction <add>, %245, %cst_88 [1] : vector<16x32xf32> to vector<16xf32>
    %247 = vector.shape_cast %246 : vector<16xf32> to vector<16x1xf32>
    %cst_89 = arith.constant 3.200000e+01 : f32
    %248 = vector.broadcast %cst_89 : f32 to vector<16x1xf32>
    %249 = arith.divf %247, %248 : vector<16x1xf32>
    %250 = vector.broadcast %242 : vector<16x1xf32> to vector<16x32xf32>
    %251 = arith.subf %236, %250 : vector<16x32xf32>
    %cst_90 = arith.constant 9.99999974E-6 : f32
    %252 = vector.broadcast %cst_90 : f32 to vector<16x1xf32>
    %253 = arith.addf %249, %252 : vector<16x1xf32>
    %254 = math.rsqrt %253 : vector<16x1xf32>
    %255 = vector.broadcast %254 : vector<16x1xf32> to vector<16x32xf32>
    %256 = arith.mulf %251, %255 : vector<16x32xf32>
    %257 = vector.broadcast %237 : vector<1x32xf32> to vector<16x32xf32>
    %258 = arith.mulf %256, %257 : vector<16x32xf32>
    %259 = vector.broadcast %238 : vector<1x32xf32> to vector<16x32xf32>
    %260 = arith.addf %258, %259 : vector<16x32xf32>
    %261 = vector.extract_strided_slice %9 {offsets = [9, 0], sizes = [1, 32], strides = [1, 1]} : vector<11x32xf32> to vector<1x32xf32>
    %262 = vector.extract_strided_slice %9 {offsets = [10, 0], sizes = [1, 32], strides = [1, 1]} : vector<11x32xf32> to vector<1x32xf32>
    %cst_91 = arith.constant dense<0.000000e+00> : vector<16xf32>
    %263 = vector.multi_reduction <add>, %260, %cst_91 [1] : vector<16x32xf32> to vector<16xf32>
    %264 = vector.shape_cast %263 : vector<16xf32> to vector<16x1xf32>
    %cst_92 = arith.constant 3.200000e+01 : f32
    %265 = vector.broadcast %cst_92 : f32 to vector<16x1xf32>
    %266 = arith.divf %264, %265 : vector<16x1xf32>
    %267 = vector.broadcast %266 : vector<16x1xf32> to vector<16x32xf32>
    %268 = arith.subf %260, %267 : vector<16x32xf32>
    %269 = arith.mulf %268, %268 : vector<16x32xf32>
    %cst_93 = arith.constant dense<0.000000e+00> : vector<16xf32>
    %270 = vector.multi_reduction <add>, %269, %cst_93 [1] : vector<16x32xf32> to vector<16xf32>
    %271 = vector.shape_cast %270 : vector<16xf32> to vector<16x1xf32>
    %cst_94 = arith.constant 3.200000e+01 : f32
    %272 = vector.broadcast %cst_94 : f32 to vector<16x1xf32>
    %273 = arith.divf %271, %272 : vector<16x1xf32>
    %274 = vector.broadcast %266 : vector<16x1xf32> to vector<16x32xf32>
    %275 = arith.subf %260, %274 : vector<16x32xf32>
    %cst_95 = arith.constant 9.99999974E-6 : f32
    %276 = vector.broadcast %cst_95 : f32 to vector<16x1xf32>
    %277 = arith.addf %273, %276 : vector<16x1xf32>
    %278 = math.rsqrt %277 : vector<16x1xf32>
    %279 = vector.broadcast %278 : vector<16x1xf32> to vector<16x32xf32>
    %280 = arith.mulf %275, %279 : vector<16x32xf32>
    %281 = vector.broadcast %261 : vector<1x32xf32> to vector<16x32xf32>
    %282 = arith.mulf %280, %281 : vector<16x32xf32>
    %283 = vector.broadcast %262 : vector<1x32xf32> to vector<16x32xf32>
    %284 = arith.addf %282, %283 : vector<16x32xf32>
    %c0_96 = arith.constant 0 : index
    %c0_97 = arith.constant 0 : index
    %285 = vector.load %arg14[%c0_96, %c0_97] : memref<16x32xf32, #tpu.memory_space<vmem>>, vector<16x32xf32>
    tpu.vector_store %arg14[%c0_96, %c0_97], %284 {strides = array<i32>} : memref<16x32xf32, #tpu.memory_space<vmem>>, vector<16x32xf32>,
    return
  }
  func.func @transform_0(%arg0: i32) -> (i32, i32) {
    %c0_i32 = arith.constant 0 : i32
    %c0_i32_0 = arith.constant 0 : i32
    return %arg0, %c0_i32 : i32, i32
  }
  func.func @transform_1(%arg0: i32) -> (i32, i32) {
    %c0_i32 = arith.constant 0 : i32
    %c0_i32_0 = arith.constant 0 : i32
    return %arg0, %c0_i32 : i32, i32
  }
  func.func @transform_2(%arg0: i32) -> (i32, i32) {
    %c0_i32 = arith.constant 0 : i32
    %c0_i32_0 = arith.constant 0 : i32
    return %arg0, %c0_i32 : i32, i32
  }
  func.func @transform_3(%arg0: i32) -> (i32, i32) {
    %c0_i32 = arith.constant 0 : i32
    %c0_i32_0 = arith.constant 0 : i32
    return %arg0, %c0_i32 : i32, i32
  }
  func.func @transform_4(%arg0: i32) -> (i32, i32, i32) {
    %c0_i32 = arith.constant 0 : i32
    %c0_i32_0 = arith.constant 0 : i32
    %c0_i32_1 = arith.constant 0 : i32
    return %arg0, %c0_i32, %c0_i32_0 : i32, i32, i32
  }
  func.func @transform_5(%arg0: i32) -> (i32, i32) {
    %c0_i32 = arith.constant 0 : i32
    %c0_i32_0 = arith.constant 0 : i32
    %c0_i32_1 = arith.constant 0 : i32
    return %c0_i32, %c0_i32_0 : i32, i32
  }
  func.func @transform_6(%arg0: i32) -> (i32, i32) {
    %c0_i32 = arith.constant 0 : i32
    %c0_i32_0 = arith.constant 0 : i32
    %c0_i32_1 = arith.constant 0 : i32
    return %c0_i32, %c0_i32_0 : i32, i32
  }
  func.func @transform_7(%arg0: i32) -> (i32, i32) {
    %c0_i32 = arith.constant 0 : i32
    %c0_i32_0 = arith.constant 0 : i32
    %c0_i32_1 = arith.constant 0 : i32
    return %c0_i32, %c0_i32_0 : i32, i32
  }
  func.func @transform_8(%arg0: i32) -> (i32, i32) {
    %c0_i32 = arith.constant 0 : i32
    %c0_i32_0 = arith.constant 0 : i32
    %c0_i32_1 = arith.constant 0 : i32
    return %c0_i32, %c0_i32_0 : i32, i32
  }
  func.func @transform_9(%arg0: i32) -> (i32, i32) {
    %c0_i32 = arith.constant 0 : i32
    %c0_i32_0 = arith.constant 0 : i32
    %c0_i32_1 = arith.constant 0 : i32
    return %c0_i32, %c0_i32_0 : i32, i32
  }
  func.func @transform_10(%arg0: i32) -> (i32, i32) {
    %c0_i32 = arith.constant 0 : i32
    %c0_i32_0 = arith.constant 0 : i32
    %c0_i32_1 = arith.constant 0 : i32
    return %c0_i32, %c0_i32_0 : i32, i32
  }
  func.func @transform_11(%arg0: i32) -> (i32, i32) {
    %c0_i32 = arith.constant 0 : i32
    %c0_i32_0 = arith.constant 0 : i32
    %c0_i32_1 = arith.constant 0 : i32
    return %c0_i32, %c0_i32_0 : i32, i32
  }
  func.func @transform_12(%arg0: i32) -> (i32, i32) {
    %c0_i32 = arith.constant 0 : i32
    %c0_i32_0 = arith.constant 0 : i32
    %c0_i32_1 = arith.constant 0 : i32
    return %c0_i32, %c0_i32_0 : i32, i32
  }
  func.func @transform_13(%arg0: i32) -> (i32, i32) {
    %c0_i32 = arith.constant 0 : i32
    %c0_i32_0 = arith.constant 0 : i32
    return %arg0, %c0_i32 : i32, i32
  }
}

module attributes {stable_mosaic.version = 11 : i64} {
  func.func @_fused_decoder_layer_kernel(%arg0: i32, %arg1: memref<16x32xf32, #tpu.memory_space<vmem>>, %arg2: memref<16x32xf32, #tpu.memory_space<vmem>>, %arg3: memref<32x32xf32, #tpu.memory_space<vmem>>, %arg4: memref<32x32xf32, #tpu.memory_space<vmem>>, %arg5: memref<2x1x16xf32, #tpu.memory_space<vmem>>, %arg6: memref<32x32xbf16, #tpu.memory_space<vmem>>, %arg7: memref<32x32xbf16, #tpu.memory_space<vmem>>, %arg8: memref<32x32xbf16, #tpu.memory_space<vmem>>, %arg9: memref<32x32xbf16, #tpu.memory_space<vmem>>, %arg10: memref<32x64xbf16, #tpu.memory_space<vmem>>, %arg11: memref<64x32xbf16, #tpu.memory_space<vmem>>, %arg12: memref<11x32xf32, #tpu.memory_space<vmem>>, %arg13: memref<1x64xf32, #tpu.memory_space<vmem>>, %arg14: memref<16x32xf32, #tpu.memory_space<vmem>>, %arg15: memref<16x32xf32, #tpu.memory_space<vmem>>) attributes {dimension_semantics = [#tpu.dimension_semantics<parallel>], iteration_bounds = array<i64: 1>, scalar_prefetch = 0 : i64, scratch_operands = 1 : i64, tpu.core_type = #tpu.core_type<tc>, window_params = [{transform_indices = @transform_0, window_bounds = array<i64: 16, 32>}, {transform_indices = @transform_1, window_bounds = array<i64: 16, 32>}, {transform_indices = @transform_2, window_bounds = array<i64: 32, 32>}, {transform_indices = @transform_3, window_bounds = array<i64: 32, 32>}, {transform_indices = @transform_4, window_bounds = array<i64: 2, 1, 16>}, {pipeline_mode = #tpu.pipeline_mode<synchronous>, transform_indices = @transform_5, window_bounds = array<i64: 32, 32>}, {pipeline_mode = #tpu.pipeline_mode<synchronous>, transform_indices = @transform_6, window_bounds = array<i64: 32, 32>}, {pipeline_mode = #tpu.pipeline_mode<synchronous>, transform_indices = @transform_7, window_bounds = array<i64: 32, 32>}, {pipeline_mode = #tpu.pipeline_mode<synchronous>, transform_indices = @transform_8, window_bounds = array<i64: 32, 32>}, {pipeline_mode = #tpu.pipeline_mode<synchronous>, transform_indices = @transform_9, window_bounds = array<i64: 32, 64>}, {pipeline_mode = #tpu.pipeline_mode<synchronous>, transform_indices = @transform_10, window_bounds = array<i64: 64, 32>}, {pipeline_mode = #tpu.pipeline_mode<synchronous>, transform_indices = @transform_11, window_bounds = array<i64: 11, 32>}, {pipeline_mode = #tpu.pipeline_mode<synchronous>, transform_indices = @transform_12, window_bounds = array<i64: 1, 64>}, {transform_indices = @transform_13, window_bounds = array<i64: 16, 32>}]} {
    %c0 = arith.constant 0 : index
    %c0_0 = arith.constant 0 : index
    %0 = vector.load %arg1[%c0, %c0_0] : memref<16x32xf32, #tpu.memory_space<vmem>>, vector<16x32xf32>
    %c0_1 = arith.constant 0 : index
    %c0_2 = arith.constant 0 : index
    %1 = vector.load %arg2[%c0_1, %c0_2] : memref<16x32xf32, #tpu.memory_space<vmem>>, vector<16x32xf32>
    %2 = arith.addf %0, %1 : vector<16x32xf32>
    %3 = arith.truncf %2 : vector<16x32xf32> to vector<16x32xbf16>
    %c0_3 = arith.constant 0 : index
    %c0_4 = arith.constant 0 : index
    %4 = vector.load %arg3[%c0_3, %c0_4] : memref<32x32xf32, #tpu.memory_space<vmem>>, vector<32x32xf32>
    %c0_5 = arith.constant 0 : index
    %c0_6 = arith.constant 0 : index
    %5 = vector.load %arg4[%c0_5, %c0_6] : memref<32x32xf32, #tpu.memory_space<vmem>>, vector<32x32xf32>
    %6 = arith.addf %4, %5 : vector<32x32xf32>
    %7 = arith.truncf %6 : vector<32x32xf32> to vector<32x32xbf16>
    %8 = arith.truncf %4 : vector<32x32xf32> to vector<32x32xbf16>
    %c0_7 = arith.constant 0 : index
    %c0_8 = arith.constant 0 : index
    %9 = vector.load %arg12[%c0_7, %c0_8] : memref<11x32xf32, #tpu.memory_space<vmem>>, vector<11x32xf32>
    %c0_9 = arith.constant 0 : index
    %c0_10 = arith.constant 0 : index
    %10 = vector.load %arg6[%c0_9, %c0_10] : memref<32x32xbf16, #tpu.memory_space<vmem>>, vector<32x32xbf16>
    %cst = arith.constant dense<0.000000e+00> : vector<16x32xf32>
    %11 = tpu.matmul %3, %10, %cst {dimension_numbers = #tpu.dot_dimension_numbers<[1], [0], [0], [1], [0, 0, 1, 1], [], []>} : vector<16x32xbf16>, vector<32x32xbf16>, vector<16x32xf32> -> vector<16x32xf32>
    %12 = vector.extract_strided_slice %9 {offsets = [0, 0], sizes = [1, 32], strides = [1, 1]} : vector<11x32xf32> to vector<1x32xf32>
    %13 = vector.broadcast %12 : vector<1x32xf32> to vector<16x32xf32>
    %14 = arith.addf %11, %13 : vector<16x32xf32>
    %15 = arith.truncf %14 : vector<16x32xf32> to vector<16x32xbf16>
    %c0_11 = arith.constant 0 : index
    %c0_12 = arith.constant 0 : index
    %16 = vector.load %arg7[%c0_11, %c0_12] : memref<32x32xbf16, #tpu.memory_space<vmem>>, vector<32x32xbf16>
    %cst_13 = arith.constant dense<0.000000e+00> : vector<32x32xf32>
    %17 = tpu.matmul %7, %16, %cst_13 {dimension_numbers = #tpu.dot_dimension_numbers<[1], [0], [0], [1], [0, 0, 1, 1], [], []>} : vector<32x32xbf16>, vector<32x32xbf16>, vector<32x32xf32> -> vector<32x32xf32>
    %18 = vector.extract_strided_slice %9 {offsets = [1, 0], sizes = [1, 32], strides = [1, 1]} : vector<11x32xf32> to vector<1x32xf32>
    %19 = vector.broadcast %18 : vector<1x32xf32> to vector<32x32xf32>
    %20 = arith.addf %17, %19 : vector<32x32xf32>
    %21 = arith.truncf %20 : vector<32x32xf32> to vector<32x32xbf16>
    %c0_14 = arith.constant 0 : index
    %c0_15 = arith.constant 0 : index
    %22 = vector.load %arg8[%c0_14, %c0_15] : memref<32x32xbf16, #tpu.memory_space<vmem>>, vector<32x32xbf16>
    %cst_16 = arith.constant dense<0.000000e+00> : vector<32x32xf32>
    %23 = tpu.matmul %8, %22, %cst_16 {dimension_numbers = #tpu.dot_dimension_numbers<[1], [0], [0], [1], [0, 0, 1, 1], [], []>} : vector<32x32xbf16>, vector<32x32xbf16>, vector<32x32xf32> -> vector<32x32xf32>
    %24 = vector.extract_strided_slice %9 {offsets = [2, 0], sizes = [1, 32], strides = [1, 1]} : vector<11x32xf32> to vector<1x32xf32>
    %25 = vector.broadcast %24 : vector<1x32xf32> to vector<32x32xf32>
    %26 = arith.addf %23, %25 : vector<32x32xf32>
    %27 = arith.truncf %26 : vector<32x32xf32> to vector<32x32xbf16>
    %c0_17 = arith.constant 0 : index
    %c0_18 = arith.constant 0 : index
    %c0_19 = arith.constant 0 : index
    %28 = vector.load %arg5[%c0_17, %c0_18, %c0_19] : memref<2x1x16xf32, #tpu.memory_space<vmem>>, vector<1x1x16xf32>
    %29 = vector.shape_cast %28 : vector<1x1x16xf32> to vector<1x16xf32>
    %30 = vector.extract_strided_slice %15 {offsets = [0, 0], sizes = [8, 32], strides = [1, 1]} : vector<16x32xbf16> to vector<8x32xbf16>
    %31 = vector.extract_strided_slice %21 {offsets = [0, 0], sizes = [16, 32], strides = [1, 1]} : vector<32x32xbf16> to vector<16x32xbf16>
    %32 = vector.extract_strided_slice %27 {offsets = [0, 0], sizes = [16, 32], strides = [1, 1]} : vector<32x32xbf16> to vector<16x32xbf16>
    %33 = vector.extract_strided_slice %30 {offsets = [0, 0], sizes = [8, 8], strides = [1, 1]} : vector<8x32xbf16> to vector<8x8xbf16>
    %34 = vector.extract_strided_slice %31 {offsets = [0, 0], sizes = [16, 8], strides = [1, 1]} : vector<16x32xbf16> to vector<16x8xbf16>
    %cst_20 = arith.constant dense<0.000000e+00> : vector<8x16xf32>
    %35 = tpu.matmul %33, %34, %cst_20 {dimension_numbers = #tpu.dot_dimension_numbers<[1], [1], [0], [0], [0, 0, 1, 0], [], []>} : vector<8x8xbf16>, vector<16x8xbf16>, vector<8x16xf32> -> vector<8x16xf32>
    %36 = vector.broadcast %29 : vector<1x16xf32> to vector<8x16xf32>
    %37 = arith.addf %35, %36 : vector<8x16xf32>
    %cst_21 = arith.constant dense<0xFF800000> : vector<8xf32>
    %38 = vector.multi_reduction <maximumf>, %37, %cst_21 [1] : vector<8x16xf32> to vector<8xf32>
    %39 = vector.shape_cast %38 : vector<8xf32> to vector<8x1xf32>
    %40 = vector.broadcast %39 : vector<8x1xf32> to vector<8x16xf32>
    %41 = arith.subf %37, %40 : vector<8x16xf32>
    %42 = math.exp %41 : vector<8x16xf32>
    %cst_22 = arith.constant dense<0.000000e+00> : vector<8xf32>
    %43 = vector.multi_reduction <add>, %42, %cst_22 [1] : vector<8x16xf32> to vector<8xf32>
    %44 = vector.shape_cast %43 : vector<8xf32> to vector<8x1xf32>
    %45 = tpu.reciprocal %44 {approx = true} : vector<8x1xf32> -> vector<8x1xf32>
    %46 = vector.broadcast %45 : vector<8x1xf32> to vector<8x16xf32>
    %47 = arith.mulf %42, %46 : vector<8x16xf32>
    %48 = arith.truncf %47 : vector<8x16xf32> to vector<8x16xbf16>
    %49 = vector.extract_strided_slice %32 {offsets = [0, 0], sizes = [16, 8], strides = [1, 1]} : vector<16x32xbf16> to vector<16x8xbf16>
    %cst_23 = arith.constant dense<0.000000e+00> : vector<8x8xf32>
    %50 = tpu.matmul %48, %49, %cst_23 {dimension_numbers = #tpu.dot_dimension_numbers<[1], [0], [0], [1], [0, 0, 1, 1], [], []>} : vector<8x16xbf16>, vector<16x8xbf16>, vector<8x8xf32> -> vector<8x8xf32>
    %c0_24 = arith.constant 0 : index
    %c0_25 = arith.constant 0 : index
    %51 = vector.load %arg15[%c0_24, %c0_25] : memref<16x32xf32, #tpu.memory_space<vmem>>, vector<8x8xf32>
    tpu.vector_store %arg15[%c0_24, %c0_25], %50 {strides = array<i32>} : memref<16x32xf32, #tpu.memory_space<vmem>>, vector<8x8xf32>,
    %52 = vector.extract_strided_slice %30 {offsets = [0, 8], sizes = [8, 8], strides = [1, 1]} : vector<8x32xbf16> to vector<8x8xbf16>
    %53 = vector.extract_strided_slice %31 {offsets = [0, 8], sizes = [16, 8], strides = [1, 1]} : vector<16x32xbf16> to vector<16x8xbf16>
    %cst_26 = arith.constant dense<0.000000e+00> : vector<8x16xf32>
    %54 = tpu.matmul %52, %53, %cst_26 {dimension_numbers = #tpu.dot_dimension_numbers<[1], [1], [0], [0], [0, 0, 1, 0], [], []>} : vector<8x8xbf16>, vector<16x8xbf16>, vector<8x16xf32> -> vector<8x16xf32>
    %55 = vector.broadcast %29 : vector<1x16xf32> to vector<8x16xf32>
    %56 = arith.addf %54, %55 : vector<8x16xf32>
    %cst_27 = arith.constant dense<0xFF800000> : vector<8xf32>
    %57 = vector.multi_reduction <maximumf>, %56, %cst_27 [1] : vector<8x16xf32> to vector<8xf32>
    %58 = vector.shape_cast %57 : vector<8xf32> to vector<8x1xf32>
    %59 = vector.broadcast %58 : vector<8x1xf32> to vector<8x16xf32>
    %60 = arith.subf %56, %59 : vector<8x16xf32>
    %61 = math.exp %60 : vector<8x16xf32>
    %cst_28 = arith.constant dense<0.000000e+00> : vector<8xf32>
    %62 = vector.multi_reduction <add>, %61, %cst_28 [1] : vector<8x16xf32> to vector<8xf32>
    %63 = vector.shape_cast %62 : vector<8xf32> to vector<8x1xf32>
    %64 = tpu.reciprocal %63 {approx = true} : vector<8x1xf32> -> vector<8x1xf32>
    %65 = vector.broadcast %64 : vector<8x1xf32> to vector<8x16xf32>
    %66 = arith.mulf %61, %65 : vector<8x16xf32>
    %67 = arith.truncf %66 : vector<8x16xf32> to vector<8x16xbf16>
    %68 = vector.extract_strided_slice %32 {offsets = [0, 8], sizes = [16, 8], strides = [1, 1]} : vector<16x32xbf16> to vector<16x8xbf16>
    %cst_29 = arith.constant dense<0.000000e+00> : vector<8x8xf32>
    %69 = tpu.matmul %67, %68, %cst_29 {dimension_numbers = #tpu.dot_dimension_numbers<[1], [0], [0], [1], [0, 0, 1, 1], [], []>} : vector<8x16xbf16>, vector<16x8xbf16>, vector<8x8xf32> -> vector<8x8xf32>
    %c0_30 = arith.constant 0 : index
    %c8 = arith.constant 8 : index
    %70 = vector.load %arg15[%c0_30, %c8] : memref<16x32xf32, #tpu.memory_space<vmem>>, vector<8x8xf32>
    tpu.vector_store %arg15[%c0_30, %c8], %69 {strides = array<i32>} : memref<16x32xf32, #tpu.memory_space<vmem>>, vector<8x8xf32>,
    %71 = vector.extract_strided_slice %30 {offsets = [0, 16], sizes = [8, 8], strides = [1, 1]} : vector<8x32xbf16> to vector<8x8xbf16>
    %72 = vector.extract_strided_slice %31 {offsets = [0, 16], sizes = [16, 8], strides = [1, 1]} : vector<16x32xbf16> to vector<16x8xbf16>
    %cst_31 = arith.constant dense<0.000000e+00> : vector<8x16xf32>
    %73 = tpu.matmul %71, %72, %cst_31 {dimension_numbers = #tpu.dot_dimension_numbers<[1], [1], [0], [0], [0, 0, 1, 0], [], []>} : vector<8x8xbf16>, vector<16x8xbf16>, vector<8x16xf32> -> vector<8x16xf32>
    %74 = vector.broadcast %29 : vector<1x16xf32> to vector<8x16xf32>
    %75 = arith.addf %73, %74 : vector<8x16xf32>
    %cst_32 = arith.constant dense<0xFF800000> : vector<8xf32>
    %76 = vector.multi_reduction <maximumf>, %75, %cst_32 [1] : vector<8x16xf32> to vector<8xf32>
    %77 = vector.shape_cast %76 : vector<8xf32> to vector<8x1xf32>
    %78 = vector.broadcast %77 : vector<8x1xf32> to vector<8x16xf32>
    %79 = arith.subf %75, %78 : vector<8x16xf32>
    %80 = math.exp %79 : vector<8x16xf32>
    %cst_33 = arith.constant dense<0.000000e+00> : vector<8xf32>
    %81 = vector.multi_reduction <add>, %80, %cst_33 [1] : vector<8x16xf32> to vector<8xf32>
    %82 = vector.shape_cast %81 : vector<8xf32> to vector<8x1xf32>
    %83 = tpu.reciprocal %82 {approx = true} : vector<8x1xf32> -> vector<8x1xf32>
    %84 = vector.broadcast %83 : vector<8x1xf32> to vector<8x16xf32>
    %85 = arith.mulf %80, %84 : vector<8x16xf32>
    %86 = arith.truncf %85 : vector<8x16xf32> to vector<8x16xbf16>
    %87 = vector.extract_strided_slice %32 {offsets = [0, 16], sizes = [16, 8], strides = [1, 1]} : vector<16x32xbf16> to vector<16x8xbf16>
    %cst_34 = arith.constant dense<0.000000e+00> : vector<8x8xf32>
    %88 = tpu.matmul %86, %87, %cst_34 {dimension_numbers = #tpu.dot_dimension_numbers<[1], [0], [0], [1], [0, 0, 1, 1], [], []>} : vector<8x16xbf16>, vector<16x8xbf16>, vector<8x8xf32> -> vector<8x8xf32>
    %c0_35 = arith.constant 0 : index
    %c16 = arith.constant 16 : index
    %89 = vector.load %arg15[%c0_35, %c16] : memref<16x32xf32, #tpu.memory_space<vmem>>, vector<8x8xf32>
    tpu.vector_store %arg15[%c0_35, %c16], %88 {strides = array<i32>} : memref<16x32xf32, #tpu.memory_space<vmem>>, vector<8x8xf32>,
    %90 = vector.extract_strided_slice %30 {offsets = [0, 24], sizes = [8, 8], strides = [1, 1]} : vector<8x32xbf16> to vector<8x8xbf16>
    %91 = vector.extract_strided_slice %31 {offsets = [0, 24], sizes = [16, 8], strides = [1, 1]} : vector<16x32xbf16> to vector<16x8xbf16>
    %cst_36 = arith.constant dense<0.000000e+00> : vector<8x16xf32>
    %92 = tpu.matmul %90, %91, %cst_36 {dimension_numbers = #tpu.dot_dimension_numbers<[1], [1], [0], [0], [0, 0, 1, 0], [], []>} : vector<8x8xbf16>, vector<16x8xbf16>, vector<8x16xf32> -> vector<8x16xf32>
    %93 = vector.broadcast %29 : vector<1x16xf32> to vector<8x16xf32>
    %94 = arith.addf %92, %93 : vector<8x16xf32>
    %cst_37 = arith.constant dense<0xFF800000> : vector<8xf32>
    %95 = vector.multi_reduction <maximumf>, %94, %cst_37 [1] : vector<8x16xf32> to vector<8xf32>
    %96 = vector.shape_cast %95 : vector<8xf32> to vector<8x1xf32>
    %97 = vector.broadcast %96 : vector<8x1xf32> to vector<8x16xf32>
    %98 = arith.subf %94, %97 : vector<8x16xf32>
    %99 = math.exp %98 : vector<8x16xf32>
    %cst_38 = arith.constant dense<0.000000e+00> : vector<8xf32>
    %100 = vector.multi_reduction <add>, %99, %cst_38 [1] : vector<8x16xf32> to vector<8xf32>
    %101 = vector.shape_cast %100 : vector<8xf32> to vector<8x1xf32>
    %102 = tpu.reciprocal %101 {approx = true} : vector<8x1xf32> -> vector<8x1xf32>
    %103 = vector.broadcast %102 : vector<8x1xf32> to vector<8x16xf32>
    %104 = arith.mulf %99, %103 : vector<8x16xf32>
    %105 = arith.truncf %104 : vector<8x16xf32> to vector<8x16xbf16>
    %106 = vector.extract_strided_slice %32 {offsets = [0, 24], sizes = [16, 8], strides = [1, 1]} : vector<16x32xbf16> to vector<16x8xbf16>
    %cst_39 = arith.constant dense<0.000000e+00> : vector<8x8xf32>
    %107 = tpu.matmul %105, %106, %cst_39 {dimension_numbers = #tpu.dot_dimension_numbers<[1], [0], [0], [1], [0, 0, 1, 1], [], []>} : vector<8x16xbf16>, vector<16x8xbf16>, vector<8x8xf32> -> vector<8x8xf32>
    %c0_40 = arith.constant 0 : index
    %c24 = arith.constant 24 : index
    %108 = vector.load %arg15[%c0_40, %c24] : memref<16x32xf32, #tpu.memory_space<vmem>>, vector<8x8xf32>
    tpu.vector_store %arg15[%c0_40, %c24], %107 {strides = array<i32>} : memref<16x32xf32, #tpu.memory_space<vmem>>, vector<8x8xf32>,
    %c1 = arith.constant 1 : index
    %c0_41 = arith.constant 0 : index
    %c0_42 = arith.constant 0 : index
    %109 = vector.load %arg5[%c1, %c0_41, %c0_42] : memref<2x1x16xf32, #tpu.memory_space<vmem>>, vector<1x1x16xf32>
    %110 = vector.shape_cast %109 : vector<1x1x16xf32> to vector<1x16xf32>
    %111 = vector.extract_strided_slice %15 {offsets = [8, 0], sizes = [8, 32], strides = [1, 1]} : vector<16x32xbf16> to vector<8x32xbf16>
    %112 = vector.extract_strided_slice %21 {offsets = [16, 0], sizes = [16, 32], strides = [1, 1]} : vector<32x32xbf16> to vector<16x32xbf16>
    %113 = vector.extract_strided_slice %27 {offsets = [16, 0], sizes = [16, 32], strides = [1, 1]} : vector<32x32xbf16> to vector<16x32xbf16>
    %114 = vector.extract_strided_slice %111 {offsets = [0, 0], sizes = [8, 8], strides = [1, 1]} : vector<8x32xbf16> to vector<8x8xbf16>
    %115 = vector.extract_strided_slice %112 {offsets = [0, 0], sizes = [16, 8], strides = [1, 1]} : vector<16x32xbf16> to vector<16x8xbf16>
    %cst_43 = arith.constant dense<0.000000e+00> : vector<8x16xf32>
    %116 = tpu.matmul %114, %115, %cst_43 {dimension_numbers = #tpu.dot_dimension_numbers<[1], [1], [0], [0], [0, 0, 1, 0], [], []>} : vector<8x8xbf16>, vector<16x8xbf16>, vector<8x16xf32> -> vector<8x16xf32>
    %117 = vector.broadcast %110 : vector<1x16xf32> to vector<8x16xf32>
    %118 = arith.addf %116, %117 : vector<8x16xf32>
    %cst_44 = arith.constant dense<0xFF800000> : vector<8xf32>
    %119 = vector.multi_reduction <maximumf>, %118, %cst_44 [1] : vector<8x16xf32> to vector<8xf32>
    %120 = vector.shape_cast %119 : vector<8xf32> to vector<8x1xf32>
    %121 = vector.broadcast %120 : vector<8x1xf32> to vector<8x16xf32>
    %122 = arith.subf %118, %121 : vector<8x16xf32>
    %123 = math.exp %122 : vector<8x16xf32>
    %cst_45 = arith.constant dense<0.000000e+00> : vector<8xf32>
    %124 = vector.multi_reduction <add>, %123, %cst_45 [1] : vector<8x16xf32> to vector<8xf32>
    %125 = vector.shape_cast %124 : vector<8xf32> to vector<8x1xf32>
    %126 = tpu.reciprocal %125 {approx = true} : vector<8x1xf32> -> vector<8x1xf32>
    %127 = vector.broadcast %126 : vector<8x1xf32> to vector<8x16xf32>
    %128 = arith.mulf %123, %127 : vector<8x16xf32>
    %129 = arith.truncf %128 : vector<8x16xf32> to vector<8x16xbf16>
    %130 = vector.extract_strided_slice %113 {offsets = [0, 0], sizes = [16, 8], strides = [1, 1]} : vector<16x32xbf16> to vector<16x8xbf16>
    %cst_46 = arith.constant dense<0.000000e+00> : vector<8x8xf32>
    %131 = tpu.matmul %129, %130, %cst_46 {dimension_numbers = #tpu.dot_dimension_numbers<[1], [0], [0], [1], [0, 0, 1, 1], [], []>} : vector<8x16xbf16>, vector<16x8xbf16>, vector<8x8xf32> -> vector<8x8xf32>
    %c8_47 = arith.constant 8 : index
    %c0_48 = arith.constant 0 : index
    %132 = vector.load %arg15[%c8_47, %c0_48] : memref<16x32xf32, #tpu.memory_space<vmem>>, vector<8x8xf32>
    tpu.vector_store %arg15[%c8_47, %c0_48], %131 {strides = array<i32>} : memref<16x32xf32, #tpu.memory_space<vmem>>, vector<8x8xf32>,
    %133 = vector.extract_strided_slice %111 {offsets = [0, 8], sizes = [8, 8], strides = [1, 1]} : vector<8x32xbf16> to vector<8x8xbf16>
    %134 = vector.extract_strided_slice %112 {offsets = [0, 8], sizes = [16, 8], strides = [1, 1]} : vector<16x32xbf16> to vector<16x8xbf16>
    %cst_49 = arith.constant dense<0.000000e+00> : vector<8x16xf32>
    %135 = tpu.matmul %133, %134, %cst_49 {dimension_numbers = #tpu.dot_dimension_numbers<[1], [1], [0], [0], [0, 0, 1, 0], [], []>} : vector<8x8xbf16>, vector<16x8xbf16>, vector<8x16xf32> -> vector<8x16xf32>
    %136 = vector.broadcast %110 : vector<1x16xf32> to vector<8x16xf32>
    %137 = arith.addf %135, %136 : vector<8x16xf32>
    %cst_50 = arith.constant dense<0xFF800000> : vector<8xf32>
    %138 = vector.multi_reduction <maximumf>, %137, %cst_50 [1] : vector<8x16xf32> to vector<8xf32>
    %139 = vector.shape_cast %138 : vector<8xf32> to vector<8x1xf32>
    %140 = vector.broadcast %139 : vector<8x1xf32> to vector<8x16xf32>
    %141 = arith.subf %137, %140 : vector<8x16xf32>
    %142 = math.exp %141 : vector<8x16xf32>
    %cst_51 = arith.constant dense<0.000000e+00> : vector<8xf32>
    %143 = vector.multi_reduction <add>, %142, %cst_51 [1] : vector<8x16xf32> to vector<8xf32>
    %144 = vector.shape_cast %143 : vector<8xf32> to vector<8x1xf32>
    %145 = tpu.reciprocal %144 {approx = true} : vector<8x1xf32> -> vector<8x1xf32>
    %146 = vector.broadcast %145 : vector<8x1xf32> to vector<8x16xf32>
    %147 = arith.mulf %142, %146 : vector<8x16xf32>
    %148 = arith.truncf %147 : vector<8x16xf32> to vector<8x16xbf16>
    %149 = vector.extract_strided_slice %113 {offsets = [0, 8], sizes = [16, 8], strides = [1, 1]} : vector<16x32xbf16> to vector<16x8xbf16>
    %cst_52 = arith.constant dense<0.000000e+00> : vector<8x8xf32>
    %150 = tpu.matmul %148, %149, %cst_52 {dimension_numbers = #tpu.dot_dimension_numbers<[1], [0], [0], [1], [0, 0, 1, 1], [], []>} : vector<8x16xbf16>, vector<16x8xbf16>, vector<8x8xf32> -> vector<8x8xf32>
    %c8_53 = arith.constant 8 : index
    %c8_54 = arith.constant 8 : index
    %151 = vector.load %arg15[%c8_53, %c8_54] : memref<16x32xf32, #tpu.memory_space<vmem>>, vector<8x8xf32>
    tpu.vector_store %arg15[%c8_53, %c8_54], %150 {strides = array<i32>} : memref<16x32xf32, #tpu.memory_space<vmem>>, vector<8x8xf32>,
    %152 = vector.extract_strided_slice %111 {offsets = [0, 16], sizes = [8, 8], strides = [1, 1]} : vector<8x32xbf16> to vector<8x8xbf16>
    %153 = vector.extract_strided_slice %112 {offsets = [0, 16], sizes = [16, 8], strides = [1, 1]} : vector<16x32xbf16> to vector<16x8xbf16>
    %cst_55 = arith.constant dense<0.000000e+00> : vector<8x16xf32>
    %154 = tpu.matmul %152, %153, %cst_55 {dimension_numbers = #tpu.dot_dimension_numbers<[1], [1], [0], [0], [0, 0, 1, 0], [], []>} : vector<8x8xbf16>, vector<16x8xbf16>, vector<8x16xf32> -> vector<8x16xf32>
    %155 = vector.broadcast %110 : vector<1x16xf32> to vector<8x16xf32>
    %156 = arith.addf %154, %155 : vector<8x16xf32>
    %cst_56 = arith.constant dense<0xFF800000> : vector<8xf32>
    %157 = vector.multi_reduction <maximumf>, %156, %cst_56 [1] : vector<8x16xf32> to vector<8xf32>
    %158 = vector.shape_cast %157 : vector<8xf32> to vector<8x1xf32>
    %159 = vector.broadcast %158 : vector<8x1xf32> to vector<8x16xf32>
    %160 = arith.subf %156, %159 : vector<8x16xf32>
    %161 = math.exp %160 : vector<8x16xf32>
    %cst_57 = arith.constant dense<0.000000e+00> : vector<8xf32>
    %162 = vector.multi_reduction <add>, %161, %cst_57 [1] : vector<8x16xf32> to vector<8xf32>
    %163 = vector.shape_cast %162 : vector<8xf32> to vector<8x1xf32>
    %164 = tpu.reciprocal %163 {approx = true} : vector<8x1xf32> -> vector<8x1xf32>
    %165 = vector.broadcast %164 : vector<8x1xf32> to vector<8x16xf32>
    %166 = arith.mulf %161, %165 : vector<8x16xf32>
    %167 = arith.truncf %166 : vector<8x16xf32> to vector<8x16xbf16>
    %168 = vector.extract_strided_slice %113 {offsets = [0, 16], sizes = [16, 8], strides = [1, 1]} : vector<16x32xbf16> to vector<16x8xbf16>
    %cst_58 = arith.constant dense<0.000000e+00> : vector<8x8xf32>
    %169 = tpu.matmul %167, %168, %cst_58 {dimension_numbers = #tpu.dot_dimension_numbers<[1], [0], [0], [1], [0, 0, 1, 1], [], []>} : vector<8x16xbf16>, vector<16x8xbf16>, vector<8x8xf32> -> vector<8x8xf32>
    %c8_59 = arith.constant 8 : index
    %c16_60 = arith.constant 16 : index
    %170 = vector.load %arg15[%c8_59, %c16_60] : memref<16x32xf32, #tpu.memory_space<vmem>>, vector<8x8xf32>
    tpu.vector_store %arg15[%c8_59, %c16_60], %169 {strides = array<i32>} : memref<16x32xf32, #tpu.memory_space<vmem>>, vector<8x8xf32>,
    %171 = vector.extract_strided_slice %111 {offsets = [0, 24], sizes = [8, 8], strides = [1, 1]} : vector<8x32xbf16> to vector<8x8xbf16>
    %172 = vector.extract_strided_slice %112 {offsets = [0, 24], sizes = [16, 8], strides = [1, 1]} : vector<16x32xbf16> to vector<16x8xbf16>
    %cst_61 = arith.constant dense<0.000000e+00> : vector<8x16xf32>
    %173 = tpu.matmul %171, %172, %cst_61 {dimension_numbers = #tpu.dot_dimension_numbers<[1], [1], [0], [0], [0, 0, 1, 0], [], []>} : vector<8x8xbf16>, vector<16x8xbf16>, vector<8x16xf32> -> vector<8x16xf32>
    %174 = vector.broadcast %110 : vector<1x16xf32> to vector<8x16xf32>
    %175 = arith.addf %173, %174 : vector<8x16xf32>
    %cst_62 = arith.constant dense<0xFF800000> : vector<8xf32>
    %176 = vector.multi_reduction <maximumf>, %175, %cst_62 [1] : vector<8x16xf32> to vector<8xf32>
    %177 = vector.shape_cast %176 : vector<8xf32> to vector<8x1xf32>
    %178 = vector.broadcast %177 : vector<8x1xf32> to vector<8x16xf32>
    %179 = arith.subf %175, %178 : vector<8x16xf32>
    %180 = math.exp %179 : vector<8x16xf32>
    %cst_63 = arith.constant dense<0.000000e+00> : vector<8xf32>
    %181 = vector.multi_reduction <add>, %180, %cst_63 [1] : vector<8x16xf32> to vector<8xf32>
    %182 = vector.shape_cast %181 : vector<8xf32> to vector<8x1xf32>
    %183 = tpu.reciprocal %182 {approx = true} : vector<8x1xf32> -> vector<8x1xf32>
    %184 = vector.broadcast %183 : vector<8x1xf32> to vector<8x16xf32>
    %185 = arith.mulf %180, %184 : vector<8x16xf32>
    %186 = arith.truncf %185 : vector<8x16xf32> to vector<8x16xbf16>
    %187 = vector.extract_strided_slice %113 {offsets = [0, 24], sizes = [16, 8], strides = [1, 1]} : vector<16x32xbf16> to vector<16x8xbf16>
    %cst_64 = arith.constant dense<0.000000e+00> : vector<8x8xf32>
    %188 = tpu.matmul %186, %187, %cst_64 {dimension_numbers = #tpu.dot_dimension_numbers<[1], [0], [0], [1], [0, 0, 1, 1], [], []>} : vector<8x16xbf16>, vector<16x8xbf16>, vector<8x8xf32> -> vector<8x8xf32>
    %c8_65 = arith.constant 8 : index
    %c24_66 = arith.constant 24 : index
    %189 = vector.load %arg15[%c8_65, %c24_66] : memref<16x32xf32, #tpu.memory_space<vmem>>, vector<8x8xf32>
    tpu.vector_store %arg15[%c8_65, %c24_66], %188 {strides = array<i32>} : memref<16x32xf32, #tpu.memory_space<vmem>>, vector<8x8xf32>,
    %c0_67 = arith.constant 0 : index
    %c0_68 = arith.constant 0 : index
    %190 = vector.load %arg15[%c0_67, %c0_68] : memref<16x32xf32, #tpu.memory_space<vmem>>, vector<16x32xf32>
    %191 = arith.truncf %190 : vector<16x32xf32> to vector<16x32xbf16>
    %c0_69 = arith.constant 0 : index
    %c0_70 = arith.constant 0 : index
    %192 = vector.load %arg9[%c0_69, %c0_70] : memref<32x32xbf16, #tpu.memory_space<vmem>>, vector<32x32xbf16>
    %cst_71 = arith.constant dense<0.000000e+00> : vector<16x32xf32>
    %193 = tpu.matmul %191, %192, %cst_71 {dimension_numbers = #tpu.dot_dimension_numbers<[1], [0], [0], [1], [0, 0, 1, 1], [], []>} : vector<16x32xbf16>, vector<32x32xbf16>, vector<16x32xf32> -> vector<16x32xf32>
    %194 = vector.extract_strided_slice %9 {offsets = [3, 0], sizes = [1, 32], strides = [1, 1]} : vector<11x32xf32> to vector<1x32xf32>
    %195 = vector.broadcast %194 : vector<1x32xf32> to vector<16x32xf32>
    %196 = arith.addf %193, %195 : vector<16x32xf32>
    %197 = arith.addf %0, %196 : vector<16x32xf32>
    %198 = vector.extract_strided_slice %9 {offsets = [5, 0], sizes = [1, 32], strides = [1, 1]} : vector<11x32xf32> to vector<1x32xf32>
    %199 = vector.extract_strided_slice %9 {offsets = [6, 0], sizes = [1, 32], strides = [1, 1]} : vector<11x32xf32> to vector<1x32xf32>
    %cst_72 = arith.constant dense<0.000000e+00> : vector<16xf32>
    %200 = vector.multi_reduction <add>, %197, %cst_72 [1] : vector<16x32xf32> to vector<16xf32>
    %201 = vector.shape_cast %200 : vector<16xf32> to vector<16x1xf32>
    %cst_73 = arith.constant 3.200000e+01 : f32
    %202 = vector.broadcast %cst_73 : f32 to vector<16x1xf32>
    %203 = arith.divf %201, %202 : vector<16x1xf32>
    %204 = vector.broadcast %203 : vector<16x1xf32> to vector<16x32xf32>
    %205 = arith.subf %197, %204 : vector<16x32xf32>
    %206 = arith.mulf %205, %205 : vector<16x32xf32>
    %cst_74 = arith.constant dense<0.000000e+00> : vector<16xf32>
    %207 = vector.multi_reduction <add>, %206, %cst_74 [1] : vector<16x32xf32> to vector<16xf32>
    %208 = vector.shape_cast %207 : vector<16xf32> to vector<16x1xf32>
    %cst_75 = arith.constant 3.200000e+01 : f32
    %209 = vector.broadcast %cst_75 : f32 to vector<16x1xf32>
    %210 = arith.divf %208, %209 : vector<16x1xf32>
    %211 = vector.broadcast %203 : vector<16x1xf32> to vector<16x32xf32>
    %212 = arith.subf %197, %211 : vector<16x32xf32>
    %cst_76 = arith.constant 9.99999974E-6 : f32
    %213 = vector.broadcast %cst_76 : f32 to vector<16x1xf32>
    %214 = arith.addf %210, %213 : vector<16x1xf32>
    %215 = math.rsqrt %214 : vector<16x1xf32>
    %216 = vector.broadcast %215 : vector<16x1xf32> to vector<16x32xf32>
    %217 = arith.mulf %212, %216 : vector<16x32xf32>
    %218 = vector.broadcast %198 : vector<1x32xf32> to vector<16x32xf32>
    %219 = arith.mulf %217, %218 : vector<16x32xf32>
    %220 = vector.broadcast %199 : vector<1x32xf32> to vector<16x32xf32>
    %221 = arith.addf %219, %220 : vector<16x32xf32>
    %222 = arith.truncf %221 : vector<16x32xf32> to vector<16x32xbf16>
    %c0_77 = arith.constant 0 : index
    %c0_78 = arith.constant 0 : index
    %223 = vector.load %arg10[%c0_77, %c0_78] : memref<32x64xbf16, #tpu.memory_space<vmem>>, vector<32x64xbf16>
    %cst_79 = arith.constant dense<0.000000e+00> : vector<16x64xf32>
    %224 = tpu.matmul %222, %223, %cst_79 {dimension_numbers = #tpu.dot_dimension_numbers<[1], [0], [0], [1], [0, 0, 1, 1], [], []>} : vector<16x32xbf16>, vector<32x64xbf16>, vector<16x64xf32> -> vector<16x64xf32>
    %c0_80 = arith.constant 0 : index
    %c0_81 = arith.constant 0 : index
    %225 = vector.load %arg13[%c0_80, %c0_81] : memref<1x64xf32, #tpu.memory_space<vmem>>, vector<1x64xf32>
    %226 = vector.broadcast %225 : vector<1x64xf32> to vector<16x64xf32>
    %227 = arith.addf %224, %226 : vector<16x64xf32>
    %cst_82 = arith.constant 0.000000e+00 : f32
    %228 = vector.broadcast %cst_82 : f32 to vector<16x64xf32>
    %229 = arith.maximumf %227, %228 : vector<16x64xf32>
    %230 = arith.truncf %229 : vector<16x64xf32> to vector<16x64xbf16>
    %c0_83 = arith.constant 0 : index
    %c0_84 = arith.constant 0 : index
    %231 = vector.load %arg11[%c0_83, %c0_84] : memref<64x32xbf16, #tpu.memory_space<vmem>>, vector<64x32xbf16>
    %cst_85 = arith.constant dense<0.000000e+00> : vector<16x32xf32>
    %232 = tpu.matmul %230, %231, %cst_85 {dimension_numbers = #tpu.dot_dimension_numbers<[1], [0], [0], [1], [0, 0, 1, 1], [], []>} : vector<16x64xbf16>, vector<64x32xbf16>, vector<16x32xf32> -> vector<16x32xf32>
    %233 = vector.extract_strided_slice %9 {offsets = [4, 0], sizes = [1, 32], strides = [1, 1]} : vector<11x32xf32> to vector<1x32xf32>
    %234 = vector.broadcast %233 : vector<1x32xf32> to vector<16x32xf32>
    %235 = arith.addf %232, %234 : vector<16x32xf32>
    %236 = arith.addf %221, %235 : vector<16x32xf32>
    %237 = vector.extract_strided_slice %9 {offsets = [7, 0], sizes = [1, 32], strides = [1, 1]} : vector<11x32xf32> to vector<1x32xf32>
    %238 = vector.extract_strided_slice %9 {offsets = [8, 0], sizes = [1, 32], strides = [1, 1]} : vector<11x32xf32> to vector<1x32xf32>
    %cst_86 = arith.constant dense<0.000000e+00> : vector<16xf32>
    %239 = vector.multi_reduction <add>, %236, %cst_86 [1] : vector<16x32xf32> to vector<16xf32>
    %240 = vector.shape_cast %239 : vector<16xf32> to vector<16x1xf32>
    %cst_87 = arith.constant 3.200000e+01 : f32
    %241 = vector.broadcast %cst_87 : f32 to vector<16x1xf32>
    %242 = arith.divf %240, %241 : vector<16x1xf32>
    %243 = vector.broadcast %242 : vector<16x1xf32> to vector<16x32xf32>
    %244 = arith.subf %236, %243 : vector<16x32xf32>
    %245 = arith.mulf %244, %244 : vector<16x32xf32>
    %cst_88 = arith.constant dense<0.000000e+00> : vector<16xf32>
    %246 = vector.multi_reduction <add>, %245, %cst_88 [1] : vector<16x32xf32> to vector<16xf32>
    %247 = vector.shape_cast %246 : vector<16xf32> to vector<16x1xf32>
    %cst_89 = arith.constant 3.200000e+01 : f32
    %248 = vector.broadcast %cst_89 : f32 to vector<16x1xf32>
    %249 = arith.divf %247, %248 : vector<16x1xf32>
    %250 = vector.broadcast %242 : vector<16x1xf32> to vector<16x32xf32>
    %251 = arith.subf %236, %250 : vector<16x32xf32>
    %cst_90 = arith.constant 9.99999974E-6 : f32
    %252 = vector.broadcast %cst_90 : f32 to vector<16x1xf32>
    %253 = arith.addf %249, %252 : vector<16x1xf32>
    %254 = math.rsqrt %253 : vector<16x1xf32>
    %255 = vector.broadcast %254 : vector<16x1xf32> to vector<16x32xf32>
    %256 = arith.mulf %251, %255 : vector<16x32xf32>
    %257 = vector.broadcast %237 : vector<1x32xf32> to vector<16x32xf32>
    %258 = arith.mulf %256, %257 : vector<16x32xf32>
    %259 = vector.broadcast %238 : vector<1x32xf32> to vector<16x32xf32>
    %260 = arith.addf %258, %259 : vector<16x32xf32>
    %261 = vector.extract_strided_slice %9 {offsets = [9, 0], sizes = [1, 32], strides = [1, 1]} : vector<11x32xf32> to vector<1x32xf32>
    %262 = vector.extract_strided_slice %9 {offsets = [10, 0], sizes = [1, 32], strides = [1, 1]} : vector<11x32xf32> to vector<1x32xf32>
    %cst_91 = arith.constant dense<0.000000e+00> : vector<16xf32>
    %263 = vector.multi_reduction <add>, %260, %cst_91 [1] : vector<16x32xf32> to vector<16xf32>
    %264 = vector.shape_cast %263 : vector<16xf32> to vector<16x1xf32>
    %cst_92 = arith.constant 3.200000e+01 : f32
    %265 = vector.broadcast %cst_92 : f32 to vector<16x1xf32>
    %266 = arith.divf %264, %265 : vector<16x1xf32>
    %267 = vector.broadcast %266 : vector<16x1xf32> to vector<16x32xf32>
    %268 = arith.subf %260, %267 : vector<16x32xf32>
    %269 = arith.mulf %268, %268 : vector<16x32xf32>
    %cst_93 = arith.constant dense<0.000000e+00> : vector<16xf32>
    %270 = vector.multi_reduction <add>, %269, %cst_93 [1] : vector<16x32xf32> to vector<16xf32>
    %271 = vector.shape_cast %270 : vector<16xf32> to vector<16x1xf32>
    %cst_94 = arith.constant 3.200000e+01 : f32
    %272 = vector.broadcast %cst_94 : f32 to vector<16x1xf32>
    %273 = arith.divf %271, %272 : vector<16x1xf32>
    %274 = vector.broadcast %266 : vector<16x1xf32> to vector<16x32xf32>
    %275 = arith.subf %260, %274 : vector<16x32xf32>
    %cst_95 = arith.constant 9.99999974E-6 : f32
    %276 = vector.broadcast %cst_95 : f32 to vector<16x1xf32>
    %277 = arith.addf %273, %276 : vector<16x1xf32>
    %278 = math.rsqrt %277 : vector<16x1xf32>
    %279 = vector.broadcast %278 : vector<16x1xf32> to vector<16x32xf32>
    %280 = arith.mulf %275, %279 : vector<16x32xf32>
    %281 = vector.broadcast %261 : vector<1x32xf32> to vector<16x32xf32>
    %282 = arith.mulf %280, %281 : vector<16x32xf32>
    %283 = vector.broadcast %262 : vector<1x32xf32> to vector<16x32xf32>
    %284 = arith.addf %282, %283 : vector<16x32xf32>
    %c0_96 = arith.constant 0 : index
    %c0_97 = arith.constant 0 : index
    %285 = vector.load %arg14[%c0_96, %c0_97] : memref<16x32xf32, #tpu.memory_space<vmem>>, vector<16x32xf32>
    tpu.vector_store %arg14[%c0_96, %c0_97], %284 {strides = array<i32>} : memref<16x32xf32, #tpu.memory_space<vmem>>, vector<16x32xf32>,
    return
  }
  func.func @transform_0(%arg0: i32) -> (i32, i32) {
    %c0_i32 = arith.constant 0 : i32
    %c0_i32_0 = arith.constant 0 : i32
    return %arg0, %c0_i32 : i32, i32
  }
  func.func @transform_1(%arg0: i32) -> (i32, i32) {
    %c0_i32 = arith.constant 0 : i32
    %c0_i32_0 = arith.constant 0 : i32
    return %arg0, %c0_i32 : i32, i32
  }
  func.func @transform_2(%arg0: i32) -> (i32, i32) {
    %c0_i32 = arith.constant 0 : i32
    %c0_i32_0 = arith.constant 0 : i32
    return %arg0, %c0_i32 : i32, i32
  }
  func.func @transform_3(%arg0: i32) -> (i32, i32) {
    %c0_i32 = arith.constant 0 : i32
    %c0_i32_0 = arith.constant 0 : i32
    return %arg0, %c0_i32 : i32, i32
  }
  func.func @transform_4(%arg0: i32) -> (i32, i32, i32) {
    %c0_i32 = arith.constant 0 : i32
    %c0_i32_0 = arith.constant 0 : i32
    %c0_i32_1 = arith.constant 0 : i32
    return %arg0, %c0_i32, %c0_i32_0 : i32, i32, i32
  }
  func.func @transform_5(%arg0: i32) -> (i32, i32) {
    %c0_i32 = arith.constant 0 : i32
    %c0_i32_0 = arith.constant 0 : i32
    %c0_i32_1 = arith.constant 0 : i32
    return %c0_i32, %c0_i32_0 : i32, i32
  }
  func.func @transform_6(%arg0: i32) -> (i32, i32) {
    %c0_i32 = arith.constant 0 : i32
    %c0_i32_0 = arith.constant 0 : i32
    %c0_i32_1 = arith.constant 0 : i32
    return %c0_i32, %c0_i32_0 : i32, i32
  }
  func.func @transform_7(%arg0: i32) -> (i32, i32) {
    %c0_i32 = arith.constant 0 : i32
    %c0_i32_0 = arith.constant 0 : i32
    %c0_i32_1 = arith.constant 0 : i32
    return %c0_i32, %c0_i32_0 : i32, i32
  }
  func.func @transform_8(%arg0: i32) -> (i32, i32) {
    %c0_i32 = arith.constant 0 : i32
    %c0_i32_0 = arith.constant 0 : i32
    %c0_i32_1 = arith.constant 0 : i32
    return %c0_i32, %c0_i32_0 : i32, i32
  }
  func.func @transform_9(%arg0: i32) -> (i32, i32) {
    %c0_i32 = arith.constant 0 : i32
    %c0_i32_0 = arith.constant 0 : i32
    %c0_i32_1 = arith.constant 0 : i32
    return %c0_i32, %c0_i32_0 : i32, i32
  }
  func.func @transform_10(%arg0: i32) -> (i32, i32) {
    %c0_i32 = arith.constant 0 : i32
    %c0_i32_0 = arith.constant 0 : i32
    %c0_i32_1 = arith.constant 0 : i32
    return %c0_i32, %c0_i32_0 : i32, i32
  }
  func.func @transform_11(%arg0: i32) -> (i32, i32) {
    %c0_i32 = arith.constant 0 : i32
    %c0_i32_0 = arith.constant 0 : i32
    %c0_i32_1 = arith.constant 0 : i32
    return %c0_i32, %c0_i32_0 : i32, i32
  }
  func.func @transform_12(%arg0: i32) -> (i32, i32) {
    %c0_i32 = arith.constant 0 : i32
    %c0_i32_0 = arith.constant 0 : i32
    %c0_i32_1 = arith.constant 0 : i32
    return %c0_i32, %c0_i32_0 : i32, i32
  }
  func.func @transform_13(%arg0: i32) -> (i32, i32) {
    %c0_i32 = arith.constant 0 : i32
    %c0_i32_0 = arith.constant 0 : i32
    return %arg0, %c0_i32 : i32, i32
  }
}

</mosaic_0001>

<llo_original>
// kernel: tpu_custom_call.1
$region0: #{tpu_custom_call.1}
  #allocation0 [shape = 'u32[]', space=smem, size = 0x4, offset = 0x4, fixed_abs, tag = 'smem constant byte address 0x4 - core index']
  #allocation1 [shape = 'u32[72,128]{1,0:T(1,128)}', space=vmem, size = 0x9000, scoped, tag = 'internal scratch']
  #allocation2 [shape = 'f32[16,32]{1,0:T(8,128)}', space=vmem, size = 0x2000, scoped, tag = 'scratch operand']
  %s0 = inlined_call_operand.vmem [shape: f32[16,32], index: 0, kind: input, shape index: {}]
  %s1 = inlined_call_operand.hbm [shape: f32[16,32], index: 1, kind: input, shape index: {}]
  %s2 = inlined_call_operand.vmem [shape: f32[32,32], index: 2, kind: input, shape index: {}]
  %s3 = inlined_call_operand.hbm [shape: f32[32,32], index: 3, kind: input, shape index: {}]
  %s4 = inlined_call_operand.vmem [shape: f32[2,1,16], index: 4, kind: input, shape index: {}]
  %s5 = inlined_call_operand.hbm [shape: bf16[32,32], index: 5, kind: input, shape index: {}]
  %s6 = inlined_call_operand.hbm [shape: bf16[32,32], index: 6, kind: input, shape index: {}]
  %s7 = inlined_call_operand.hbm [shape: bf16[32,32], index: 7, kind: input, shape index: {}]
  %s8 = inlined_call_operand.hbm [shape: bf16[32,32], index: 8, kind: input, shape index: {}]
  %s9 = inlined_call_operand.hbm [shape: bf16[32,64], index: 9, kind: input, shape index: {}]
  %s10 = inlined_call_operand.vmem [shape: bf16[64,32], index: 10, kind: input, shape index: {}]
  %s11 = inlined_call_operand.hbm [shape: f32[11,32], index: 11, kind: input, shape index: {}]
  %s12 = inlined_call_operand.vmem [shape: f32[1,64], index: 12, kind: input, shape index: {}]
  %s13 = inlined_call_operand.hbm [shape: f32[16,32], index: 13, kind: output, shape index: {}]
  %s14 = sld [smem:[#allocation0]]
  $region94: #{tpu_custom_call.1} parent=0
    _
  %s16 = ssub.s32 1, %s14
  %s17 = scalar_select 0, %s16, %s14
  $region1: #{tpu_custom_call.1} parent=0
    #allocation3 [shape = 'u8[8192]{0}', space=vmem, size = 0x2000, scoped, tag = 'input window, operand 1, single buffered']
    #allocation4 [shape = 's32[1]{0}', space=sflag, size = 0x4, scoped, tag = 'scoped memory for tpu_custom_call.1']
    #allocation5 [shape = 's32[1]{0}', space=sflag, size = 0x4, scoped, tag = 'scoped memory for tpu_custom_call.1']
    #allocation6 [shape = 'u8[16384]{0}', space=vmem, size = 0x4000, scoped, tag = 'input window, operand 3, single buffered']
    #allocation7 [shape = 's32[1]{0}', space=sflag, size = 0x4, scoped, tag = 'scoped memory for tpu_custom_call.1']
    #allocation8 [shape = 'u8[8192]{0}', space=vmem, size = 0x2000, scoped, tag = 'input window, operand 5, single buffered']
    #allocation9 [shape = 'u8[8192]{0}', space=vmem, size = 0x2000, scoped, tag = 'input window, operand 6, single buffered']
    #allocation10 [shape = 's32[1]{0}', space=sflag, size = 0x4, scoped, tag = 'scoped memory for tpu_custom_call.1']
    #allocation11 [shape = 'u8[8192]{0}', space=vmem, size = 0x2000, scoped, tag = 'input window, operand 7, single buffered']
    #allocation12 [shape = 'u8[8192]{0}', space=vmem, size = 0x2000, scoped, tag = 'input window, operand 8, single buffered']
    #allocation13 [shape = 's32[1]{0}', space=sflag, size = 0x4, scoped, tag = 'scoped memory for tpu_custom_call.1']
    #allocation14 [shape = 'u8[8192]{0}', space=vmem, size = 0x2000, scoped, tag = 'input window, operand 9, single buffered']
    #allocation15 [shape = 'u8[8192]{0}', space=vmem, size = 0x2000, scoped, tag = 'input window, operand 11, single buffered']
    #allocation16 [shape = 's32[1]{0}', space=sflag, size = 0x4, scoped, tag = 'scoped memory for tpu_custom_call.1']
    #allocation17 [shape = 'u8[8192]{0}', space=vmem, size = 0x2000, scoped, tag = 'output window, operand 0, single buffered']
    %18 = vsyncpa [#allocation4], 0
    %19 = vsyncpa [#allocation7], 0
    %20 = vsyncpa [#allocation10], 0
    %21 = vsyncpa [#allocation13], 0
    %22 = vsyncpa [#allocation16], 0
    %23 = vsyncpa [#allocation5], 0
    // Predicated region
    $region2: #{tpu_custom_call.1} parent=1 // pred_check
      _
    $region3: #{tpu_custom_call.1} parent=1 // pred_check_branch
      %25 = sbr.rel (0) target = $region5
    $region4: #{tpu_custom_call.1} parent=1 // pred_region
      _
    $region5: #{tpu_custom_call.1} parent=1 // pred_fallthru
      _
    // Predicated region
    $region6: #{tpu_custom_call.1} parent=1 // pred_check
      _
    $region7: #{tpu_custom_call.1} parent=1 // pred_check_branch
      %27 = sbr.rel (0) target = $region9
    $region8: #{tpu_custom_call.1} parent=1 // pred_region
      %29 = vsyncadd [#allocation4], 0
      %s30 = sshll.u32 %s1, 4
      %s31 = int_to_ptr.hbm [resolvable:$true] %s30
      %s32 = sshll.u32 [#allocation3], 4
      %s33 = int_to_ptr.vmem [resolvable:$true] %s32
      %38 = dma.hbm_to_vmem [thread:$0]  %s31, 256, %s33, [#allocation4], 128, 128, 8
    $region9: #{tpu_custom_call.1} parent=1 // pred_fallthru
      _
    // Predicated region
    $region10: #{tpu_custom_call.1} parent=1 // pred_check
      _
    $region11: #{tpu_custom_call.1} parent=1 // pred_check_branch
      %40 = sbr.rel (0) target = $region13
    $region12: #{tpu_custom_call.1} parent=1 // pred_region
      _
    $region13: #{tpu_custom_call.1} parent=1 // pred_fallthru
      _
    // Predicated region
    $region14: #{tpu_custom_call.1} parent=1 // pred_check
      _
    $region15: #{tpu_custom_call.1} parent=1 // pred_check_branch
      %42 = sbr.rel (0) target = $region17
    $region16: #{tpu_custom_call.1} parent=1 // pred_region
      %44 = vsyncadd [#allocation7], 0
      %s45 = sshll.u32 %s3, 4
      %s46 = int_to_ptr.hbm [resolvable:$true] %s45
      %s47 = sshll.u32 [#allocation6], 4
      %s48 = int_to_ptr.vmem [resolvable:$true] %s47
      %53 = dma.hbm_to_vmem [thread:$0]  %s46, 512, %s48, [#allocation7], 128, 128, 8
    $region17: #{tpu_custom_call.1} parent=1 // pred_fallthru
      _
    // Predicated region
    $region18: #{tpu_custom_call.1} parent=1 // pred_check
      _
    $region19: #{tpu_custom_call.1} parent=1 // pred_check_branch
      %55 = sbr.rel (0) target = $region21
    $region20: #{tpu_custom_call.1} parent=1 // pred_region
      _
    $region21: #{tpu_custom_call.1} parent=1 // pred_fallthru
      _
    // Predicated region
    $region22: #{tpu_custom_call.1} parent=1 // pred_check
      _
    $region23: #{tpu_custom_call.1} parent=1 // pred_check_branch
      %57 = sbr.rel (0) target = $region25
    $region24: #{tpu_custom_call.1} parent=1 // pred_region
      %59 = vsyncadd [#allocation7], 0
      %s60 = sshll.u32 %s5, 4
      %s61 = int_to_ptr.hbm [resolvable:$true] %s60
      %s62 = sshll.u32 [#allocation8], 4
      %s63 = int_to_ptr.vmem [resolvable:$true] %s62
      %68 = dma.hbm_to_vmem [thread:$0]  %s61, 256, %s63, [#allocation7], 64, 64, 4
    $region25: #{tpu_custom_call.1} parent=1 // pred_fallthru
      _
    // Predicated region
    $region26: #{tpu_custom_call.1} parent=1 // pred_check
      _
    $region27: #{tpu_custom_call.1} parent=1 // pred_check_branch
      %70 = sbr.rel (0) target = $region29
    $region28: #{tpu_custom_call.1} parent=1 // pred_region
      %72 = vsyncadd [#allocation10], 0
      %s73 = sshll.u32 %s6, 4
      %s74 = int_to_ptr.hbm [resolvable:$true] %s73
      %s75 = sshll.u32 [#allocation9], 4
      %s76 = int_to_ptr.vmem [resolvable:$true] %s75
      %81 = dma.hbm_to_vmem [thread:$0]  %s74, 256, %s76, [#allocation10], 64, 64, 4
    $region29: #{tpu_custom_call.1} parent=1 // pred_fallthru
      _
    // Predicated region
    $region30: #{tpu_custom_call.1} parent=1 // pred_check
      _
    $region31: #{tpu_custom_call.1} parent=1 // pred_check_branch
      %83 = sbr.rel (0) target = $region33
    $region32: #{tpu_custom_call.1} parent=1 // pred_region
      %85 = vsyncadd [#allocation10], 0
      %s86 = sshll.u32 %s7, 4
      %s87 = int_to_ptr.hbm [resolvable:$true] %s86
      %s88 = sshll.u32 [#allocation11], 4
      %s89 = int_to_ptr.vmem [resolvable:$true] %s88
      %94 = dma.hbm_to_vmem [thread:$0]  %s87, 256, %s89, [#allocation10], 64, 64, 4
    $region33: #{tpu_custom_call.1} parent=1 // pred_fallthru
      _
    // Predicated region
    $region34: #{tpu_custom_call.1} parent=1 // pred_check
      _
    $region35: #{tpu_custom_call.1} parent=1 // pred_check_branch
      %96 = sbr.rel (0) target = $region37
    $region36: #{tpu_custom_call.1} parent=1 // pred_region
      %98 = vsyncadd [#allocation13], 0
      %s99 = sshll.u32 %s8, 4
      %s100 = int_to_ptr.hbm [resolvable:$true] %s99
      %s101 = sshll.u32 [#allocation12], 4
      %s102 = int_to_ptr.vmem [resolvable:$true] %s101
      %107 = dma.hbm_to_vmem [thread:$0]  %s100, 256, %s102, [#allocation13], 64, 64, 4
    $region37: #{tpu_custom_call.1} parent=1 // pred_fallthru
      _
    // Predicated region
    $region38: #{tpu_custom_call.1} parent=1 // pred_check
      _
    $region39: #{tpu_custom_call.1} parent=1 // pred_check_branch
      %109 = sbr.rel (0) target = $region41
    $region40: #{tpu_custom_call.1} parent=1 // pred_region
      %111 = vsyncadd [#allocation13], 0
      %s112 = sshll.u32 %s9, 4
      %s113 = int_to_ptr.hbm [resolvable:$true] %s112
      %s114 = sshll.u32 [#allocation14], 4
      %s115 = int_to_ptr.vmem [resolvable:$true] %s114
      %120 = dma.hbm_to_vmem [thread:$0]  %s113, 256, %s115, [#allocation13], 64, 64, 4
    $region41: #{tpu_custom_call.1} parent=1 // pred_fallthru
      _
    // Predicated region
    $region42: #{tpu_custom_call.1} parent=1 // pred_check
      _
    $region43: #{tpu_custom_call.1} parent=1 // pred_check_branch
      %122 = sbr.rel (0) target = $region45
    $region44: #{tpu_custom_call.1} parent=1 // pred_region
      _
    $region45: #{tpu_custom_call.1} parent=1 // pred_fallthru
      _
    // Predicated region
    $region46: #{tpu_custom_call.1} parent=1 // pred_check
      _
    $region47: #{tpu_custom_call.1} parent=1 // pred_check_branch
      %124 = sbr.rel (0) target = $region49
    $region48: #{tpu_custom_call.1} parent=1 // pred_region
      %126 = vsyncadd [#allocation16], 0
      %s127 = sshll.u32 %s11, 4
      %s128 = int_to_ptr.hbm [resolvable:$true] %s127
      %s129 = sshll.u32 [#allocation15], 4
      %s130 = int_to_ptr.vmem [resolvable:$true] %s129
      %135 = dma.hbm_to_vmem [thread:$0]  %s128, 256, %s130, [#allocation16], 128, 128, 8
    $region49: #{tpu_custom_call.1} parent=1 // pred_fallthru
      _
    // Predicated region
    $region50: #{tpu_custom_call.1} parent=1 // pred_check
      _
    $region51: #{tpu_custom_call.1} parent=1 // pred_check_branch
      %137 = sbr.rel (0) target = $region53
    $region52: #{tpu_custom_call.1} parent=1 // pred_region
      _
    $region53: #{tpu_custom_call.1} parent=1 // pred_fallthru
      _
    // Predicated region
    $region54: #{tpu_custom_call.1} parent=1 // pred_check
      _
    $region55: #{tpu_custom_call.1} parent=1 // pred_check_branch
      %139 = sbr.rel (0) target = $region57
    $region56: #{tpu_custom_call.1} parent=1 // pred_region
      %141 = dma.done [#allocation4], 256
    $region57: #{tpu_custom_call.1} parent=1 // pred_fallthru
      _
    // Predicated region
    $region58: #{tpu_custom_call.1} parent=1 // pred_check
      _
    $region59: #{tpu_custom_call.1} parent=1 // pred_check_branch
      %143 = sbr.rel (0) target = $region61
    $region60: #{tpu_custom_call.1} parent=1 // pred_region
      %145 = dma.done [#allocation7], 512
    $region61: #{tpu_custom_call.1} parent=1 // pred_fallthru
      _
    // Predicated region
    $region62: #{tpu_custom_call.1} parent=1 // pred_check
      _
    $region63: #{tpu_custom_call.1} parent=1 // pred_check_branch
      %147 = sbr.rel (0) target = $region65
    $region64: #{tpu_custom_call.1} parent=1 // pred_region
      %149 = dma.done [#allocation7], 256
    $region65: #{tpu_custom_call.1} parent=1 // pred_fallthru
      _
    // Predicated region
    $region66: #{tpu_custom_call.1} parent=1 // pred_check
      _
    $region67: #{tpu_custom_call.1} parent=1 // pred_check_branch
      %151 = sbr.rel (0) target = $region69
    $region68: #{tpu_custom_call.1} parent=1 // pred_region
      %153 = dma.done [#allocation10], 256
    $region69: #{tpu_custom_call.1} parent=1 // pred_fallthru
      _
    // Predicated region
    $region70: #{tpu_custom_call.1} parent=1 // pred_check
      _
    $region71: #{tpu_custom_call.1} parent=1 // pred_check_branch
      %155 = sbr.rel (0) target = $region73
    $region72: #{tpu_custom_call.1} parent=1 // pred_region
      %157 = dma.done [#allocation10], 256
    $region73: #{tpu_custom_call.1} parent=1 // pred_fallthru
      _
    // Predicated region
    $region74: #{tpu_custom_call.1} parent=1 // pred_check
      _
    $region75: #{tpu_custom_call.1} parent=1 // pred_check_branch
      %159 = sbr.rel (0) target = $region77
    $region76: #{tpu_custom_call.1} parent=1 // pred_region
      %161 = dma.done [#allocation13], 256
    $region77: #{tpu_custom_call.1} parent=1 // pred_fallthru
      _
    // Predicated region
    $region78: #{tpu_custom_call.1} parent=1 // pred_check
      _
    $region79: #{tpu_custom_call.1} parent=1 // pred_check_branch
      %163 = sbr.rel (0) target = $region81
    $region80: #{tpu_custom_call.1} parent=1 // pred_region
      %165 = dma.done [#allocation13], 256
    $region81: #{tpu_custom_call.1} parent=1 // pred_fallthru
      _
    // Predicated region
    $region82: #{tpu_custom_call.1} parent=1 // pred_check
      _
    $region83: #{tpu_custom_call.1} parent=1 // pred_check_branch
      %167 = sbr.rel (0) target = $region85
    $region84: #{tpu_custom_call.1} parent=1 // pred_region
      %169 = dma.done [#allocation16], 256
    $region85: #{tpu_custom_call.1} parent=1 // pred_fallthru
      _
    %v171 = vld [vmem:[%s0] sm:$0xff]
    %v172 = vld [vmem:[%s0 + $0x8] sm:$0xff]
    %v173 = vld [vmem:[#allocation3] sm:$0xff]
    %v174 = vld [vmem:[#allocation3 + $0x8] sm:$0xff]
    %v175 = vadd.f32 %v171, %v173
    %v176 = vadd.f32 %v172, %v174
    %v177 = vpack.c.bf16 %v176, %v175
    %v178 = vld [vmem:[%s2] sm:$0xff]
    %v179 = vld [vmem:[%s2 + $0x8] sm:$0xff]
    %v180 = vld [vmem:[%s2 + $0x10] sm:$0xff]
    %v181 = vld [vmem:[%s2 + $0x18] sm:$0xff]
    %v182 = vld [vmem:[#allocation6] sm:$0xff]
    %v183 = vld [vmem:[#allocation6 + $0x8] sm:$0xff]
    %v184 = vld [vmem:[#allocation6 + $0x10] sm:$0xff]
    %v185 = vld [vmem:[#allocation6 + $0x18] sm:$0xff]
    %v186 = vadd.f32 %v178, %v182
    %v187 = vadd.f32 %v179, %v183
    %v188 = vadd.f32 %v180, %v184
    %v189 = vadd.f32 %v181, %v185
    %v190 = vpack.c.bf16 %v187, %v186
    %v191 = vpack.c.bf16 %v189, %v188
    %v192 = vpack.c.bf16 %v179, %v178
    %v193 = vpack.c.bf16 %v181, %v180
    %v194 = vld [vmem:[#allocation15] sm:$0xff]
    %v195 = vld [vmem:[#allocation15 + $0x8] sm:$0x7]
    %v196 = vld [vmem:[#allocation8] sm:$0xf]
    %v197 = vld [vmem:[#allocation8 + $0x4] sm:$0xf]
    %v198 = vld [vmem:[#allocation8 + $0x8] sm:$0xf]
    %v199 = vld [vmem:[#allocation8 + $0xc] sm:$0xf]
    %v200 = vperm.slane %v194, 0
    %v205 = vunpack.c.l.b16 %v196
    %v206 = vunpack.c.l.b16 %v197
    %v207 = vunpack.c.l.b16 %v198
    %v208 = vunpack.c.l.b16 %v199
    %v209 = vpack.c.b16 %v206, %v205
    %v210 = vpack.c.b16 %v208, %v207
    %vm213 = vcmask 261120
    %v215 = vsel %vm213, %v177, 0
    %217 = vmatpush.bf16.msra.mxu0 0
    %218 = vmatpush.bf16.msra.mxu0 0
    %219 = vmatpush.bf16.msra.mxu0 0
    %220 = vmatpush.bf16.msra.mxu0 0
    %221 = vmatpush.bf16.msra.mxu0 0
    %222 = vmatpush.bf16.msra.mxu0 0
    %223 = vmatpush.bf16.msra.mxu0 %v210
    %224 = vmatpush.bf16.msra.mxu0 %v209
    %225 = vmatmul.bf16.gmra.mxu0 %v215
    %v226 = vpop.f32.mrf.mxu0
    %v227 = vadd.f32 %v200, %v226
    %v228 = vpop.f32.mrf.mxu0
    %v229 = vadd.f32 %v200, %v228
    %230 = vdwg.mxu0
    %v231 = vpack.c.bf16 %v227, %v227
    %v232 = vpack.c.bf16 %v229, %v229
    %v233 = vld [vmem:[#allocation9] sm:$0xf]
    %v234 = vld [vmem:[#allocation9 + $0x4] sm:$0xf]
    %v235 = vld [vmem:[#allocation9 + $0x8] sm:$0xf]
    %v236 = vld [vmem:[#allocation9 + $0xc] sm:$0xf]
    %v237 = vperm.slane %v194, 1
    %v242 = vunpack.c.l.b16 %v233
    %v243 = vunpack.c.l.b16 %v234
    %v244 = vunpack.c.l.b16 %v235
    %v245 = vunpack.c.l.b16 %v236
    %v246 = vpack.c.b16 %v243, %v242
    %v247 = vpack.c.b16 %v245, %v244
    %v251 = vsel %vm213, %v190, 0
    %v254 = vsel %vm213, %v191, 0
    %256 = vmatpush.bf16.msra.mxu0 0
    %257 = vmatpush.bf16.msra.mxu0 0
    %258 = vmatpush.bf16.msra.mxu0 0
    %259 = vmatpush.bf16.msra.mxu0 0
    %260 = vmatpush.bf16.msra.mxu0 0
    %261 = vmatpush.bf16.msra.mxu0 0
    %262 = vmatpush.bf16.msra.mxu0 %v247
    %263 = vmatpush.bf16.msra.mxu0 %v246
    %264 = vmatmul.bf16.gmra.mxu0 %v251
    %v265 = vpop.f32.mrf.mxu0
    %v266 = vadd.f32 %v237, %v265
    %v267 = vpop.f32.mrf.mxu0
    %v268 = vadd.f32 %v237, %v267
    %269 = vmatmul.bf16.gmra.mxu0 %v254
    %v270 = vpop.f32.mrf.mxu0
    %v271 = vadd.f32 %v237, %v270
    %v272 = vpop.f32.mrf.mxu0
    %v273 = vadd.f32 %v237, %v272
    %274 = vdwg.mxu0
    %v275 = vpack.c.bf16 %v266, %v266
    %v276 = vpack.c.bf16 %v268, %v268
    %v277 = vpack.c.bf16 %v271, %v271
    %v278 = vpack.c.bf16 %v273, %v273
    %v279 = vld [vmem:[#allocation11] sm:$0xf]
    %v280 = vld [vmem:[#allocation11 + $0x4] sm:$0xf]
    %v281 = vld [vmem:[#allocation11 + $0x8] sm:$0xf]
    %v282 = vld [vmem:[#allocation11 + $0xc] sm:$0xf]
    %v283 = vperm.slane %v194, 2
    %v288 = vunpack.c.l.b16 %v279
    %v289 = vunpack.c.l.b16 %v280
    %v290 = vunpack.c.l.b16 %v281
    %v291 = vunpack.c.l.b16 %v282
    %v292 = vpack.c.b16 %v289, %v288
    %v293 = vpack.c.b16 %v291, %v290
    %v297 = vsel %vm213, %v192, 0
    %v300 = vsel %vm213, %v193, 0
    %302 = vmatpush.bf16.msra.mxu0 0
    %303 = vmatpush.bf16.msra.mxu0 0
    %304 = vmatpush.bf16.msra.mxu0 0
    %305 = vmatpush.bf16.msra.mxu0 0
    %306 = vmatpush.bf16.msra.mxu0 0
    %307 = vmatpush.bf16.msra.mxu0 0
    %308 = vmatpush.bf16.msra.mxu0 %v293
    %309 = vmatpush.bf16.msra.mxu0 %v292
    %310 = vmatmul.bf16.gmra.mxu0 %v297
    %v311 = vpop.f32.mrf.mxu0
    %v312 = vadd.f32 %v283, %v311
    %v313 = vpop.f32.mrf.mxu0
    %v314 = vadd.f32 %v283, %v313
    %315 = vmatmul.bf16.gmra.mxu0 %v300
    %v316 = vpop.f32.mrf.mxu0
    %v317 = vadd.f32 %v283, %v316
    %v318 = vpop.f32.mrf.mxu0
    %v319 = vadd.f32 %v283, %v318
    %320 = vdwg.mxu0
    %v321 = vpack.c.bf16 %v312, %v312
    %v322 = vpack.c.bf16 %v314, %v314
    %v323 = vpack.c.bf16 %v317, %v317
    %v324 = vpack.c.bf16 %v319, %v319
    %v325 = vld [vmem:[%s4] sm:$0x1]
    %v327 = vperm.slane %v325, 0
    %v331 = vunpack.c.l.b16 %v275
    %v332 = vunpack.c.l.b16 %v276
    %v333 = vpack.c.b16 %v332, %v331
    %vm334 = vcmask 64512
    %v336 = vsel %vm334, %v231, 0
    %v339 = vsel %vm334, %v333, 0
    %341 = vmatpush.bf16.xpose.msra.mxu0 0
    %342 = vmatpush.bf16.xpose.msra.mxu0 0
    %343 = vmatpush.bf16.xpose.msra.mxu0 0
    %344 = vmatpush.bf16.xpose.msra.mxu0 0
    %345 = vmatpush.bf16.xpose.msra.mxu0 0
    %346 = vmatpush.bf16.xpose.msra.mxu0 0
    %347 = vmatpush.bf16.xpose.msra.mxu0 0
    %348 = vmatpush.bf16.xpose.msra.mxu0 %v339
    %349 = vmatmul.bf16.gmra.mxu0 %v336
    %v350 = vpop.f32.mrf.mxu0
    %v351 = vadd.f32 %v327, %v350
    %v352 = vpop.f32.mrf.mxu0
    %353 = vdwg.mxu0
    %vm354 = vcmask 130048
    %v355 = vsel %vm354, %v351, -inf
    %356 = vmax.xlane.f32.xlu0 %v355
    %v357 = vpop.xlane.xlu0 %356
    %v358 = vsub.f32 %v351, %v357
    %v359 = vmul.f32 %v358, 1.442695
    %v360 = vpow.pop %v359
    %v361 = vsel %vm354, %v360, 0.0
    %362 = vadd.xlane.f32.xlu0 %v361
    %v363 = vpop.xlane.xlu0 %362
    %v364 = vrcp.pop %v363
    %v365 = vmul.f32 %v360, %v364
    %v366 = vpack.c.bf16 %v365, %v365
    %v369 = vunpack.c.l.b16 %v321
    %v370 = vunpack.c.l.b16 %v322
    %v371 = vpack.c.b16 %v370, %v369
    %v374 = vsel %vm354, %v366, 0
    %376 = vmatpush.bf16.msra.mxu0 0
    %377 = vmatpush.bf16.msra.mxu0 0
    %378 = vmatpush.bf16.msra.mxu0 0
    %379 = vmatpush.bf16.msra.mxu0 0
    %380 = vmatpush.bf16.msra.mxu0 0
    %381 = vmatpush.bf16.msra.mxu0 0
    %382 = vmatpush.bf16.msra.mxu0 0
    %383 = vmatpush.bf16.msra.mxu0 %v371
    %384 = vmatmul.bf16.gmra.mxu0 %v374
    %v385 = vpop.f32.mrf.mxu0
    %v386 = vadd.f32 0.0, %v385
    %v387 = vpop.f32.mrf.mxu0
    %388 = vdwg.mxu0
    %389 = vst.msk [vmem:[#allocation2] sm:$0xff] %vm334, %v386
    %v391 = vunpack.c.l.b16 %v231
    %v392 = vpack.c.b16 %v391, %v391
    %393 = vrot.lane.b32.xlu0 %v392, 120
    %v394 = vpop.permute.xlu0 %393
    %395 = vrot.lane.b32.xlu0 %v333, 120
    %v396 = vpop.permute.xlu0 %395
    %v398 = vsel %vm334, %v394, 0
    %v401 = vsel %vm334, %v396, 0
    %403 = vmatpush.bf16.xpose.msra.mxu0 0
    %404 = vmatpush.bf16.xpose.msra.mxu0 0
    %405 = vmatpush.bf16.xpose.msra.mxu0 0
    %406 = vmatpush.bf16.xpose.msra.mxu0 0
    %407 = vmatpush.bf16.xpose.msra.mxu0 0
    %408 = vmatpush.bf16.xpose.msra.mxu0 0
    %409 = vmatpush.bf16.xpose.msra.mxu0 0
    %410 = vmatpush.bf16.xpose.msra.mxu0 %v401
    %411 = vmatmul.bf16.gmra.mxu0 %v398
    %v412 = vpop.f32.mrf.mxu0
    %v413 = vadd.f32 %v327, %v412
    %v414 = vpop.f32.mrf.mxu0
    %415 = vdwg.mxu0
    %v416 = vsel %vm354, %v413, -inf
    %417 = vmax.xlane.f32.xlu0 %v416
    %v418 = vpop.xlane.xlu0 %417
    %v419 = vsub.f32 %v413, %v418
    %v420 = vmul.f32 %v419, 1.442695
    %v421 = vpow.pop %v420
    %v422 = vsel %vm354, %v421, 0.0
    %423 = vadd.xlane.f32.xlu0 %v422
    %v424 = vpop.xlane.xlu0 %423
    %v425 = vrcp.pop %v424
    %v426 = vmul.f32 %v421, %v425
    %v427 = vpack.c.bf16 %v426, %v426
    %428 = vrot.lane.b32.xlu0 %v371, 120
    %v429 = vpop.permute.xlu0 %428
    %v432 = vsel %vm354, %v427, 0
    %434 = vmatpush.bf16.msra.mxu0 0
    %435 = vmatpush.bf16.msra.mxu0 0
    %436 = vmatpush.bf16.msra.mxu0 0
    %437 = vmatpush.bf16.msra.mxu0 0
    %438 = vmatpush.bf16.msra.mxu0 0
    %439 = vmatpush.bf16.msra.mxu0 0
    %440 = vmatpush.bf16.msra.mxu0 0
    %441 = vmatpush.bf16.msra.mxu0 %v429
    %442 = vmatmul.bf16.gmra.mxu0 %v432
    %v443 = vpop.f32.mrf.mxu0
    %v444 = vadd.f32 0.0, %v443
    %v445 = vpop.f32.mrf.mxu0
    %446 = vdwg.mxu0
    %448 = vrot.lane.b32.xlu0 %v444, 8
    %v449 = vpop.permute.xlu0 %448
    %vm451 = vcmask 130112
    %452 = vst.msk [vmem:[#allocation2] sm:$0xff] %vm451, %v449
    %453 = vrot.lane.b32.xlu0 %v392, 112
    %v454 = vpop.permute.xlu0 %453
    %455 = vrot.lane.b32.xlu0 %v333, 112
    %v456 = vpop.permute.xlu0 %455
    %v458 = vsel %vm334, %v454, 0
    %v461 = vsel %vm334, %v456, 0
    %463 = vmatpush.bf16.xpose.msra.mxu0 0
    %464 = vmatpush.bf16.xpose.msra.mxu0 0
    %465 = vmatpush.bf16.xpose.msra.mxu0 0
    %466 = vmatpush.bf16.xpose.msra.mxu0 0
    %467 = vmatpush.bf16.xpose.msra.mxu0 0
    %468 = vmatpush.bf16.xpose.msra.mxu0 0
    %469 = vmatpush.bf16.xpose.msra.mxu0 0
    %470 = vmatpush.bf16.xpose.msra.mxu0 %v461
    %471 = vmatmul.bf16.gmra.mxu0 %v458
    %v472 = vpop.f32.mrf.mxu0
    %v473 = vadd.f32 %v327, %v472
    %v474 = vpop.f32.mrf.mxu0
    %475 = vdwg.mxu0
    %v476 = vsel %vm354, %v473, -inf
    %477 = vmax.xlane.f32.xlu0 %v476
    %v478 = vpop.xlane.xlu0 %477
    %v479 = vsub.f32 %v473, %v478
    %v480 = vmul.f32 %v479, 1.442695
    %v481 = vpow.pop %v480
    %v482 = vsel %vm354, %v481, 0.0
    %483 = vadd.xlane.f32.xlu0 %v482
    %v484 = vpop.xlane.xlu0 %483
    %v485 = vrcp.pop %v484
    %v486 = vmul.f32 %v481, %v485
    %v487 = vpack.c.bf16 %v486, %v486
    %488 = vrot.lane.b32.xlu0 %v371, 112
    %v489 = vpop.permute.xlu0 %488
    %v492 = vsel %vm354, %v487, 0
    %494 = vmatpush.bf16.msra.mxu0 0
    %495 = vmatpush.bf16.msra.mxu0 0
    %496 = vmatpush.bf16.msra.mxu0 0
    %497 = vmatpush.bf16.msra.mxu0 0
    %498 = vmatpush.bf16.msra.mxu0 0
    %499 = vmatpush.bf16.msra.mxu0 0
    %500 = vmatpush.bf16.msra.mxu0 0
    %501 = vmatpush.bf16.msra.mxu0 %v489
    %502 = vmatmul.bf16.gmra.mxu0 %v492
    %v503 = vpop.f32.mrf.mxu0
    %v504 = vadd.f32 0.0, %v503
    %v505 = vpop.f32.mrf.mxu0
    %506 = vdwg.mxu0
    %508 = vrot.lane.b32.xlu0 %v504, 16
    %v509 = vpop.permute.xlu0 %508
    %vm511 = vcmask 195712
    %512 = vst.msk [vmem:[#allocation2] sm:$0xff] %vm511, %v509
    %513 = vrot.lane.b32.xlu0 %v392, 104
    %v514 = vpop.permute.xlu0 %513
    %515 = vrot.lane.b32.xlu0 %v333, 104
    %v516 = vpop.permute.xlu0 %515
    %v518 = vsel %vm334, %v514, 0
    %v521 = vsel %vm334, %v516, 0
    %523 = vmatpush.bf16.xpose.msra.mxu0 0
    %524 = vmatpush.bf16.xpose.msra.mxu0 0
    %525 = vmatpush.bf16.xpose.msra.mxu0 0
    %526 = vmatpush.bf16.xpose.msra.mxu0 0
    %527 = vmatpush.bf16.xpose.msra.mxu0 0
    %528 = vmatpush.bf16.xpose.msra.mxu0 0
    %529 = vmatpush.bf16.xpose.msra.mxu0 0
    %530 = vmatpush.bf16.xpose.msra.mxu0 %v521
    %531 = vmatmul.bf16.gmra.mxu0 %v518
    %v532 = vpop.f32.mrf.mxu0
    %v533 = vadd.f32 %v327, %v532
    %v534 = vpop.f32.mrf.mxu0
    %535 = vdwg.mxu0
    %v536 = vsel %vm354, %v533, -inf
    %537 = vmax.xlane.f32.xlu0 %v536
    %v538 = vpop.xlane.xlu0 %537
    %v539 = vsub.f32 %v533, %v538
    %v540 = vmul.f32 %v539, 1.442695
    %v541 = vpow.pop %v540
    %v542 = vsel %vm354, %v541, 0.0
    %543 = vadd.xlane.f32.xlu0 %v542
    %v544 = vpop.xlane.xlu0 %543
    %v545 = vrcp.pop %v544
    %v546 = vmul.f32 %v541, %v545
    %v547 = vpack.c.bf16 %v546, %v546
    %548 = vrot.lane.b32.xlu0 %v371, 104
    %v549 = vpop.permute.xlu0 %548
    %v552 = vsel %vm354, %v547, 0
    %554 = vmatpush.bf16.msra.mxu0 0
    %555 = vmatpush.bf16.msra.mxu0 0
    %556 = vmatpush.bf16.msra.mxu0 0
    %557 = vmatpush.bf16.msra.mxu0 0
    %558 = vmatpush.bf16.msra.mxu0 0
    %559 = vmatpush.bf16.msra.mxu0 0
    %560 = vmatpush.bf16.msra.mxu0 0
    %561 = vmatpush.bf16.msra.mxu0 %v549
    %562 = vmatmul.bf16.gmra.mxu0 %v552
    %v563 = vpop.f32.mrf.mxu0
    %v564 = vadd.f32 0.0, %v563
    %v565 = vpop.f32.mrf.mxu0
    %566 = vdwg.mxu0
    %568 = vrot.lane.b32.xlu0 %v564, 24
    %v569 = vpop.permute.xlu0 %568
    %vm571 = vcmask 261312
    %572 = vst.msk [vmem:[#allocation2] sm:$0xff] %vm571, %v569
    %s573 = scalar_lea.vmem %s4, 1
    %v574 = vld [vmem:[%s573] sm:$0x1]
    %v576 = vperm.slane %v574, 0
    %v580 = vunpack.c.l.b16 %v277
    %v581 = vunpack.c.l.b16 %v278
    %v582 = vpack.c.b16 %v581, %v580
    %v584 = vsel %vm334, %v232, 0
    %v587 = vsel %vm334, %v582, 0
    %589 = vmatpush.bf16.xpose.msra.mxu0 0
    %590 = vmatpush.bf16.xpose.msra.mxu0 0
    %591 = vmatpush.bf16.xpose.msra.mxu0 0
    %592 = vmatpush.bf16.xpose.msra.mxu0 0
    %593 = vmatpush.bf16.xpose.msra.mxu0 0
    %594 = vmatpush.bf16.xpose.msra.mxu0 0
    %595 = vmatpush.bf16.xpose.msra.mxu0 0
    %596 = vmatpush.bf16.xpose.msra.mxu0 %v587
    %597 = vmatmul.bf16.gmra.mxu0 %v584
    %v598 = vpop.f32.mrf.mxu0
    %v599 = vadd.f32 %v576, %v598
    %v600 = vpop.f32.mrf.mxu0
    %601 = vdwg.mxu0
    %v602 = vsel %vm354, %v599, -inf
    %603 = vmax.xlane.f32.xlu0 %v602
    %v604 = vpop.xlane.xlu0 %603
    %v605 = vsub.f32 %v599, %v604
    %v606 = vmul.f32 %v605, 1.442695
    %v607 = vpow.pop %v606
    %v608 = vsel %vm354, %v607, 0.0
    %609 = vadd.xlane.f32.xlu0 %v608
    %v610 = vpop.xlane.xlu0 %609
    %v611 = vrcp.pop %v610
    %v612 = vmul.f32 %v607, %v611
    %v613 = vpack.c.bf16 %v612, %v612
    %v616 = vunpack.c.l.b16 %v323
    %v617 = vunpack.c.l.b16 %v324
    %v618 = vpack.c.b16 %v617, %v616
    %v621 = vsel %vm354, %v613, 0
    %623 = vmatpush.bf16.msra.mxu0 0
    %624 = vmatpush.bf16.msra.mxu0 0
    %625 = vmatpush.bf16.msra.mxu0 0
    %626 = vmatpush.bf16.msra.mxu0 0
    %627 = vmatpush.bf16.msra.mxu0 0
    %628 = vmatpush.bf16.msra.mxu0 0
    %629 = vmatpush.bf16.msra.mxu0 0
    %630 = vmatpush.bf16.msra.mxu0 %v618
    %631 = vmatmul.bf16.gmra.mxu0 %v621
    %v632 = vpop.f32.mrf.mxu0
    %v633 = vadd.f32 0.0, %v632
    %v634 = vpop.f32.mrf.mxu0
    %635 = vdwg.mxu0
    %636 = vst.msk [vmem:[#allocation2 + $0x8] sm:$0xff] %vm334, %v633
    %v638 = vunpack.c.l.b16 %v232
    %v639 = vpack.c.b16 %v638, %v638
    %640 = vrot.lane.b32.xlu0 %v639, 120
    %v641 = vpop.permute.xlu0 %640
    %642 = vrot.lane.b32.xlu0 %v582, 120
    %v643 = vpop.permute.xlu0 %642
    %v645 = vsel %vm334, %v641, 0
    %v648 = vsel %vm334, %v643, 0
    %650 = vmatpush.bf16.xpose.msra.mxu0 0
    %651 = vmatpush.bf16.xpose.msra.mxu0 0
    %652 = vmatpush.bf16.xpose.msra.mxu0 0
    %653 = vmatpush.bf16.xpose.msra.mxu0 0
    %654 = vmatpush.bf16.xpose.msra.mxu0 0
    %655 = vmatpush.bf16.xpose.msra.mxu0 0
    %656 = vmatpush.bf16.xpose.msra.mxu0 0
    %657 = vmatpush.bf16.xpose.msra.mxu0 %v648
    %658 = vmatmul.bf16.gmra.mxu0 %v645
    %v659 = vpop.f32.mrf.mxu0
    %v660 = vadd.f32 %v576, %v659
    %v661 = vpop.f32.mrf.mxu0
    %662 = vdwg.mxu0
    %v663 = vsel %vm354, %v660, -inf
    %664 = vmax.xlane.f32.xlu0 %v663
    %v665 = vpop.xlane.xlu0 %664
    %v666 = vsub.f32 %v660, %v665
    %v667 = vmul.f32 %v666, 1.442695
    %v668 = vpow.pop %v667
    %v669 = vsel %vm354, %v668, 0.0
    %670 = vadd.xlane.f32.xlu0 %v669
    %v671 = vpop.xlane.xlu0 %670
    %v672 = vrcp.pop %v671
    %v673 = vmul.f32 %v668, %v672
    %v674 = vpack.c.bf16 %v673, %v673
    %675 = vrot.lane.b32.xlu0 %v618, 120
    %v676 = vpop.permute.xlu0 %675
    %v679 = vsel %vm354, %v674, 0
    %681 = vmatpush.bf16.msra.mxu0 0
    %682 = vmatpush.bf16.msra.mxu0 0
    %683 = vmatpush.bf16.msra.mxu0 0
    %684 = vmatpush.bf16.msra.mxu0 0
    %685 = vmatpush.bf16.msra.mxu0 0
    %686 = vmatpush.bf16.msra.mxu0 0
    %687 = vmatpush.bf16.msra.mxu0 0
    %688 = vmatpush.bf16.msra.mxu0 %v676
    %689 = vmatmul.bf16.gmra.mxu0 %v679
    %v690 = vpop.f32.mrf.mxu0
    %v691 = vadd.f32 0.0, %v690
    %v692 = vpop.f32.mrf.mxu0
    %693 = vdwg.mxu0
    %695 = vrot.lane.b32.xlu0 %v691, 8
    %v696 = vpop.permute.xlu0 %695
    %698 = vst.msk [vmem:[#allocation2 + $0x8] sm:$0xff] %vm451, %v696
    %699 = vrot.lane.b32.xlu0 %v639, 112
    %v700 = vpop.permute.xlu0 %699
    %701 = vrot.lane.b32.xlu0 %v582, 112
    %v702 = vpop.permute.xlu0 %701
    %v704 = vsel %vm334, %v700, 0
    %v707 = vsel %vm334, %v702, 0
    %709 = vmatpush.bf16.xpose.msra.mxu0 0
    %710 = vmatpush.bf16.xpose.msra.mxu0 0
    %711 = vmatpush.bf16.xpose.msra.mxu0 0
    %712 = vmatpush.bf16.xpose.msra.mxu0 0
    %713 = vmatpush.bf16.xpose.msra.mxu0 0
    %714 = vmatpush.bf16.xpose.msra.mxu0 0
    %715 = vmatpush.bf16.xpose.msra.mxu0 0
    %716 = vmatpush.bf16.xpose.msra.mxu0 %v707
    %717 = vmatmul.bf16.gmra.mxu0 %v704
    %v718 = vpop.f32.mrf.mxu0
    %v719 = vadd.f32 %v576, %v718
    %v720 = vpop.f32.mrf.mxu0
    %721 = vdwg.mxu0
    %v722 = vsel %vm354, %v719, -inf
    %723 = vmax.xlane.f32.xlu0 %v722
    %v724 = vpop.xlane.xlu0 %723
    %v725 = vsub.f32 %v719, %v724
    %v726 = vmul.f32 %v725, 1.442695
    %v727 = vpow.pop %v726
    %v728 = vsel %vm354, %v727, 0.0
    %729 = vadd.xlane.f32.xlu0 %v728
    %v730 = vpop.xlane.xlu0 %729
    %v731 = vrcp.pop %v730
    %v732 = vmul.f32 %v727, %v731
    %v733 = vpack.c.bf16 %v732, %v732
    %734 = vrot.lane.b32.xlu0 %v618, 112
    %v735 = vpop.permute.xlu0 %734
    %v738 = vsel %vm354, %v733, 0
    %740 = vmatpush.bf16.msra.mxu0 0
    %741 = vmatpush.bf16.msra.mxu0 0
    %742 = vmatpush.bf16.msra.mxu0 0
    %743 = vmatpush.bf16.msra.mxu0 0
    %744 = vmatpush.bf16.msra.mxu0 0
    %745 = vmatpush.bf16.msra.mxu0 0
    %746 = vmatpush.bf16.msra.mxu0 0
    %747 = vmatpush.bf16.msra.mxu0 %v735
    %748 = vmatmul.bf16.gmra.mxu0 %v738
    %v749 = vpop.f32.mrf.mxu0
    %v750 = vadd.f32 0.0, %v749
    %v751 = vpop.f32.mrf.mxu0
    %752 = vdwg.mxu0
    %754 = vrot.lane.b32.xlu0 %v750, 16
    %v755 = vpop.permute.xlu0 %754
    %757 = vst.msk [vmem:[#allocation2 + $0x8] sm:$0xff] %vm511, %v755
    %758 = vrot.lane.b32.xlu0 %v639, 104
    %v759 = vpop.permute.xlu0 %758
    %760 = vrot.lane.b32.xlu0 %v582, 104
    %v761 = vpop.permute.xlu0 %760
    %v763 = vsel %vm334, %v759, 0
    %v766 = vsel %vm334, %v761, 0
    %768 = vmatpush.bf16.xpose.msra.mxu0 0
    %769 = vmatpush.bf16.xpose.msra.mxu0 0
    %770 = vmatpush.bf16.xpose.msra.mxu0 0
    %771 = vmatpush.bf16.xpose.msra.mxu0 0
    %772 = vmatpush.bf16.xpose.msra.mxu0 0
    %773 = vmatpush.bf16.xpose.msra.mxu0 0
    %774 = vmatpush.bf16.xpose.msra.mxu0 0
    %775 = vmatpush.bf16.xpose.msra.mxu0 %v766
    %776 = vmatmul.bf16.gmra.mxu0 %v763
    %v777 = vpop.f32.mrf.mxu0
    %v778 = vadd.f32 %v576, %v777
    %v779 = vpop.f32.mrf.mxu0
    %780 = vdwg.mxu0
    %v781 = vsel %vm354, %v778, -inf
    %782 = vmax.xlane.f32.xlu0 %v781
    %v783 = vpop.xlane.xlu0 %782
    %v784 = vsub.f32 %v778, %v783
    %v785 = vmul.f32 %v784, 1.442695
    %v786 = vpow.pop %v785
    %v787 = vsel %vm354, %v786, 0.0
    %788 = vadd.xlane.f32.xlu0 %v787
    %v789 = vpop.xlane.xlu0 %788
    %v790 = vrcp.pop %v789
    %v791 = vmul.f32 %v786, %v790
    %v792 = vpack.c.bf16 %v791, %v791
    %793 = vrot.lane.b32.xlu0 %v618, 104
    %v794 = vpop.permute.xlu0 %793
    %v797 = vsel %vm354, %v792, 0
    %799 = vmatpush.bf16.msra.mxu0 0
    %800 = vmatpush.bf16.msra.mxu0 0
    %801 = vmatpush.bf16.msra.mxu0 0
    %802 = vmatpush.bf16.msra.mxu0 0
    %803 = vmatpush.bf16.msra.mxu0 0
    %804 = vmatpush.bf16.msra.mxu0 0
    %805 = vmatpush.bf16.msra.mxu0 0
    %806 = vmatpush.bf16.msra.mxu0 %v794
    %807 = vmatmul.bf16.gmra.mxu0 %v797
    %v808 = vpop.f32.mrf.mxu0
    %v809 = vadd.f32 0.0, %v808
    %v810 = vpop.f32.mrf.mxu0
    %811 = vdwg.mxu0
    %813 = vrot.lane.b32.xlu0 %v809, 24
    %v814 = vpop.permute.xlu0 %813
    %816 = vst.msk [vmem:[#allocation2 + $0x8] sm:$0xff] %vm571, %v814
    %v817 = vld [vmem:[#allocation2] sm:$0xff]
    %v818 = vld [vmem:[#allocation2 + $0x8] sm:$0xff]
    %v819 = vpack.c.bf16 %v818, %v817
    %v820 = vld [vmem:[#allocation12] sm:$0xf]
    %v821 = vld [vmem:[#allocation12 + $0x4] sm:$0xf]
    %v822 = vld [vmem:[#allocation12 + $0x8] sm:$0xf]
    %v823 = vld [vmem:[#allocation12 + $0xc] sm:$0xf]
    %v824 = vperm.slane %v194, 3
    %v829 = vunpack.c.l.b16 %v820
    %v830 = vunpack.c.l.b16 %v821
    %v831 = vunpack.c.l.b16 %v822
    %v832 = vunpack.c.l.b16 %v823
    %v833 = vpack.c.b16 %v830, %v829
    %v834 = vpack.c.b16 %v832, %v831
    %v838 = vsel %vm213, %v819, 0
    %840 = vmatpush.bf16.msra.mxu0 0
    %841 = vmatpush.bf16.msra.mxu0 0
    %842 = vmatpush.bf16.msra.mxu0 0
    %843 = vmatpush.bf16.msra.mxu0 0
    %844 = vmatpush.bf16.msra.mxu0 0
    %845 = vmatpush.bf16.msra.mxu0 0
    %846 = vmatpush.bf16.msra.mxu0 %v834
    %847 = vmatpush.bf16.msra.mxu0 %v833
    %848 = vmatmul.bf16.gmra.mxu0 %v838
    %v849 = vpop.f32.mrf.mxu0
    %v850 = vadd.f32 %v824, %v849
    %v851 = vpop.f32.mrf.mxu0
    %v852 = vadd.f32 %v824, %v851
    %853 = vdwg.mxu0
    %v854 = vadd.f32 %v171, %v850
    %v855 = vadd.f32 %v172, %v852
    %v856 = vsel %vm213, %v854, 0.0
    %857 = vadd.xlane.f32.xlu0 %v856
    %v858 = vpop.xlane.xlu0 %857
    %v859 = vsel %vm213, %v855, 0.0
    %860 = vadd.xlane.f32.xlu0 %v859
    %v861 = vpop.xlane.xlu0 %860
    %v862 = vrcp.pop 32.0
    %v863 = vmul.f32 32.0, %v862
    %v864 = vsub.f32 1.0, %v863
    %v865 = vmul.f32 %v862, %v864
    %v866 = vadd.f32 %v862, %v865
    %vm867 = vweird.f32 %v862
    %v868 = vsel %vm867, %v862, %v866
    %v869 = vmul.f32 %v858, %v868
    %v870 = vmul.f32 %v861, %v868
    %v871 = vsub.f32 %v854, %v869
    %v872 = vsub.f32 %v855, %v870
    %v873 = vmul.f32 %v871, %v871
    %v874 = vmul.f32 %v872, %v872
    %v875 = vsel %vm213, %v873, 0.0
    %876 = vadd.xlane.f32.xlu0 %v875
    %v877 = vpop.xlane.xlu0 %876
    %v878 = vsel %vm213, %v874, 0.0
    %879 = vadd.xlane.f32.xlu0 %v878
    %v880 = vpop.xlane.xlu0 %879
    %v881 = vmul.f32 %v877, %v868
    %v882 = vmul.f32 %v880, %v868
    %v883 = vadd.f32 %v881, 1e-05
    %v884 = vadd.f32 %v882, 1e-05
    %v885 = vrsqrt.pop %v883
    %v886 = vmul.f32 %v885, %v883
    %v887 = vmul.f32 %v886, %v885
    %v888 = vmul.f32 0.5, %v887
    %v889 = vsub.f32 1.5, %v888
    %v890 = vmul.f32 %v885, %v889
    %vm891 = vweird.f32 %v883
    %vm892 = vweird.f32 %v885
    %vm893 = vmor %vm891, %vm892
    %v894 = vsel %vm893, %v885, %v890
    %v895 = vrsqrt.pop %v884
    %v896 = vmul.f32 %v895, %v884
    %v897 = vmul.f32 %v896, %v895
    %v898 = vmul.f32 0.5, %v897
    %v899 = vsub.f32 1.5, %v898
    %v900 = vmul.f32 %v895, %v899
    %vm901 = vweird.f32 %v884
    %vm902 = vweird.f32 %v895
    %vm903 = vmor %vm901, %vm902
    %v904 = vsel %vm903, %v895, %v900
    %v905 = vmul.f32 %v871, %v894
    %v906 = vmul.f32 %v872, %v904
    %v907 = vperm.slane %v194, 5
    %v908 = vmul.f32 %v905, %v907
    %v909 = vmul.f32 %v906, %v907
    %v910 = vperm.slane %v194, 6
    %v911 = vadd.f32 %v908, %v910
    %v912 = vadd.f32 %v909, %v910
    %v913 = vpack.c.bf16 %v912, %v911
    %v914 = vld [vmem:[#allocation14] sm:$0xf]
    %v915 = vld [vmem:[#allocation14 + $0x4] sm:$0xf]
    %v916 = vld [vmem:[#allocation14 + $0x8] sm:$0xf]
    %v917 = vld [vmem:[#allocation14 + $0xc] sm:$0xf]
    %v918 = vld [vmem:[%s12] sm:$0x1]
    %v920 = vperm.slane %v918, 0
    %v926 = vunpack.c.l.b16 %v914
    %v927 = vunpack.c.l.b16 %v915
    %v928 = vunpack.c.l.b16 %v916
    %v929 = vunpack.c.l.b16 %v917
    %v930 = vpack.c.b16 %v927, %v926
    %v931 = vpack.c.b16 %v929, %v928
    %v935 = vsel %vm213, %v913, 0
    %937 = vmatpush.bf16.msra.mxu0 0
    %938 = vmatpush.bf16.msra.mxu0 0
    %939 = vmatpush.bf16.msra.mxu0 0
    %940 = vmatpush.bf16.msra.mxu0 0
    %941 = vmatpush.bf16.msra.mxu0 0
    %942 = vmatpush.bf16.msra.mxu0 0
    %943 = vmatpush.bf16.msra.mxu0 %v931
    %944 = vmatpush.bf16.msra.mxu0 %v930
    %945 = vmatmul.bf16.gmra.mxu0 %v935
    %v946 = vpop.f32.mrf.mxu0
    %v947 = vadd.f32 %v920, %v946
    %v948 = vpop.f32.mrf.mxu0
    %v949 = vadd.f32 %v920, %v948
    %950 = vdwg.mxu0
    %v951 = vmax.f32 %v947, 0.0
    %v952 = vmax.f32 %v949, 0.0
    %v953 = vpack.c.bf16 %v952, %v951
    %v954 = vld [vmem:[%s10] sm:$0xf]
    %v955 = vld [vmem:[%s10 + $0x4] sm:$0xf]
    %v956 = vld [vmem:[%s10 + $0x8] sm:$0xf]
    %v957 = vld [vmem:[%s10 + $0xc] sm:$0xf]
    %v958 = vld [vmem:[%s10 + $0x10] sm:$0xf]
    %v959 = vld [vmem:[%s10 + $0x14] sm:$0xf]
    %v960 = vld [vmem:[%s10 + $0x18] sm:$0xf]
    %v961 = vld [vmem:[%s10 + $0x1c] sm:$0xf]
    %v962 = vperm.slane %v194, 4
    %v971 = vunpack.c.l.b16 %v954
    %v972 = vunpack.c.l.b16 %v955
    %v973 = vunpack.c.l.b16 %v956
    %v974 = vunpack.c.l.b16 %v957
    %v975 = vunpack.c.l.b16 %v958
    %v976 = vunpack.c.l.b16 %v959
    %v977 = vunpack.c.l.b16 %v960
    %v978 = vunpack.c.l.b16 %v961
    %v979 = vpack.c.b16 %v972, %v971
    %v980 = vpack.c.b16 %v974, %v973
    %v981 = vpack.c.b16 %v976, %v975
    %v982 = vpack.c.b16 %v978, %v977
    %vm987 = vcmask 523264
    %v989 = vsel %vm987, %v953, 0
    %991 = vmatpush.bf16.msra.mxu0 0
    %992 = vmatpush.bf16.msra.mxu0 0
    %993 = vmatpush.bf16.msra.mxu0 0
    %994 = vmatpush.bf16.msra.mxu0 0
    %995 = vmatpush.bf16.msra.mxu0 %v982
    %996 = vmatpush.bf16.msra.mxu0 %v981
    %997 = vmatpush.bf16.msra.mxu0 %v980
    %998 = vmatpush.bf16.msra.mxu0 %v979
    %999 = vmatmul.bf16.gmra.mxu0 %v989
    %v1000 = vpop.f32.mrf.mxu0
    %v1001 = vadd.f32 %v962, %v1000
    %v1002 = vpop.f32.mrf.mxu0
    %v1003 = vadd.f32 %v962, %v1002
    %1004 = vdwg.mxu0
    %v1005 = vadd.f32 %v911, %v1001
    %v1006 = vadd.f32 %v912, %v1003
    %v1007 = vsel %vm213, %v1005, 0.0
    %1008 = vadd.xlane.f32.xlu0 %v1007
    %v1009 = vpop.xlane.xlu0 %1008
    %v1010 = vsel %vm213, %v1006, 0.0
    %1011 = vadd.xlane.f32.xlu0 %v1010
    %v1012 = vpop.xlane.xlu0 %1011
    %v1013 = vmul.f32 %v1009, %v868
    %v1014 = vmul.f32 %v1012, %v868
    %v1015 = vsub.f32 %v1005, %v1013
    %v1016 = vsub.f32 %v1006, %v1014
    %v1017 = vmul.f32 %v1015, %v1015
    %v1018 = vmul.f32 %v1016, %v1016
    %v1019 = vsel %vm213, %v1017, 0.0
    %1020 = vadd.xlane.f32.xlu0 %v1019
    %v1021 = vpop.xlane.xlu0 %1020
    %v1022 = vsel %vm213, %v1018, 0.0
    %1023 = vadd.xlane.f32.xlu0 %v1022
    %v1024 = vpop.xlane.xlu0 %1023
    %v1025 = vmul.f32 %v1021, %v868
    %v1026 = vmul.f32 %v1024, %v868
    %v1027 = vadd.f32 %v1025, 1e-05
    %v1028 = vadd.f32 %v1026, 1e-05
    %v1029 = vrsqrt.pop %v1027
    %v1030 = vmul.f32 %v1029, %v1027
    %v1031 = vmul.f32 %v1030, %v1029
    %v1032 = vmul.f32 0.5, %v1031
    %v1033 = vsub.f32 1.5, %v1032
    %v1034 = vmul.f32 %v1029, %v1033
    %vm1035 = vweird.f32 %v1027
    %vm1036 = vweird.f32 %v1029
    %vm1037 = vmor %vm1035, %vm1036
    %v1038 = vsel %vm1037, %v1029, %v1034
    %v1039 = vrsqrt.pop %v1028
    %v1040 = vmul.f32 %v1039, %v1028
    %v1041 = vmul.f32 %v1040, %v1039
    %v1042 = vmul.f32 0.5, %v1041
    %v1043 = vsub.f32 1.5, %v1042
    %v1044 = vmul.f32 %v1039, %v1043
    %vm1045 = vweird.f32 %v1028
    %vm1046 = vweird.f32 %v1039
    %vm1047 = vmor %vm1045, %vm1046
    %v1048 = vsel %vm1047, %v1039, %v1044
    %v1049 = vmul.f32 %v1015, %v1038
    %v1050 = vmul.f32 %v1016, %v1048
    %v1051 = vperm.slane %v194, 7
    %v1052 = vmul.f32 %v1049, %v1051
    %v1053 = vmul.f32 %v1050, %v1051
    %v1054 = vperm.slane %v195, 0
    %v1055 = vadd.f32 %v1052, %v1054
    %v1056 = vadd.f32 %v1053, %v1054
    %v1057 = vsel %vm213, %v1055, 0.0
    %1058 = vadd.xlane.f32.xlu0 %v1057
    %v1059 = vpop.xlane.xlu0 %1058
    %v1060 = vsel %vm213, %v1056, 0.0
    %1061 = vadd.xlane.f32.xlu0 %v1060
    %v1062 = vpop.xlane.xlu0 %1061
    %v1063 = vmul.f32 %v1059, %v868
    %v1064 = vmul.f32 %v1062, %v868
    %v1065 = vsub.f32 %v1055, %v1063
    %v1066 = vsub.f32 %v1056, %v1064
    %v1067 = vmul.f32 %v1065, %v1065
    %v1068 = vmul.f32 %v1066, %v1066
    %v1069 = vsel %vm213, %v1067, 0.0
    %1070 = vadd.xlane.f32.xlu0 %v1069
    %v1071 = vpop.xlane.xlu0 %1070
    %v1072 = vsel %vm213, %v1068, 0.0
    %1073 = vadd.xlane.f32.xlu0 %v1072
    %v1074 = vpop.xlane.xlu0 %1073
    %v1075 = vmul.f32 %v1071, %v868
    %v1076 = vmul.f32 %v1074, %v868
    %v1077 = vadd.f32 %v1075, 1e-05
    %v1078 = vadd.f32 %v1076, 1e-05
    %v1079 = vrsqrt.pop %v1077
    %v1080 = vmul.f32 %v1079, %v1077
    %v1081 = vmul.f32 %v1080, %v1079
    %v1082 = vmul.f32 0.5, %v1081
    %v1083 = vsub.f32 1.5, %v1082
    %v1084 = vmul.f32 %v1079, %v1083
    %vm1085 = vweird.f32 %v1077
    %vm1086 = vweird.f32 %v1079
    %vm1087 = vmor %vm1085, %vm1086
    %v1088 = vsel %vm1087, %v1079, %v1084
    %v1089 = vrsqrt.pop %v1078
    %v1090 = vmul.f32 %v1089, %v1078
    %v1091 = vmul.f32 %v1090, %v1089
    %v1092 = vmul.f32 0.5, %v1091
    %v1093 = vsub.f32 1.5, %v1092
    %v1094 = vmul.f32 %v1089, %v1093
    %vm1095 = vweird.f32 %v1078
    %vm1096 = vweird.f32 %v1089
    %vm1097 = vmor %vm1095, %vm1096
    %v1098 = vsel %vm1097, %v1089, %v1094
    %v1099 = vmul.f32 %v1065, %v1088
    %v1100 = vmul.f32 %v1066, %v1098
    %v1101 = vperm.slane %v195, 1
    %v1102 = vmul.f32 %v1099, %v1101
    %v1103 = vmul.f32 %v1100, %v1101
    %v1104 = vperm.slane %v195, 2
    %v1105 = vadd.f32 %v1102, %v1104
    %v1106 = vadd.f32 %v1103, %v1104
    %1107 = vst.msk [vmem:[#allocation17] sm:$0xff] %vm213, %v1105
    %1108 = vst.msk [vmem:[#allocation17 + $0x8] sm:$0xff] %vm213, %v1106
    // Predicated region
    $region86: #{tpu_custom_call.1} parent=1 // pred_check
      _
    $region87: #{tpu_custom_call.1} parent=1 // pred_check_branch
      %1110 = sbr.rel (0) target = $region89
    $region88: #{tpu_custom_call.1} parent=1 // pred_region
      %1112 = vsyncadd [#allocation5], 0
      %s1113 = sshll.u32 [#allocation17], 4
      %s1114 = int_to_ptr.vmem [resolvable:$true] %s1113
      %s1115 = sshll.u32 %s13, 4
      %s1116 = int_to_ptr.hbm [resolvable:$true] %s1115
      %1121 = dma.vmem_to_hbm [thread:$0]  %s1114, 256, %s1116, [#allocation5], 128, 128, 8
    $region89: #{tpu_custom_call.1} parent=1 // pred_fallthru
      _
    // Predicated region
    $region90: #{tpu_custom_call.1} parent=1 // pred_check
      _
    $region91: #{tpu_custom_call.1} parent=1 // pred_check_branch
      %1123 = sbr.rel (0) target = $region93
    $region92: #{tpu_custom_call.1} parent=1 // pred_region
      %1125 = dma.done [#allocation5], 256
    $region93: #{tpu_custom_call.1} parent=1 // pred_fallthru
      _
    %1126 = vsyncpa [#allocation4], 1
    %1127 = vsyncpa [#allocation7], 1
    %1128 = vsyncpa [#allocation10], 1
    %1129 = vsyncpa [#allocation13], 1
    %1130 = vsyncpa [#allocation16], 1
    %1131 = vsyncpa [#allocation5], 1

// kernel: tpu_custom_call.1
$region0: #{tpu_custom_call.1}
  #allocation0 [shape = 'u32[]', space=smem, size = 0x4, offset = 0x4, fixed_abs, tag = 'smem constant byte address 0x4 - core index']
  #allocation1 [shape = 'u32[72,128]{1,0:T(1,128)}', space=vmem, size = 0x9000, scoped, tag = 'internal scratch']
  #allocation2 [shape = 'f32[16,32]{1,0:T(8,128)}', space=vmem, size = 0x2000, scoped, tag = 'scratch operand']
  %s0 = inlined_call_operand.vmem [shape: f32[16,32], index: 0, kind: input, shape index: {}]
  %s1 = inlined_call_operand.hbm [shape: f32[16,32], index: 1, kind: input, shape index: {}]
  %s2 = inlined_call_operand.vmem [shape: f32[32,32], index: 2, kind: input, shape index: {}]
  %s3 = inlined_call_operand.hbm [shape: f32[32,32], index: 3, kind: input, shape index: {}]
  %s4 = inlined_call_operand.vmem [shape: f32[2,1,16], index: 4, kind: input, shape index: {}]
  %s5 = inlined_call_operand.hbm [shape: bf16[32,32], index: 5, kind: input, shape index: {}]
  %s6 = inlined_call_operand.hbm [shape: bf16[32,32], index: 6, kind: input, shape index: {}]
  %s7 = inlined_call_operand.hbm [shape: bf16[32,32], index: 7, kind: input, shape index: {}]
  %s8 = inlined_call_operand.hbm [shape: bf16[32,32], index: 8, kind: input, shape index: {}]
  %s9 = inlined_call_operand.hbm [shape: bf16[32,64], index: 9, kind: input, shape index: {}]
  %s10 = inlined_call_operand.vmem [shape: bf16[64,32], index: 10, kind: input, shape index: {}]
  %s11 = inlined_call_operand.hbm [shape: f32[11,32], index: 11, kind: input, shape index: {}]
  %s12 = inlined_call_operand.vmem [shape: f32[1,64], index: 12, kind: input, shape index: {}]
  %s13 = inlined_call_operand.hbm [shape: f32[16,32], index: 13, kind: output, shape index: {}]
  %s14 = sld [smem:[#allocation0]]
  $region94: #{tpu_custom_call.1} parent=0
    _
  %s16 = ssub.s32 1, %s14
  %s17 = scalar_select 0, %s16, %s14
  $region1: #{tpu_custom_call.1} parent=0
    #allocation3 [shape = 'u8[8192]{0}', space=vmem, size = 0x2000, scoped, tag = 'input window, operand 1, single buffered']
    #allocation4 [shape = 's32[1]{0}', space=sflag, size = 0x4, scoped, tag = 'scoped memory for tpu_custom_call.1']
    #allocation5 [shape = 's32[1]{0}', space=sflag, size = 0x4, scoped, tag = 'scoped memory for tpu_custom_call.1']
    #allocation6 [shape = 'u8[16384]{0}', space=vmem, size = 0x4000, scoped, tag = 'input window, operand 3, single buffered']
    #allocation7 [shape = 's32[1]{0}', space=sflag, size = 0x4, scoped, tag = 'scoped memory for tpu_custom_call.1']
    #allocation8 [shape = 'u8[8192]{0}', space=vmem, size = 0x2000, scoped, tag = 'input window, operand 5, single buffered']
    #allocation9 [shape = 'u8[8192]{0}', space=vmem, size = 0x2000, scoped, tag = 'input window, operand 6, single buffered']
    #allocation10 [shape = 's32[1]{0}', space=sflag, size = 0x4, scoped, tag = 'scoped memory for tpu_custom_call.1']
    #allocation11 [shape = 'u8[8192]{0}', space=vmem, size = 0x2000, scoped, tag = 'input window, operand 7, single buffered']
    #allocation12 [shape = 'u8[8192]{0}', space=vmem, size = 0x2000, scoped, tag = 'input window, operand 8, single buffered']
    #allocation13 [shape = 's32[1]{0}', space=sflag, size = 0x4, scoped, tag = 'scoped memory for tpu_custom_call.1']
    #allocation14 [shape = 'u8[8192]{0}', space=vmem, size = 0x2000, scoped, tag = 'input window, operand 9, single buffered']
    #allocation15 [shape = 'u8[8192]{0}', space=vmem, size = 0x2000, scoped, tag = 'input window, operand 11, single buffered']
    #allocation16 [shape = 's32[1]{0}', space=sflag, size = 0x4, scoped, tag = 'scoped memory for tpu_custom_call.1']
    #allocation17 [shape = 'u8[8192]{0}', space=vmem, size = 0x2000, scoped, tag = 'output window, operand 0, single buffered']
    %18 = vsyncpa [#allocation4], 0
    %19 = vsyncpa [#allocation7], 0
    %20 = vsyncpa [#allocation10], 0
    %21 = vsyncpa [#allocation13], 0
    %22 = vsyncpa [#allocation16], 0
    %23 = vsyncpa [#allocation5], 0
    // Predicated region
    $region2: #{tpu_custom_call.1} parent=1 // pred_check
      _
    $region3: #{tpu_custom_call.1} parent=1 // pred_check_branch
      %25 = sbr.rel (0) target = $region5
    $region4: #{tpu_custom_call.1} parent=1 // pred_region
      _
    $region5: #{tpu_custom_call.1} parent=1 // pred_fallthru
      _
    // Predicated region
    $region6: #{tpu_custom_call.1} parent=1 // pred_check
      _
    $region7: #{tpu_custom_call.1} parent=1 // pred_check_branch
      %27 = sbr.rel (0) target = $region9
    $region8: #{tpu_custom_call.1} parent=1 // pred_region
      %29 = vsyncadd [#allocation4], 0
      %s30 = sshll.u32 %s1, 4
      %s31 = int_to_ptr.hbm [resolvable:$true] %s30
      %s32 = sshll.u32 [#allocation3], 4
      %s33 = int_to_ptr.vmem [resolvable:$true] %s32
      %38 = dma.hbm_to_vmem [thread:$0]  %s31, 256, %s33, [#allocation4], 128, 128, 8
    $region9: #{tpu_custom_call.1} parent=1 // pred_fallthru
      _
    // Predicated region
    $region10: #{tpu_custom_call.1} parent=1 // pred_check
      _
    $region11: #{tpu_custom_call.1} parent=1 // pred_check_branch
      %40 = sbr.rel (0) target = $region13
    $region12: #{tpu_custom_call.1} parent=1 // pred_region
      _
    $region13: #{tpu_custom_call.1} parent=1 // pred_fallthru
      _
    // Predicated region
    $region14: #{tpu_custom_call.1} parent=1 // pred_check
      _
    $region15: #{tpu_custom_call.1} parent=1 // pred_check_branch
      %42 = sbr.rel (0) target = $region17
    $region16: #{tpu_custom_call.1} parent=1 // pred_region
      %44 = vsyncadd [#allocation7], 0
      %s45 = sshll.u32 %s3, 4
      %s46 = int_to_ptr.hbm [resolvable:$true] %s45
      %s47 = sshll.u32 [#allocation6], 4
      %s48 = int_to_ptr.vmem [resolvable:$true] %s47
      %53 = dma.hbm_to_vmem [thread:$0]  %s46, 512, %s48, [#allocation7], 128, 128, 8
    $region17: #{tpu_custom_call.1} parent=1 // pred_fallthru
      _
    // Predicated region
    $region18: #{tpu_custom_call.1} parent=1 // pred_check
      _
    $region19: #{tpu_custom_call.1} parent=1 // pred_check_branch
      %55 = sbr.rel (0) target = $region21
    $region20: #{tpu_custom_call.1} parent=1 // pred_region
      _
    $region21: #{tpu_custom_call.1} parent=1 // pred_fallthru
      _
    // Predicated region
    $region22: #{tpu_custom_call.1} parent=1 // pred_check
      _
    $region23: #{tpu_custom_call.1} parent=1 // pred_check_branch
      %57 = sbr.rel (0) target = $region25
    $region24: #{tpu_custom_call.1} parent=1 // pred_region
      %59 = vsyncadd [#allocation7], 0
      %s60 = sshll.u32 %s5, 4
      %s61 = int_to_ptr.hbm [resolvable:$true] %s60
      %s62 = sshll.u32 [#allocation8], 4
      %s63 = int_to_ptr.vmem [resolvable:$true] %s62
      %68 = dma.hbm_to_vmem [thread:$0]  %s61, 256, %s63, [#allocation7], 64, 64, 4
    $region25: #{tpu_custom_call.1} parent=1 // pred_fallthru
      _
    // Predicated region
    $region26: #{tpu_custom_call.1} parent=1 // pred_check
      _
    $region27: #{tpu_custom_call.1} parent=1 // pred_check_branch
      %70 = sbr.rel (0) target = $region29
    $region28: #{tpu_custom_call.1} parent=1 // pred_region
      %72 = vsyncadd [#allocation10], 0
      %s73 = sshll.u32 %s6, 4
      %s74 = int_to_ptr.hbm [resolvable:$true] %s73
      %s75 = sshll.u32 [#allocation9], 4
      %s76 = int_to_ptr.vmem [resolvable:$true] %s75
      %81 = dma.hbm_to_vmem [thread:$0]  %s74, 256, %s76, [#allocation10], 64, 64, 4
    $region29: #{tpu_custom_call.1} parent=1 // pred_fallthru
      _
    // Predicated region
    $region30: #{tpu_custom_call.1} parent=1 // pred_check
      _
    $region31: #{tpu_custom_call.1} parent=1 // pred_check_branch
      %83 = sbr.rel (0) target = $region33
    $region32: #{tpu_custom_call.1} parent=1 // pred_region
      %85 = vsyncadd [#allocation10], 0
      %s86 = sshll.u32 %s7, 4
      %s87 = int_to_ptr.hbm [resolvable:$true] %s86
      %s88 = sshll.u32 [#allocation11], 4
      %s89 = int_to_ptr.vmem [resolvable:$true] %s88
      %94 = dma.hbm_to_vmem [thread:$0]  %s87, 256, %s89, [#allocation10], 64, 64, 4
    $region33: #{tpu_custom_call.1} parent=1 // pred_fallthru
      _
    // Predicated region
    $region34: #{tpu_custom_call.1} parent=1 // pred_check
      _
    $region35: #{tpu_custom_call.1} parent=1 // pred_check_branch
      %96 = sbr.rel (0) target = $region37
    $region36: #{tpu_custom_call.1} parent=1 // pred_region
      %98 = vsyncadd [#allocation13], 0
      %s99 = sshll.u32 %s8, 4
      %s100 = int_to_ptr.hbm [resolvable:$true] %s99
      %s101 = sshll.u32 [#allocation12], 4
      %s102 = int_to_ptr.vmem [resolvable:$true] %s101
      %107 = dma.hbm_to_vmem [thread:$0]  %s100, 256, %s102, [#allocation13], 64, 64, 4
    $region37: #{tpu_custom_call.1} parent=1 // pred_fallthru
      _
    // Predicated region
    $region38: #{tpu_custom_call.1} parent=1 // pred_check
      _
    $region39: #{tpu_custom_call.1} parent=1 // pred_check_branch
      %109 = sbr.rel (0) target = $region41
    $region40: #{tpu_custom_call.1} parent=1 // pred_region
      %111 = vsyncadd [#allocation13], 0
      %s112 = sshll.u32 %s9, 4
      %s113 = int_to_ptr.hbm [resolvable:$true] %s112
      %s114 = sshll.u32 [#allocation14], 4
      %s115 = int_to_ptr.vmem [resolvable:$true] %s114
      %120 = dma.hbm_to_vmem [thread:$0]  %s113, 256, %s115, [#allocation13], 64, 64, 4
    $region41: #{tpu_custom_call.1} parent=1 // pred_fallthru
      _
    // Predicated region
    $region42: #{tpu_custom_call.1} parent=1 // pred_check
      _
    $region43: #{tpu_custom_call.1} parent=1 // pred_check_branch
      %122 = sbr.rel (0) target = $region45
    $region44: #{tpu_custom_call.1} parent=1 // pred_region
      _
    $region45: #{tpu_custom_call.1} parent=1 // pred_fallthru
      _
    // Predicated region
    $region46: #{tpu_custom_call.1} parent=1 // pred_check
      _
    $region47: #{tpu_custom_call.1} parent=1 // pred_check_branch
      %124 = sbr.rel (0) target = $region49
    $region48: #{tpu_custom_call.1} parent=1 // pred_region
      %126 = vsyncadd [#allocation16], 0
      %s127 = sshll.u32 %s11, 4
      %s128 = int_to_ptr.hbm [resolvable:$true] %s127
      %s129 = sshll.u32 [#allocation15], 4
      %s130 = int_to_ptr.vmem [resolvable:$true] %s129
      %135 = dma.hbm_to_vmem [thread:$0]  %s128, 256, %s130, [#allocation16], 128, 128, 8
    $region49: #{tpu_custom_call.1} parent=1 // pred_fallthru
      _
    // Predicated region
    $region50: #{tpu_custom_call.1} parent=1 // pred_check
      _
    $region51: #{tpu_custom_call.1} parent=1 // pred_check_branch
      %137 = sbr.rel (0) target = $region53
    $region52: #{tpu_custom_call.1} parent=1 // pred_region
      _
    $region53: #{tpu_custom_call.1} parent=1 // pred_fallthru
      _
    // Predicated region
    $region54: #{tpu_custom_call.1} parent=1 // pred_check
      _
    $region55: #{tpu_custom_call.1} parent=1 // pred_check_branch
      %139 = sbr.rel (0) target = $region57
    $region56: #{tpu_custom_call.1} parent=1 // pred_region
      %141 = dma.done [#allocation4], 256
    $region57: #{tpu_custom_call.1} parent=1 // pred_fallthru
      _
    // Predicated region
    $region58: #{tpu_custom_call.1} parent=1 // pred_check
      _
    $region59: #{tpu_custom_call.1} parent=1 // pred_check_branch
      %143 = sbr.rel (0) target = $region61
    $region60: #{tpu_custom_call.1} parent=1 // pred_region
      %145 = dma.done [#allocation7], 512
    $region61: #{tpu_custom_call.1} parent=1 // pred_fallthru
      _
    // Predicated region
    $region62: #{tpu_custom_call.1} parent=1 // pred_check
      _
    $region63: #{tpu_custom_call.1} parent=1 // pred_check_branch
      %147 = sbr.rel (0) target = $region65
    $region64: #{tpu_custom_call.1} parent=1 // pred_region
      %149 = dma.done [#allocation7], 256
    $region65: #{tpu_custom_call.1} parent=1 // pred_fallthru
      _
    // Predicated region
    $region66: #{tpu_custom_call.1} parent=1 // pred_check
      _
    $region67: #{tpu_custom_call.1} parent=1 // pred_check_branch
      %151 = sbr.rel (0) target = $region69
    $region68: #{tpu_custom_call.1} parent=1 // pred_region
      %153 = dma.done [#allocation10], 256
    $region69: #{tpu_custom_call.1} parent=1 // pred_fallthru
      _
    // Predicated region
    $region70: #{tpu_custom_call.1} parent=1 // pred_check
      _
    $region71: #{tpu_custom_call.1} parent=1 // pred_check_branch
      %155 = sbr.rel (0) target = $region73
    $region72: #{tpu_custom_call.1} parent=1 // pred_region
      %157 = dma.done [#allocation10], 256
    $region73: #{tpu_custom_call.1} parent=1 // pred_fallthru
      _
    // Predicated region
    $region74: #{tpu_custom_call.1} parent=1 // pred_check
      _
    $region75: #{tpu_custom_call.1} parent=1 // pred_check_branch
      %159 = sbr.rel (0) target = $region77
    $region76: #{tpu_custom_call.1} parent=1 // pred_region
      %161 = dma.done [#allocation13], 256
    $region77: #{tpu_custom_call.1} parent=1 // pred_fallthru
      _
    // Predicated region
    $region78: #{tpu_custom_call.1} parent=1 // pred_check
      _
    $region79: #{tpu_custom_call.1} parent=1 // pred_check_branch
      %163 = sbr.rel (0) target = $region81
    $region80: #{tpu_custom_call.1} parent=1 // pred_region
      %165 = dma.done [#allocation13], 256
    $region81: #{tpu_custom_call.1} parent=1 // pred_fallthru
      _
    // Predicated region
    $region82: #{tpu_custom_call.1} parent=1 // pred_check
      _
    $region83: #{tpu_custom_call.1} parent=1 // pred_check_branch
      %167 = sbr.rel (0) target = $region85
    $region84: #{tpu_custom_call.1} parent=1 // pred_region
      %169 = dma.done [#allocation16], 256
    $region85: #{tpu_custom_call.1} parent=1 // pred_fallthru
      _
    %v171 = vld [vmem:[%s0] sm:$0xff]
    %v172 = vld [vmem:[%s0 + $0x8] sm:$0xff]
    %v173 = vld [vmem:[#allocation3] sm:$0xff]
    %v174 = vld [vmem:[#allocation3 + $0x8] sm:$0xff]
    %v175 = vadd.f32 %v171, %v173
    %v176 = vadd.f32 %v172, %v174
    %v177 = vpack.c.bf16 %v176, %v175
    %v178 = vld [vmem:[%s2] sm:$0xff]
    %v179 = vld [vmem:[%s2 + $0x8] sm:$0xff]
    %v180 = vld [vmem:[%s2 + $0x10] sm:$0xff]
    %v181 = vld [vmem:[%s2 + $0x18] sm:$0xff]
    %v182 = vld [vmem:[#allocation6] sm:$0xff]
    %v183 = vld [vmem:[#allocation6 + $0x8] sm:$0xff]
    %v184 = vld [vmem:[#allocation6 + $0x10] sm:$0xff]
    %v185 = vld [vmem:[#allocation6 + $0x18] sm:$0xff]
    %v186 = vadd.f32 %v178, %v182
    %v187 = vadd.f32 %v179, %v183
    %v188 = vadd.f32 %v180, %v184
    %v189 = vadd.f32 %v181, %v185
    %v190 = vpack.c.bf16 %v187, %v186
    %v191 = vpack.c.bf16 %v189, %v188
    %v192 = vpack.c.bf16 %v179, %v178
    %v193 = vpack.c.bf16 %v181, %v180
    %v194 = vld [vmem:[#allocation15] sm:$0xff]
    %v195 = vld [vmem:[#allocation15 + $0x8] sm:$0x7]
    %v196 = vld [vmem:[#allocation8] sm:$0xf]
    %v197 = vld [vmem:[#allocation8 + $0x4] sm:$0xf]
    %v198 = vld [vmem:[#allocation8 + $0x8] sm:$0xf]
    %v199 = vld [vmem:[#allocation8 + $0xc] sm:$0xf]
    %v200 = vperm.slane %v194, 0
    %v205 = vunpack.c.l.b16 %v196
    %v206 = vunpack.c.l.b16 %v197
    %v207 = vunpack.c.l.b16 %v198
    %v208 = vunpack.c.l.b16 %v199
    %v209 = vpack.c.b16 %v206, %v205
    %v210 = vpack.c.b16 %v208, %v207
    %vm213 = vcmask 261120
    %v215 = vsel %vm213, %v177, 0
    %217 = vmatpush.bf16.msra.mxu0 0
    %218 = vmatpush.bf16.msra.mxu0 0
    %219 = vmatpush.bf16.msra.mxu0 0
    %220 = vmatpush.bf16.msra.mxu0 0
    %221 = vmatpush.bf16.msra.mxu0 0
    %222 = vmatpush.bf16.msra.mxu0 0
    %223 = vmatpush.bf16.msra.mxu0 %v210
    %224 = vmatpush.bf16.msra.mxu0 %v209
    %225 = vmatmul.bf16.gmra.mxu0 %v215
    %v226 = vpop.f32.mrf.mxu0
    %v227 = vadd.f32 %v200, %v226
    %v228 = vpop.f32.mrf.mxu0
    %v229 = vadd.f32 %v200, %v228
    %230 = vdwg.mxu0
    %v231 = vpack.c.bf16 %v227, %v227
    %v232 = vpack.c.bf16 %v229, %v229
    %v233 = vld [vmem:[#allocation9] sm:$0xf]
    %v234 = vld [vmem:[#allocation9 + $0x4] sm:$0xf]
    %v235 = vld [vmem:[#allocation9 + $0x8] sm:$0xf]
    %v236 = vld [vmem:[#allocation9 + $0xc] sm:$0xf]
    %v237 = vperm.slane %v194, 1
    %v242 = vunpack.c.l.b16 %v233
    %v243 = vunpack.c.l.b16 %v234
    %v244 = vunpack.c.l.b16 %v235
    %v245 = vunpack.c.l.b16 %v236
    %v246 = vpack.c.b16 %v243, %v242
    %v247 = vpack.c.b16 %v245, %v244
    %v251 = vsel %vm213, %v190, 0
    %v254 = vsel %vm213, %v191, 0
    %256 = vmatpush.bf16.msra.mxu0 0
    %257 = vmatpush.bf16.msra.mxu0 0
    %258 = vmatpush.bf16.msra.mxu0 0
    %259 = vmatpush.bf16.msra.mxu0 0
    %260 = vmatpush.bf16.msra.mxu0 0
    %261 = vmatpush.bf16.msra.mxu0 0
    %262 = vmatpush.bf16.msra.mxu0 %v247
    %263 = vmatpush.bf16.msra.mxu0 %v246
    %264 = vmatmul.bf16.gmra.mxu0 %v251
    %v265 = vpop.f32.mrf.mxu0
    %v266 = vadd.f32 %v237, %v265
    %v267 = vpop.f32.mrf.mxu0
    %v268 = vadd.f32 %v237, %v267
    %269 = vmatmul.bf16.gmra.mxu0 %v254
    %v270 = vpop.f32.mrf.mxu0
    %v271 = vadd.f32 %v237, %v270
    %v272 = vpop.f32.mrf.mxu0
    %v273 = vadd.f32 %v237, %v272
    %274 = vdwg.mxu0
    %v275 = vpack.c.bf16 %v266, %v266
    %v276 = vpack.c.bf16 %v268, %v268
    %v277 = vpack.c.bf16 %v271, %v271
    %v278 = vpack.c.bf16 %v273, %v273
    %v279 = vld [vmem:[#allocation11] sm:$0xf]
    %v280 = vld [vmem:[#allocation11 + $0x4] sm:$0xf]
    %v281 = vld [vmem:[#allocation11 + $0x8] sm:$0xf]
    %v282 = vld [vmem:[#allocation11 + $0xc] sm:$0xf]
    %v283 = vperm.slane %v194, 2
    %v288 = vunpack.c.l.b16 %v279
    %v289 = vunpack.c.l.b16 %v280
    %v290 = vunpack.c.l.b16 %v281
    %v291 = vunpack.c.l.b16 %v282
    %v292 = vpack.c.b16 %v289, %v288
    %v293 = vpack.c.b16 %v291, %v290
    %v297 = vsel %vm213, %v192, 0
    %v300 = vsel %vm213, %v193, 0
    %302 = vmatpush.bf16.msra.mxu0 0
    %303 = vmatpush.bf16.msra.mxu0 0
    %304 = vmatpush.bf16.msra.mxu0 0
    %305 = vmatpush.bf16.msra.mxu0 0
    %306 = vmatpush.bf16.msra.mxu0 0
    %307 = vmatpush.bf16.msra.mxu0 0
    %308 = vmatpush.bf16.msra.mxu0 %v293
    %309 = vmatpush.bf16.msra.mxu0 %v292
    %310 = vmatmul.bf16.gmra.mxu0 %v297
    %v311 = vpop.f32.mrf.mxu0
    %v312 = vadd.f32 %v283, %v311
    %v313 = vpop.f32.mrf.mxu0
    %v314 = vadd.f32 %v283, %v313
    %315 = vmatmul.bf16.gmra.mxu0 %v300
    %v316 = vpop.f32.mrf.mxu0
    %v317 = vadd.f32 %v283, %v316
    %v318 = vpop.f32.mrf.mxu0
    %v319 = vadd.f32 %v283, %v318
    %320 = vdwg.mxu0
    %v321 = vpack.c.bf16 %v312, %v312
    %v322 = vpack.c.bf16 %v314, %v314
    %v323 = vpack.c.bf16 %v317, %v317
    %v324 = vpack.c.bf16 %v319, %v319
    %v325 = vld [vmem:[%s4] sm:$0x1]
    %v327 = vperm.slane %v325, 0
    %v331 = vunpack.c.l.b16 %v275
    %v332 = vunpack.c.l.b16 %v276
    %v333 = vpack.c.b16 %v332, %v331
    %vm334 = vcmask 64512
    %v336 = vsel %vm334, %v231, 0
    %v339 = vsel %vm334, %v333, 0
    %341 = vmatpush.bf16.xpose.msra.mxu0 0
    %342 = vmatpush.bf16.xpose.msra.mxu0 0
    %343 = vmatpush.bf16.xpose.msra.mxu0 0
    %344 = vmatpush.bf16.xpose.msra.mxu0 0
    %345 = vmatpush.bf16.xpose.msra.mxu0 0
    %346 = vmatpush.bf16.xpose.msra.mxu0 0
    %347 = vmatpush.bf16.xpose.msra.mxu0 0
    %348 = vmatpush.bf16.xpose.msra.mxu0 %v339
    %349 = vmatmul.bf16.gmra.mxu0 %v336
    %v350 = vpop.f32.mrf.mxu0
    %v351 = vadd.f32 %v327, %v350
    %v352 = vpop.f32.mrf.mxu0
    %353 = vdwg.mxu0
    %vm354 = vcmask 130048
    %v355 = vsel %vm354, %v351, -inf
    %356 = vmax.xlane.f32.xlu0 %v355
    %v357 = vpop.xlane.xlu0 %356
    %v358 = vsub.f32 %v351, %v357
    %v359 = vmul.f32 %v358, 1.442695
    %v360 = vpow.pop %v359
    %v361 = vsel %vm354, %v360, 0.0
    %362 = vadd.xlane.f32.xlu0 %v361
    %v363 = vpop.xlane.xlu0 %362
    %v364 = vrcp.pop %v363
    %v365 = vmul.f32 %v360, %v364
    %v366 = vpack.c.bf16 %v365, %v365
    %v369 = vunpack.c.l.b16 %v321
    %v370 = vunpack.c.l.b16 %v322
    %v371 = vpack.c.b16 %v370, %v369
    %v374 = vsel %vm354, %v366, 0
    %376 = vmatpush.bf16.msra.mxu0 0
    %377 = vmatpush.bf16.msra.mxu0 0
    %378 = vmatpush.bf16.msra.mxu0 0
    %379 = vmatpush.bf16.msra.mxu0 0
    %380 = vmatpush.bf16.msra.mxu0 0
    %381 = vmatpush.bf16.msra.mxu0 0
    %382 = vmatpush.bf16.msra.mxu0 0
    %383 = vmatpush.bf16.msra.mxu0 %v371
    %384 = vmatmul.bf16.gmra.mxu0 %v374
    %v385 = vpop.f32.mrf.mxu0
    %v386 = vadd.f32 0.0, %v385
    %v387 = vpop.f32.mrf.mxu0
    %388 = vdwg.mxu0
    %389 = vst.msk [vmem:[#allocation2] sm:$0xff] %vm334, %v386
    %v391 = vunpack.c.l.b16 %v231
    %v392 = vpack.c.b16 %v391, %v391
    %393 = vrot.lane.b32.xlu0 %v392, 120
    %v394 = vpop.permute.xlu0 %393
    %395 = vrot.lane.b32.xlu0 %v333, 120
    %v396 = vpop.permute.xlu0 %395
    %v398 = vsel %vm334, %v394, 0
    %v401 = vsel %vm334, %v396, 0
    %403 = vmatpush.bf16.xpose.msra.mxu0 0
    %404 = vmatpush.bf16.xpose.msra.mxu0 0
    %405 = vmatpush.bf16.xpose.msra.mxu0 0
    %406 = vmatpush.bf16.xpose.msra.mxu0 0
    %407 = vmatpush.bf16.xpose.msra.mxu0 0
    %408 = vmatpush.bf16.xpose.msra.mxu0 0
    %409 = vmatpush.bf16.xpose.msra.mxu0 0
    %410 = vmatpush.bf16.xpose.msra.mxu0 %v401
    %411 = vmatmul.bf16.gmra.mxu0 %v398
    %v412 = vpop.f32.mrf.mxu0
    %v413 = vadd.f32 %v327, %v412
    %v414 = vpop.f32.mrf.mxu0
    %415 = vdwg.mxu0
    %v416 = vsel %vm354, %v413, -inf
    %417 = vmax.xlane.f32.xlu0 %v416
    %v418 = vpop.xlane.xlu0 %417
    %v419 = vsub.f32 %v413, %v418
    %v420 = vmul.f32 %v419, 1.442695
    %v421 = vpow.pop %v420
    %v422 = vsel %vm354, %v421, 0.0
    %423 = vadd.xlane.f32.xlu0 %v422
    %v424 = vpop.xlane.xlu0 %423
    %v425 = vrcp.pop %v424
    %v426 = vmul.f32 %v421, %v425
    %v427 = vpack.c.bf16 %v426, %v426
    %428 = vrot.lane.b32.xlu0 %v371, 120
    %v429 = vpop.permute.xlu0 %428
    %v432 = vsel %vm354, %v427, 0
    %434 = vmatpush.bf16.msra.mxu0 0
    %435 = vmatpush.bf16.msra.mxu0 0
    %436 = vmatpush.bf16.msra.mxu0 0
    %437 = vmatpush.bf16.msra.mxu0 0
    %438 = vmatpush.bf16.msra.mxu0 0
    %439 = vmatpush.bf16.msra.mxu0 0
    %440 = vmatpush.bf16.msra.mxu0 0
    %441 = vmatpush.bf16.msra.mxu0 %v429
    %442 = vmatmul.bf16.gmra.mxu0 %v432
    %v443 = vpop.f32.mrf.mxu0
    %v444 = vadd.f32 0.0, %v443
    %v445 = vpop.f32.mrf.mxu0
    %446 = vdwg.mxu0
    %448 = vrot.lane.b32.xlu0 %v444, 8
    %v449 = vpop.permute.xlu0 %448
    %vm451 = vcmask 130112
    %452 = vst.msk [vmem:[#allocation2] sm:$0xff] %vm451, %v449
    %453 = vrot.lane.b32.xlu0 %v392, 112
    %v454 = vpop.permute.xlu0 %453
    %455 = vrot.lane.b32.xlu0 %v333, 112
    %v456 = vpop.permute.xlu0 %455
    %v458 = vsel %vm334, %v454, 0
    %v461 = vsel %vm334, %v456, 0
    %463 = vmatpush.bf16.xpose.msra.mxu0 0
    %464 = vmatpush.bf16.xpose.msra.mxu0 0
    %465 = vmatpush.bf16.xpose.msra.mxu0 0
    %466 = vmatpush.bf16.xpose.msra.mxu0 0
    %467 = vmatpush.bf16.xpose.msra.mxu0 0
    %468 = vmatpush.bf16.xpose.msra.mxu0 0
    %469 = vmatpush.bf16.xpose.msra.mxu0 0
    %470 = vmatpush.bf16.xpose.msra.mxu0 %v461
    %471 = vmatmul.bf16.gmra.mxu0 %v458
    %v472 = vpop.f32.mrf.mxu0
    %v473 = vadd.f32 %v327, %v472
    %v474 = vpop.f32.mrf.mxu0
    %475 = vdwg.mxu0
    %v476 = vsel %vm354, %v473, -inf
    %477 = vmax.xlane.f32.xlu0 %v476
    %v478 = vpop.xlane.xlu0 %477
    %v479 = vsub.f32 %v473, %v478
    %v480 = vmul.f32 %v479, 1.442695
    %v481 = vpow.pop %v480
    %v482 = vsel %vm354, %v481, 0.0
    %483 = vadd.xlane.f32.xlu0 %v482
    %v484 = vpop.xlane.xlu0 %483
    %v485 = vrcp.pop %v484
    %v486 = vmul.f32 %v481, %v485
    %v487 = vpack.c.bf16 %v486, %v486
    %488 = vrot.lane.b32.xlu0 %v371, 112
    %v489 = vpop.permute.xlu0 %488
    %v492 = vsel %vm354, %v487, 0
    %494 = vmatpush.bf16.msra.mxu0 0
    %495 = vmatpush.bf16.msra.mxu0 0
    %496 = vmatpush.bf16.msra.mxu0 0
    %497 = vmatpush.bf16.msra.mxu0 0
    %498 = vmatpush.bf16.msra.mxu0 0
    %499 = vmatpush.bf16.msra.mxu0 0
    %500 = vmatpush.bf16.msra.mxu0 0
    %501 = vmatpush.bf16.msra.mxu0 %v489
    %502 = vmatmul.bf16.gmra.mxu0 %v492
    %v503 = vpop.f32.mrf.mxu0
    %v504 = vadd.f32 0.0, %v503
    %v505 = vpop.f32.mrf.mxu0
    %506 = vdwg.mxu0
    %508 = vrot.lane.b32.xlu0 %v504, 16
    %v509 = vpop.permute.xlu0 %508
    %vm511 = vcmask 195712
    %512 = vst.msk [vmem:[#allocation2] sm:$0xff] %vm511, %v509
    %513 = vrot.lane.b32.xlu0 %v392, 104
    %v514 = vpop.permute.xlu0 %513
    %515 = vrot.lane.b32.xlu0 %v333, 104
    %v516 = vpop.permute.xlu0 %515
    %v518 = vsel %vm334, %v514, 0
    %v521 = vsel %vm334, %v516, 0
    %523 = vmatpush.bf16.xpose.msra.mxu0 0
    %524 = vmatpush.bf16.xpose.msra.mxu0 0
    %525 = vmatpush.bf16.xpose.msra.mxu0 0
    %526 = vmatpush.bf16.xpose.msra.mxu0 0
    %527 = vmatpush.bf16.xpose.msra.mxu0 0
    %528 = vmatpush.bf16.xpose.msra.mxu0 0
    %529 = vmatpush.bf16.xpose.msra.mxu0 0
    %530 = vmatpush.bf16.xpose.msra.mxu0 %v521
    %531 = vmatmul.bf16.gmra.mxu0 %v518
    %v532 = vpop.f32.mrf.mxu0
    %v533 = vadd.f32 %v327, %v532
    %v534 = vpop.f32.mrf.mxu0
    %535 = vdwg.mxu0
    %v536 = vsel %vm354, %v533, -inf
    %537 = vmax.xlane.f32.xlu0 %v536
    %v538 = vpop.xlane.xlu0 %537
    %v539 = vsub.f32 %v533, %v538
    %v540 = vmul.f32 %v539, 1.442695
    %v541 = vpow.pop %v540
    %v542 = vsel %vm354, %v541, 0.0
    %543 = vadd.xlane.f32.xlu0 %v542
    %v544 = vpop.xlane.xlu0 %543
    %v545 = vrcp.pop %v544
    %v546 = vmul.f32 %v541, %v545
    %v547 = vpack.c.bf16 %v546, %v546
    %548 = vrot.lane.b32.xlu0 %v371, 104
    %v549 = vpop.permute.xlu0 %548
    %v552 = vsel %vm354, %v547, 0
    %554 = vmatpush.bf16.msra.mxu0 0
    %555 = vmatpush.bf16.msra.mxu0 0
    %556 = vmatpush.bf16.msra.mxu0 0
    %557 = vmatpush.bf16.msra.mxu0 0
    %558 = vmatpush.bf16.msra.mxu0 0
    %559 = vmatpush.bf16.msra.mxu0 0
    %560 = vmatpush.bf16.msra.mxu0 0
    %561 = vmatpush.bf16.msra.mxu0 %v549
    %562 = vmatmul.bf16.gmra.mxu0 %v552
    %v563 = vpop.f32.mrf.mxu0
    %v564 = vadd.f32 0.0, %v563
    %v565 = vpop.f32.mrf.mxu0
    %566 = vdwg.mxu0
    %568 = vrot.lane.b32.xlu0 %v564, 24
    %v569 = vpop.permute.xlu0 %568
    %vm571 = vcmask 261312
    %572 = vst.msk [vmem:[#allocation2] sm:$0xff] %vm571, %v569
    %s573 = scalar_lea.vmem %s4, 1
    %v574 = vld [vmem:[%s573] sm:$0x1]
    %v576 = vperm.slane %v574, 0
    %v580 = vunpack.c.l.b16 %v277
    %v581 = vunpack.c.l.b16 %v278
    %v582 = vpack.c.b16 %v581, %v580
    %v584 = vsel %vm334, %v232, 0
    %v587 = vsel %vm334, %v582, 0
    %589 = vmatpush.bf16.xpose.msra.mxu0 0
    %590 = vmatpush.bf16.xpose.msra.mxu0 0
    %591 = vmatpush.bf16.xpose.msra.mxu0 0
    %592 = vmatpush.bf16.xpose.msra.mxu0 0
    %593 = vmatpush.bf16.xpose.msra.mxu0 0
    %594 = vmatpush.bf16.xpose.msra.mxu0 0
    %595 = vmatpush.bf16.xpose.msra.mxu0 0
    %596 = vmatpush.bf16.xpose.msra.mxu0 %v587
    %597 = vmatmul.bf16.gmra.mxu0 %v584
    %v598 = vpop.f32.mrf.mxu0
    %v599 = vadd.f32 %v576, %v598
    %v600 = vpop.f32.mrf.mxu0
    %601 = vdwg.mxu0
    %v602 = vsel %vm354, %v599, -inf
    %603 = vmax.xlane.f32.xlu0 %v602
    %v604 = vpop.xlane.xlu0 %603
    %v605 = vsub.f32 %v599, %v604
    %v606 = vmul.f32 %v605, 1.442695
    %v607 = vpow.pop %v606
    %v608 = vsel %vm354, %v607, 0.0
    %609 = vadd.xlane.f32.xlu0 %v608
    %v610 = vpop.xlane.xlu0 %609
    %v611 = vrcp.pop %v610
    %v612 = vmul.f32 %v607, %v611
    %v613 = vpack.c.bf16 %v612, %v612
    %v616 = vunpack.c.l.b16 %v323
    %v617 = vunpack.c.l.b16 %v324
    %v618 = vpack.c.b16 %v617, %v616
    %v621 = vsel %vm354, %v613, 0
    %623 = vmatpush.bf16.msra.mxu0 0
    %624 = vmatpush.bf16.msra.mxu0 0
    %625 = vmatpush.bf16.msra.mxu0 0
    %626 = vmatpush.bf16.msra.mxu0 0
    %627 = vmatpush.bf16.msra.mxu0 0
    %628 = vmatpush.bf16.msra.mxu0 0
    %629 = vmatpush.bf16.msra.mxu0 0
    %630 = vmatpush.bf16.msra.mxu0 %v618
    %631 = vmatmul.bf16.gmra.mxu0 %v621
    %v632 = vpop.f32.mrf.mxu0
    %v633 = vadd.f32 0.0, %v632
    %v634 = vpop.f32.mrf.mxu0
    %635 = vdwg.mxu0
    %636 = vst.msk [vmem:[#allocation2 + $0x8] sm:$0xff] %vm334, %v633
    %v638 = vunpack.c.l.b16 %v232
    %v639 = vpack.c.b16 %v638, %v638
    %640 = vrot.lane.b32.xlu0 %v639, 120
    %v641 = vpop.permute.xlu0 %640
    %642 = vrot.lane.b32.xlu0 %v582, 120
    %v643 = vpop.permute.xlu0 %642
    %v645 = vsel %vm334, %v641, 0
    %v648 = vsel %vm334, %v643, 0
    %650 = vmatpush.bf16.xpose.msra.mxu0 0
    %651 = vmatpush.bf16.xpose.msra.mxu0 0
    %652 = vmatpush.bf16.xpose.msra.mxu0 0
    %653 = vmatpush.bf16.xpose.msra.mxu0 0
    %654 = vmatpush.bf16.xpose.msra.mxu0 0
    %655 = vmatpush.bf16.xpose.msra.mxu0 0
    %656 = vmatpush.bf16.xpose.msra.mxu0 0
    %657 = vmatpush.bf16.xpose.msra.mxu0 %v648
    %658 = vmatmul.bf16.gmra.mxu0 %v645
    %v659 = vpop.f32.mrf.mxu0
    %v660 = vadd.f32 %v576, %v659
    %v661 = vpop.f32.mrf.mxu0
    %662 = vdwg.mxu0
    %v663 = vsel %vm354, %v660, -inf
    %664 = vmax.xlane.f32.xlu0 %v663
    %v665 = vpop.xlane.xlu0 %664
    %v666 = vsub.f32 %v660, %v665
    %v667 = vmul.f32 %v666, 1.442695
    %v668 = vpow.pop %v667
    %v669 = vsel %vm354, %v668, 0.0
    %670 = vadd.xlane.f32.xlu0 %v669
    %v671 = vpop.xlane.xlu0 %670
    %v672 = vrcp.pop %v671
    %v673 = vmul.f32 %v668, %v672
    %v674 = vpack.c.bf16 %v673, %v673
    %675 = vrot.lane.b32.xlu0 %v618, 120
    %v676 = vpop.permute.xlu0 %675
    %v679 = vsel %vm354, %v674, 0
    %681 = vmatpush.bf16.msra.mxu0 0
    %682 = vmatpush.bf16.msra.mxu0 0
    %683 = vmatpush.bf16.msra.mxu0 0
    %684 = vmatpush.bf16.msra.mxu0 0
    %685 = vmatpush.bf16.msra.mxu0 0
    %686 = vmatpush.bf16.msra.mxu0 0
    %687 = vmatpush.bf16.msra.mxu0 0
    %688 = vmatpush.bf16.msra.mxu0 %v676
    %689 = vmatmul.bf16.gmra.mxu0 %v679
    %v690 = vpop.f32.mrf.mxu0
    %v691 = vadd.f32 0.0, %v690
    %v692 = vpop.f32.mrf.mxu0
    %693 = vdwg.mxu0
    %695 = vrot.lane.b32.xlu0 %v691, 8
    %v696 = vpop.permute.xlu0 %695
    %698 = vst.msk [vmem:[#allocation2 + $0x8] sm:$0xff] %vm451, %v696
    %699 = vrot.lane.b32.xlu0 %v639, 112
    %v700 = vpop.permute.xlu0 %699
    %701 = vrot.lane.b32.xlu0 %v582, 112
    %v702 = vpop.permute.xlu0 %701
    %v704 = vsel %vm334, %v700, 0
    %v707 = vsel %vm334, %v702, 0
    %709 = vmatpush.bf16.xpose.msra.mxu0 0
    %710 = vmatpush.bf16.xpose.msra.mxu0 0
    %711 = vmatpush.bf16.xpose.msra.mxu0 0
    %712 = vmatpush.bf16.xpose.msra.mxu0 0
    %713 = vmatpush.bf16.xpose.msra.mxu0 0
    %714 = vmatpush.bf16.xpose.msra.mxu0 0
    %715 = vmatpush.bf16.xpose.msra.mxu0 0
    %716 = vmatpush.bf16.xpose.msra.mxu0 %v707
    %717 = vmatmul.bf16.gmra.mxu0 %v704
    %v718 = vpop.f32.mrf.mxu0
    %v719 = vadd.f32 %v576, %v718
    %v720 = vpop.f32.mrf.mxu0
    %721 = vdwg.mxu0
    %v722 = vsel %vm354, %v719, -inf
    %723 = vmax.xlane.f32.xlu0 %v722
    %v724 = vpop.xlane.xlu0 %723
    %v725 = vsub.f32 %v719, %v724
    %v726 = vmul.f32 %v725, 1.442695
    %v727 = vpow.pop %v726
    %v728 = vsel %vm354, %v727, 0.0
    %729 = vadd.xlane.f32.xlu0 %v728
    %v730 = vpop.xlane.xlu0 %729
    %v731 = vrcp.pop %v730
    %v732 = vmul.f32 %v727, %v731
    %v733 = vpack.c.bf16 %v732, %v732
    %734 = vrot.lane.b32.xlu0 %v618, 112
    %v735 = vpop.permute.xlu0 %734
    %v738 = vsel %vm354, %v733, 0
    %740 = vmatpush.bf16.msra.mxu0 0
    %741 = vmatpush.bf16.msra.mxu0 0
    %742 = vmatpush.bf16.msra.mxu0 0
    %743 = vmatpush.bf16.msra.mxu0 0
    %744 = vmatpush.bf16.msra.mxu0 0
    %745 = vmatpush.bf16.msra.mxu0 0
    %746 = vmatpush.bf16.msra.mxu0 0
    %747 = vmatpush.bf16.msra.mxu0 %v735
    %748 = vmatmul.bf16.gmra.mxu0 %v738
    %v749 = vpop.f32.mrf.mxu0
    %v750 = vadd.f32 0.0, %v749
    %v751 = vpop.f32.mrf.mxu0
    %752 = vdwg.mxu0
    %754 = vrot.lane.b32.xlu0 %v750, 16
    %v755 = vpop.permute.xlu0 %754
    %757 = vst.msk [vmem:[#allocation2 + $0x8] sm:$0xff] %vm511, %v755
    %758 = vrot.lane.b32.xlu0 %v639, 104
    %v759 = vpop.permute.xlu0 %758
    %760 = vrot.lane.b32.xlu0 %v582, 104
    %v761 = vpop.permute.xlu0 %760
    %v763 = vsel %vm334, %v759, 0
    %v766 = vsel %vm334, %v761, 0
    %768 = vmatpush.bf16.xpose.msra.mxu0 0
    %769 = vmatpush.bf16.xpose.msra.mxu0 0
    %770 = vmatpush.bf16.xpose.msra.mxu0 0
    %771 = vmatpush.bf16.xpose.msra.mxu0 0
    %772 = vmatpush.bf16.xpose.msra.mxu0 0
    %773 = vmatpush.bf16.xpose.msra.mxu0 0
    %774 = vmatpush.bf16.xpose.msra.mxu0 0
    %775 = vmatpush.bf16.xpose.msra.mxu0 %v766
    %776 = vmatmul.bf16.gmra.mxu0 %v763
    %v777 = vpop.f32.mrf.mxu0
    %v778 = vadd.f32 %v576, %v777
    %v779 = vpop.f32.mrf.mxu0
    %780 = vdwg.mxu0
    %v781 = vsel %vm354, %v778, -inf
    %782 = vmax.xlane.f32.xlu0 %v781
    %v783 = vpop.xlane.xlu0 %782
    %v784 = vsub.f32 %v778, %v783
    %v785 = vmul.f32 %v784, 1.442695
    %v786 = vpow.pop %v785
    %v787 = vsel %vm354, %v786, 0.0
    %788 = vadd.xlane.f32.xlu0 %v787
    %v789 = vpop.xlane.xlu0 %788
    %v790 = vrcp.pop %v789
    %v791 = vmul.f32 %v786, %v790
    %v792 = vpack.c.bf16 %v791, %v791
    %793 = vrot.lane.b32.xlu0 %v618, 104
    %v794 = vpop.permute.xlu0 %793
    %v797 = vsel %vm354, %v792, 0
    %799 = vmatpush.bf16.msra.mxu0 0
    %800 = vmatpush.bf16.msra.mxu0 0
    %801 = vmatpush.bf16.msra.mxu0 0
    %802 = vmatpush.bf16.msra.mxu0 0
    %803 = vmatpush.bf16.msra.mxu0 0
    %804 = vmatpush.bf16.msra.mxu0 0
    %805 = vmatpush.bf16.msra.mxu0 0
    %806 = vmatpush.bf16.msra.mxu0 %v794
    %807 = vmatmul.bf16.gmra.mxu0 %v797
    %v808 = vpop.f32.mrf.mxu0
    %v809 = vadd.f32 0.0, %v808
    %v810 = vpop.f32.mrf.mxu0
    %811 = vdwg.mxu0
    %813 = vrot.lane.b32.xlu0 %v809, 24
    %v814 = vpop.permute.xlu0 %813
    %816 = vst.msk [vmem:[#allocation2 + $0x8] sm:$0xff] %vm571, %v814
    %v817 = vld [vmem:[#allocation2] sm:$0xff]
    %v818 = vld [vmem:[#allocation2 + $0x8] sm:$0xff]
    %v819 = vpack.c.bf16 %v818, %v817
    %v820 = vld [vmem:[#allocation12] sm:$0xf]
    %v821 = vld [vmem:[#allocation12 + $0x4] sm:$0xf]
    %v822 = vld [vmem:[#allocation12 + $0x8] sm:$0xf]
    %v823 = vld [vmem:[#allocation12 + $0xc] sm:$0xf]
    %v824 = vperm.slane %v194, 3
    %v829 = vunpack.c.l.b16 %v820
    %v830 = vunpack.c.l.b16 %v821
    %v831 = vunpack.c.l.b16 %v822
    %v832 = vunpack.c.l.b16 %v823
    %v833 = vpack.c.b16 %v830, %v829
    %v834 = vpack.c.b16 %v832, %v831
    %v838 = vsel %vm213, %v819, 0
    %840 = vmatpush.bf16.msra.mxu0 0
    %841 = vmatpush.bf16.msra.mxu0 0
    %842 = vmatpush.bf16.msra.mxu0 0
    %843 = vmatpush.bf16.msra.mxu0 0
    %844 = vmatpush.bf16.msra.mxu0 0
    %845 = vmatpush.bf16.msra.mxu0 0
    %846 = vmatpush.bf16.msra.mxu0 %v834
    %847 = vmatpush.bf16.msra.mxu0 %v833
    %848 = vmatmul.bf16.gmra.mxu0 %v838
    %v849 = vpop.f32.mrf.mxu0
    %v850 = vadd.f32 %v824, %v849
    %v851 = vpop.f32.mrf.mxu0
    %v852 = vadd.f32 %v824, %v851
    %853 = vdwg.mxu0
    %v854 = vadd.f32 %v171, %v850
    %v855 = vadd.f32 %v172, %v852
    %v856 = vsel %vm213, %v854, 0.0
    %857 = vadd.xlane.f32.xlu0 %v856
    %v858 = vpop.xlane.xlu0 %857
    %v859 = vsel %vm213, %v855, 0.0
    %860 = vadd.xlane.f32.xlu0 %v859
    %v861 = vpop.xlane.xlu0 %860
    %v862 = vrcp.pop 32.0
    %v863 = vmul.f32 32.0, %v862
    %v864 = vsub.f32 1.0, %v863
    %v865 = vmul.f32 %v862, %v864
    %v866 = vadd.f32 %v862, %v865
    %vm867 = vweird.f32 %v862
    %v868 = vsel %vm867, %v862, %v866
    %v869 = vmul.f32 %v858, %v868
    %v870 = vmul.f32 %v861, %v868
    %v871 = vsub.f32 %v854, %v869
    %v872 = vsub.f32 %v855, %v870
    %v873 = vmul.f32 %v871, %v871
    %v874 = vmul.f32 %v872, %v872
    %v875 = vsel %vm213, %v873, 0.0
    %876 = vadd.xlane.f32.xlu0 %v875
    %v877 = vpop.xlane.xlu0 %876
    %v878 = vsel %vm213, %v874, 0.0
    %879 = vadd.xlane.f32.xlu0 %v878
    %v880 = vpop.xlane.xlu0 %879
    %v881 = vmul.f32 %v877, %v868
    %v882 = vmul.f32 %v880, %v868
    %v883 = vadd.f32 %v881, 1e-05
    %v884 = vadd.f32 %v882, 1e-05
    %v885 = vrsqrt.pop %v883
    %v886 = vmul.f32 %v885, %v883
    %v887 = vmul.f32 %v886, %v885
    %v888 = vmul.f32 0.5, %v887
    %v889 = vsub.f32 1.5, %v888
    %v890 = vmul.f32 %v885, %v889
    %vm891 = vweird.f32 %v883
    %vm892 = vweird.f32 %v885
    %vm893 = vmor %vm891, %vm892
    %v894 = vsel %vm893, %v885, %v890
    %v895 = vrsqrt.pop %v884
    %v896 = vmul.f32 %v895, %v884
    %v897 = vmul.f32 %v896, %v895
    %v898 = vmul.f32 0.5, %v897
    %v899 = vsub.f32 1.5, %v898
    %v900 = vmul.f32 %v895, %v899
    %vm901 = vweird.f32 %v884
    %vm902 = vweird.f32 %v895
    %vm903 = vmor %vm901, %vm902
    %v904 = vsel %vm903, %v895, %v900
    %v905 = vmul.f32 %v871, %v894
    %v906 = vmul.f32 %v872, %v904
    %v907 = vperm.slane %v194, 5
    %v908 = vmul.f32 %v905, %v907
    %v909 = vmul.f32 %v906, %v907
    %v910 = vperm.slane %v194, 6
    %v911 = vadd.f32 %v908, %v910
    %v912 = vadd.f32 %v909, %v910
    %v913 = vpack.c.bf16 %v912, %v911
    %v914 = vld [vmem:[#allocation14] sm:$0xf]
    %v915 = vld [vmem:[#allocation14 + $0x4] sm:$0xf]
    %v916 = vld [vmem:[#allocation14 + $0x8] sm:$0xf]
    %v917 = vld [vmem:[#allocation14 + $0xc] sm:$0xf]
    %v918 = vld [vmem:[%s12] sm:$0x1]
    %v920 = vperm.slane %v918, 0
    %v926 = vunpack.c.l.b16 %v914
    %v927 = vunpack.c.l.b16 %v915
    %v928 = vunpack.c.l.b16 %v916
    %v929 = vunpack.c.l.b16 %v917
    %v930 = vpack.c.b16 %v927, %v926
    %v931 = vpack.c.b16 %v929, %v928
    %v935 = vsel %vm213, %v913, 0
    %937 = vmatpush.bf16.msra.mxu0 0
    %938 = vmatpush.bf16.msra.mxu0 0
    %939 = vmatpush.bf16.msra.mxu0 0
    %940 = vmatpush.bf16.msra.mxu0 0
    %941 = vmatpush.bf16.msra.mxu0 0
    %942 = vmatpush.bf16.msra.mxu0 0
    %943 = vmatpush.bf16.msra.mxu0 %v931
    %944 = vmatpush.bf16.msra.mxu0 %v930
    %945 = vmatmul.bf16.gmra.mxu0 %v935
    %v946 = vpop.f32.mrf.mxu0
    %v947 = vadd.f32 %v920, %v946
    %v948 = vpop.f32.mrf.mxu0
    %v949 = vadd.f32 %v920, %v948
    %950 = vdwg.mxu0
    %v951 = vmax.f32 %v947, 0.0
    %v952 = vmax.f32 %v949, 0.0
    %v953 = vpack.c.bf16 %v952, %v951
    %v954 = vld [vmem:[%s10] sm:$0xf]
    %v955 = vld [vmem:[%s10 + $0x4] sm:$0xf]
    %v956 = vld [vmem:[%s10 + $0x8] sm:$0xf]
    %v957 = vld [vmem:[%s10 + $0xc] sm:$0xf]
    %v958 = vld [vmem:[%s10 + $0x10] sm:$0xf]
    %v959 = vld [vmem:[%s10 + $0x14] sm:$0xf]
    %v960 = vld [vmem:[%s10 + $0x18] sm:$0xf]
    %v961 = vld [vmem:[%s10 + $0x1c] sm:$0xf]
    %v962 = vperm.slane %v194, 4
    %v971 = vunpack.c.l.b16 %v954
    %v972 = vunpack.c.l.b16 %v955
    %v973 = vunpack.c.l.b16 %v956
    %v974 = vunpack.c.l.b16 %v957
    %v975 = vunpack.c.l.b16 %v958
    %v976 = vunpack.c.l.b16 %v959
    %v977 = vunpack.c.l.b16 %v960
    %v978 = vunpack.c.l.b16 %v961
    %v979 = vpack.c.b16 %v972, %v971
    %v980 = vpack.c.b16 %v974, %v973
    %v981 = vpack.c.b16 %v976, %v975
    %v982 = vpack.c.b16 %v978, %v977
    %vm987 = vcmask 523264
    %v989 = vsel %vm987, %v953, 0
    %991 = vmatpush.bf16.msra.mxu0 0
    %992 = vmatpush.bf16.msra.mxu0 0
    %993 = vmatpush.bf16.msra.mxu0 0
    %994 = vmatpush.bf16.msra.mxu0 0
    %995 = vmatpush.bf16.msra.mxu0 %v982
    %996 = vmatpush.bf16.msra.mxu0 %v981
    %997 = vmatpush.bf16.msra.mxu0 %v980
    %998 = vmatpush.bf16.msra.mxu0 %v979
    %999 = vmatmul.bf16.gmra.mxu0 %v989
    %v1000 = vpop.f32.mrf.mxu0
    %v1001 = vadd.f32 %v962, %v1000
    %v1002 = vpop.f32.mrf.mxu0
    %v1003 = vadd.f32 %v962, %v1002
    %1004 = vdwg.mxu0
    %v1005 = vadd.f32 %v911, %v1001
    %v1006 = vadd.f32 %v912, %v1003
    %v1007 = vsel %vm213, %v1005, 0.0
    %1008 = vadd.xlane.f32.xlu0 %v1007
    %v1009 = vpop.xlane.xlu0 %1008
    %v1010 = vsel %vm213, %v1006, 0.0
    %1011 = vadd.xlane.f32.xlu0 %v1010
    %v1012 = vpop.xlane.xlu0 %1011
    %v1013 = vmul.f32 %v1009, %v868
    %v1014 = vmul.f32 %v1012, %v868
    %v1015 = vsub.f32 %v1005, %v1013
    %v1016 = vsub.f32 %v1006, %v1014
    %v1017 = vmul.f32 %v1015, %v1015
    %v1018 = vmul.f32 %v1016, %v1016
    %v1019 = vsel %vm213, %v1017, 0.0
    %1020 = vadd.xlane.f32.xlu0 %v1019
    %v1021 = vpop.xlane.xlu0 %1020
    %v1022 = vsel %vm213, %v1018, 0.0
    %1023 = vadd.xlane.f32.xlu0 %v1022
    %v1024 = vpop.xlane.xlu0 %1023
    %v1025 = vmul.f32 %v1021, %v868
    %v1026 = vmul.f32 %v1024, %v868
    %v1027 = vadd.f32 %v1025, 1e-05
    %v1028 = vadd.f32 %v1026, 1e-05
    %v1029 = vrsqrt.pop %v1027
    %v1030 = vmul.f32 %v1029, %v1027
    %v1031 = vmul.f32 %v1030, %v1029
    %v1032 = vmul.f32 0.5, %v1031
    %v1033 = vsub.f32 1.5, %v1032
    %v1034 = vmul.f32 %v1029, %v1033
    %vm1035 = vweird.f32 %v1027
    %vm1036 = vweird.f32 %v1029
    %vm1037 = vmor %vm1035, %vm1036
    %v1038 = vsel %vm1037, %v1029, %v1034
    %v1039 = vrsqrt.pop %v1028
    %v1040 = vmul.f32 %v1039, %v1028
    %v1041 = vmul.f32 %v1040, %v1039
    %v1042 = vmul.f32 0.5, %v1041
    %v1043 = vsub.f32 1.5, %v1042
    %v1044 = vmul.f32 %v1039, %v1043
    %vm1045 = vweird.f32 %v1028
    %vm1046 = vweird.f32 %v1039
    %vm1047 = vmor %vm1045, %vm1046
    %v1048 = vsel %vm1047, %v1039, %v1044
    %v1049 = vmul.f32 %v1015, %v1038
    %v1050 = vmul.f32 %v1016, %v1048
    %v1051 = vperm.slane %v194, 7
    %v1052 = vmul.f32 %v1049, %v1051
    %v1053 = vmul.f32 %v1050, %v1051
    %v1054 = vperm.slane %v195, 0
    %v1055 = vadd.f32 %v1052, %v1054
    %v1056 = vadd.f32 %v1053, %v1054
    %v1057 = vsel %vm213, %v1055, 0.0
    %1058 = vadd.xlane.f32.xlu0 %v1057
    %v1059 = vpop.xlane.xlu0 %1058
    %v1060 = vsel %vm213, %v1056, 0.0
    %1061 = vadd.xlane.f32.xlu0 %v1060
    %v1062 = vpop.xlane.xlu0 %1061
    %v1063 = vmul.f32 %v1059, %v868
    %v1064 = vmul.f32 %v1062, %v868
    %v1065 = vsub.f32 %v1055, %v1063
    %v1066 = vsub.f32 %v1056, %v1064
    %v1067 = vmul.f32 %v1065, %v1065
    %v1068 = vmul.f32 %v1066, %v1066
    %v1069 = vsel %vm213, %v1067, 0.0
    %1070 = vadd.xlane.f32.xlu0 %v1069
    %v1071 = vpop.xlane.xlu0 %1070
    %v1072 = vsel %vm213, %v1068, 0.0
    %1073 = vadd.xlane.f32.xlu0 %v1072
    %v1074 = vpop.xlane.xlu0 %1073
    %v1075 = vmul.f32 %v1071, %v868
    %v1076 = vmul.f32 %v1074, %v868
    %v1077 = vadd.f32 %v1075, 1e-05
    %v1078 = vadd.f32 %v1076, 1e-05
    %v1079 = vrsqrt.pop %v1077
    %v1080 = vmul.f32 %v1079, %v1077
    %v1081 = vmul.f32 %v1080, %v1079
    %v1082 = vmul.f32 0.5, %v1081
    %v1083 = vsub.f32 1.5, %v1082
    %v1084 = vmul.f32 %v1079, %v1083
    %vm1085 = vweird.f32 %v1077
    %vm1086 = vweird.f32 %v1079
    %vm1087 = vmor %vm1085, %vm1086
    %v1088 = vsel %vm1087, %v1079, %v1084
    %v1089 = vrsqrt.pop %v1078
    %v1090 = vmul.f32 %v1089, %v1078
    %v1091 = vmul.f32 %v1090, %v1089
    %v1092 = vmul.f32 0.5, %v1091
    %v1093 = vsub.f32 1.5, %v1092
    %v1094 = vmul.f32 %v1089, %v1093
    %vm1095 = vweird.f32 %v1078
    %vm1096 = vweird.f32 %v1089
    %vm1097 = vmor %vm1095, %vm1096
    %v1098 = vsel %vm1097, %v1089, %v1094
    %v1099 = vmul.f32 %v1065, %v1088
    %v1100 = vmul.f32 %v1066, %v1098
    %v1101 = vperm.slane %v195, 1
    %v1102 = vmul.f32 %v1099, %v1101
    %v1103 = vmul.f32 %v1100, %v1101
    %v1104 = vperm.slane %v195, 2
    %v1105 = vadd.f32 %v1102, %v1104
    %v1106 = vadd.f32 %v1103, %v1104
    %1107 = vst.msk [vmem:[#allocation17] sm:$0xff] %vm213, %v1105
    %1108 = vst.msk [vmem:[#allocation17 + $0x8] sm:$0xff] %vm213, %v1106
    // Predicated region
    $region86: #{tpu_custom_call.1} parent=1 // pred_check
      _
    $region87: #{tpu_custom_call.1} parent=1 // pred_check_branch
      %1110 = sbr.rel (0) target = $region89
    $region88: #{tpu_custom_call.1} parent=1 // pred_region
      %1112 = vsyncadd [#allocation5], 0
      %s1113 = sshll.u32 [#allocation17], 4
      %s1114 = int_to_ptr.vmem [resolvable:$true] %s1113
      %s1115 = sshll.u32 %s13, 4
      %s1116 = int_to_ptr.hbm [resolvable:$true] %s1115
      %1121 = dma.vmem_to_hbm [thread:$0]  %s1114, 256, %s1116, [#allocation5], 128, 128, 8
    $region89: #{tpu_custom_call.1} parent=1 // pred_fallthru
      _
    // Predicated region
    $region90: #{tpu_custom_call.1} parent=1 // pred_check
      _
    $region91: #{tpu_custom_call.1} parent=1 // pred_check_branch
      %1123 = sbr.rel (0) target = $region93
    $region92: #{tpu_custom_call.1} parent=1 // pred_region
      %1125 = dma.done [#allocation5], 256
    $region93: #{tpu_custom_call.1} parent=1 // pred_fallthru
      _
    %1126 = vsyncpa [#allocation4], 1
    %1127 = vsyncpa [#allocation7], 1
    %1128 = vsyncpa [#allocation10], 1
    %1129 = vsyncpa [#allocation13], 1
    %1130 = vsyncpa [#allocation16], 1
    %1131 = vsyncpa [#allocation5], 1

</llo_original>
